<compile_context>
chip_gen: v7x
topology: tpu7x:2x2x1
jax: 0.10.0
libtpu: 0.0.40
codegen_flags: <defaults>
</compile_context>

<pallas_src>
import functools

import jax
import jax.numpy as jnp
from jax.experimental import pallas as pl
from jax.experimental.pallas import tpu as pltpu


def _layernorm(v, g, b, eps):
    mu = jnp.mean(v, axis=-1, keepdims=True)
    var = jnp.mean((v - mu) ** 2, axis=-1, keepdims=True)
    return (v - mu) * jax.lax.rsqrt(var + eps) * g + b


def _cascade_kernel(*refs, pooler_cfgs, eps, mxu_dtype, approx_recip):
    """Full cascaded-pooler forward for one batch block.

    refs layout:
      refs[0]                      : x block            (B_blk, S, Din)
      refs[1 + 9*p : 1 + 9*(p+1)]  : pooler p params
          q_heads  (n_head, Nq, hd)   -- LN(query) @ Wq + bq, head-split, pre-scaled
          lnk_g, lnk_b (1, Din_p)
          wkv (Din_p, 2*Dout), bkv (1, 2*Dout)     -- fused K/V projection
          wo  (Dout, Dout),  bo  (1, Dout)
          lnp_g, lnp_b (1, Dout)
      refs[1 + 9*n_pool + p]       : pooler p output block (B_blk, Nq, Dout)
    """
    n_pool = len(pooler_cfgs)
    x_ref = refs[0]
    param_refs = refs[1:1 + 9 * n_pool]
    out_refs = refs[1 + 9 * n_pool:]

    cur = x_ref[...].astype(jnp.float32)                 # (B_blk, S, Din), f32 carry

    for p in range(n_pool):
        n_head, head_dim = pooler_cfgs[p]
        (q_ref, lnkg_ref, lnkb_ref, wkv_ref, bkv_ref,
         wo_ref, bo_ref, lnpg_ref, lnpb_ref) = param_refs[9 * p:9 * (p + 1)]

        b_blk, s_len, d_in = cur.shape
        d_out = wo_ref.shape[0]

        # ---- K/V projection on the flattened (B_blk*S, Din) slab (fills MXU M) ----
        xk = _layernorm(cur, lnkg_ref[...], lnkb_ref[...], eps)
        xk = xk.reshape(b_blk * s_len, d_in)              # leading-dim merge (free)
        kv = jnp.dot(xk.astype(mxu_dtype), wkv_ref[...].astype(mxu_dtype),
                     preferred_element_type=jnp.float32) + bkv_ref[...]
        kv = kv.astype(mxu_dtype)                         # (B*S, 2*Dout), MXU dtype

        q_heads = q_ref[...]                              # (n_head, Nq, hd), pre-scaled
        n_q = q_heads.shape[1]

        # ---- attention: per head, ONE batch-wide scores matmul ----
        ctx_heads = []
        for h in range(n_head):
            lo = h * head_dim
            hi = lo + head_dim
            qh = q_heads[h].astype(mxu_dtype)             # (Nq, hd)
            kh = kv[:, lo:hi]                             # (B*S, hd)
            vh = kv[:, d_out + lo:d_out + hi].reshape(b_blk, s_len, head_dim)

            # One MXU push for the whole batch block: N = B_blk*S lanes.
            scores = jax.lax.dot_general(
                qh, kh, dimension_numbers=(((1,), (1,)), ((), ())),
                preferred_element_type=jnp.float32)       # (Nq, B*S)
            scores = scores.reshape(n_q, b_blk, s_len)    # per-batch softmax view

            m = jnp.max(scores, axis=-1, keepdims=True)
            e = jnp.exp(scores - m)
            inv = pl.reciprocal(jnp.sum(e, axis=-1, keepdims=True),
                                approx=approx_recip)      # EUP slot
            p_attn = (e * inv).astype(mxu_dtype)          # (Nq, B, S)

            # batched over B: (Nq,B,S) x (B,S,hd) -> (B,Nq,hd)
            ctx = jnp.einsum('qbs,bsd->bqd', p_attn, vh,
                             preferred_element_type=jnp.float32)
            ctx_heads.append(ctx)

        # Heads land in adjacent lane blocks (in order) -> (B, Nq, Dout); then one
        # full-depth output projection matmul per grid step.
        attn = jnp.concatenate(ctx_heads, axis=-1)
        attn = attn.reshape(b_blk * n_q, d_out)           # leading-dim merge (free)
        o = jnp.dot(attn.astype(mxu_dtype), wo_ref[...].astype(mxu_dtype),
                    preferred_element_type=jnp.float32) + bo_ref[...]
        o = _layernorm(o, lnpg_ref[...], lnpb_ref[...], eps)
        o = o.reshape(b_blk, n_q, d_out)

        out_refs[p][...] = o.astype(out_refs[p].dtype)    # single lane-dense slab store
        cur = o                                           # f32 carry; no out_ref reload


def cascaded_attention_pooler_pallas(x, pooler_params, pooler_heads, *,
                                     eps=1e-5, max_batch_block=8,
                                     mxu_dtype=jnp.bfloat16,
                                     approx_softmax=False,
                                     single_buffer_params=False,
                                     vmem_limit_bytes=None):
    """x: (B, S, Din) -> [(B, Nq_p, Dout_p) for each pooler] (fused cascade)."""
    B, S, Din = x.shape
    n_pool = len(pooler_params)
    assert n_pool == len(pooler_heads) and n_pool >= 1
    out_dtype = x.dtype

    # Halve per-step x DMA bytes on the bf16 MXU path (LN still runs in f32 in-kernel).
    x_in = x
    if mxu_dtype == jnp.bfloat16 and x.dtype == jnp.float32:
        x_in = x.astype(jnp.bfloat16)

    # Largest batch block dividing B, capped so the grid keeps >= 2 steps
    # (both v7x TensorCores get work).  NOTE: prime B degrades to b_blk=1.
    cap = min(max_batch_block, B)
    if B >= 2:
        cap = min(cap, B // 2)
    cap = max(cap, 1)
    b_blk = 1
    for cand in range(cap, 0, -1):
        if B % cand == 0:
            b_blk = cand
            break

    def full_spec(arr):
        nd = arr.ndim
        if single_buffer_params:
            # Grid-invariant weights: constant index_map -> one buffer is enough.
            return pl.BlockSpec(arr.shape, lambda i, _nd=nd: (0,) * _nd,
                                pipeline_mode=pl.Buffered(1))
        return pl.BlockSpec(arr.shape, lambda i, _nd=nd: (0,) * _nd)

    kernel_inputs = [x_in]
    in_specs = [pl.BlockSpec((b_blk, S, Din), lambda i: (i, 0, 0))]
    out_shapes = []
    out_specs = []
    cfgs = []
    out_dims = []

    d_in = Din
    for prm, n_head in zip(pooler_params, pooler_heads):
        n_q, d_out = prm["query"].shape
        assert d_out % n_head == 0, "output_embed_dim must be divisible by n_head"
        assert prm["wk"].shape[0] == d_in, "cascade embed-dim mismatch"
        hd = d_out // n_head

        # --- hoisted batch-invariant query path (plain JAX, runs once) ---
        q0 = _layernorm(prm["query"], prm["lnq_g"], prm["lnq_b"], eps)
        q_proj = q0 @ prm["wq"] + prm["bq"]                               # (Nq, Dout)
        q_heads = (q_proj * (1.0 / (hd ** 0.5))
                   ).reshape(n_q, n_head, hd).transpose(1, 0, 2)          # (n_head, Nq, hd)

        # --- fused K/V projection weights ---
        wkv = jnp.concatenate([prm["wk"], prm["wv"]], axis=1)             # (d_in, 2*Dout)
        bkv = jnp.concatenate([prm["bk"], prm["bv"]], axis=1)             # (1, 2*Dout)

        p_inputs = [q_heads, prm["lnk_g"], prm["lnk_b"], wkv, bkv,
                    prm["wo"], prm["bo"], prm["lnp_g"], prm["lnp_b"]]
        kernel_inputs += p_inputs
        in_specs += [full_spec(a) for a in p_inputs]

        out_shapes.append(jax.ShapeDtypeStruct((B, n_q, d_out), out_dtype))
        out_specs.append(pl.BlockSpec((b_blk, n_q, d_out), lambda i: (i, 0, 0)))
        cfgs.append((n_head, hd))
        out_dims.append((n_q, d_out))
        d_in = d_out

    # ---- VMEM budget derived from the actual tile plan ----
    if vmem_limit_bytes is None:
        x_blk_bytes = b_blk * S * Din * jnp.dtype(x_in.dtype).itemsize
        param_bytes = sum(int(a.size) * jnp.dtype(a.dtype).itemsize
                          for a in kernel_inputs[1:])
        out_blk_bytes = sum(b_blk * nq * do * jnp.dtype(out_dtype).itemsize
                            for nq, do in out_dims)
        widest = max([Din] + [2 * do for _, do in out_dims])
        work_bytes = 4 * b_blk * S * widest * 4        # live f32 slabs (cur/xk/kv)
        est = (2 * x_blk_bytes
               + (1 if single_buffer_params else 2) * param_bytes
               + 2 * out_blk_bytes + work_bytes)
        vmem_limit_bytes = min(100 * 1024 * 1024,
                               max(32 * 1024 * 1024, int(est * 1.3)))
        # TODO(synk): clamp against per-generation physical VMEM (64 MiB/TC on v7x)
        # and chunk the kv slab over S when it would not fit.

    kernel = functools.partial(
        _cascade_kernel, pooler_cfgs=tuple(cfgs), eps=eps,
        mxu_dtype=mxu_dtype, approx_recip=approx_softmax)

    outs = pl.pallas_call(
        kernel,
        out_shape=tuple(out_shapes),
        grid_spec=pltpu.PrefetchScalarGridSpec(
            num_scalar_prefetch=0,
            grid=(B // b_blk,),
            in_specs=in_specs,
            out_specs=tuple(out_specs)),
        compiler_params=pltpu.CompilerParams(
            dimension_semantics=("parallel",),
            vmem_limit_bytes=vmem_limit_bytes),
    )(*kernel_inputs)
    return list(outs)


# ------------------------- pure-JAX reference -------------------------
def _ref_pooler(x, p, n_head, eps=1e-5):
    def ln(v, g, b):
        mu = v.mean(-1, keepdims=True)
        var = ((v - mu) ** 2).mean(-1, keepdims=True)
        return (v - mu) / jnp.sqrt(var + eps) * g + b

    B = x.shape[0]
    xk = ln(x, p["lnk_g"], p["lnk_b"])
    q0 = ln(p["query"], p["lnq_g"], p["lnq_b"])
    q = jnp.broadcast_to(q0[None], (B,) + q0.shape)
    Q = q @ p["wq"] + p["bq"]
    K = xk @ p["wk"] + p["bk"]
    V = xk @ p["wv"] + p["bv"]
    Nq, Dout = q0.shape
    hd = Dout // n_head
    Qh = Q.reshape(B, Nq, n_head, hd).transpose(0, 2, 1, 3)
    Kh = K.reshape(B, -1, n_head, hd).transpose(0, 2, 1, 3)
    Vh = V.reshape(B, -1, n_head, hd).transpose(0, 2, 1, 3)
    s = jnp.einsum("bhqd,bhkd->bhqk", Qh, Kh) / jnp.sqrt(hd)
    a = jax.nn.softmax(s, axis=-1)
    o = jnp.einsum("bhqk,bhkd->bhqd", a, Vh).transpose(0, 2, 1, 3).reshape(B, Nq, Dout)
    o = o @ p["wo"] + p["bo"]
    return ln(o, p["lnp_g"], p["lnp_b"])


def _ref_cascade(x, pooler_params, pooler_heads):
    outs = []
    for p, h in zip(pooler_params, pooler_heads):
        x = _ref_pooler(x, p, h)
        outs.append(x)
    return outs


# ------------------------- param init -------------------------
def make_pooler_params(key, input_embed_dim, output_embed_dim, n_queries):
    ks = jax.random.split(key, 5)
    f32 = jnp.float32
    init = lambda k, shape, scale=0.02: (scale * jax.random.normal(k, shape)).astype(f32)
    return {
        "query": jax.random.normal(ks[0], (n_queries, output_embed_dim)).astype(f32),
        "lnk_g": jnp.ones((1, input_embed_dim), f32),
        "lnk_b": jnp.zeros((1, input_embed_dim), f32),
        "lnq_g": jnp.ones((1, output_embed_dim), f32),
        "lnq_b": jnp.zeros((1, output_embed_dim), f32),
        # Linear weights stored pre-transposed: (in, out), y = x @ W + b
        "wq": init(ks[1], (output_embed_dim, output_embed_dim)),
        "bq": jnp.zeros((1, output_embed_dim), f32),
        "wk": init(ks[2], (input_embed_dim, output_embed_dim)),
        "bk": jnp.zeros((1, output_embed_dim), f32),
        "wv": init(ks[3], (input_embed_dim, output_embed_dim)),
        "bv": jnp.zeros((1, output_embed_dim), f32),
        "wo": init(ks[4], (output_embed_dim, output_embed_dim)),
        "bo": jnp.zeros((1, output_embed_dim), f32),
        "lnp_g": jnp.ones((1, output_embed_dim), f32),
        "lnp_b": jnp.zeros((1, output_embed_dim), f32),
    }


if __name__ == "__main__":
    key = jax.random.PRNGKey(0)
    k_x, k_p0, k_p1 = jax.random.split(key, 3)

    # Small shapes: batch=2, seq=16, input_embed_dim=32
    B, S, Din = 2, 16, 32
    # Pooler 0 ("captioning"): Din=32 -> Dout=32, 8 queries, 4 heads
    # Pooler 1 ("contrastive"): Din=32 -> Dout=32, 8 queries, 4 heads (on pooler-0 output)
    pooler_params = [
        make_pooler_params(k_p0, input_embed_dim=Din, output_embed_dim=32, n_queries=8),
        make_pooler_params(k_p1, input_embed_dim=32, output_embed_dim=32, n_queries=8),
    ]
    pooler_heads = [4, 4]

    x = jax.random.normal(k_x, (B, S, Din), dtype=jnp.float32)

    ref_outs = _ref_cascade(x, pooler_params, pooler_heads)

    # f32-MXU path.  Tolerance accounts for TPU default matmul precision
    # (bf16-level passes) differing between the XLA reference and the kernel.
    outs = cascaded_attention_pooler_pallas(
        x, pooler_params, pooler_heads,
        mxu_dtype=jnp.float32, approx_softmax=False)
    outs = [jax.block_until_ready(o) for o in outs]
    for o, r in zip(outs, ref_outs):
        assert o.shape == r.shape
        err = float(jnp.max(jnp.abs(o - r)))
        assert jnp.allclose(o, r, atol=5e-2, rtol=5e-2), err

    # Default fast path: bf16 MXU inputs, bf16 x DMA, EUP-approx softmax recip.
    outs_fast = cascaded_attention_pooler_pallas(
        x, pooler_params, pooler_heads, approx_softmax=True)
    outs_fast = [jax.block_until_ready(o) for o in outs_fast]
    for o, r in zip(outs_fast, ref_outs):
        assert o.shape == r.shape
        err = float(jnp.max(jnp.abs(o - r)))
        assert jnp.allclose(o, r, atol=2e-1, rtol=2e-1), err

    print("KERNEL_OK")
</pallas_src>

<mosaic_0001>
module attributes {stable_mosaic.version = 11 : i64} {
  func.func @_cascade_kernel(%arg0: i32, %arg1: memref<1x16x32xf32, #tpu.memory_space<vmem>>, %arg2: memref<4x8x8xf32, #tpu.memory_space<vmem>>, %arg3: memref<1x32xf32, #tpu.memory_space<vmem>>, %arg4: memref<1x32xf32, #tpu.memory_space<vmem>>, %arg5: memref<32x64xf32, #tpu.memory_space<vmem>>, %arg6: memref<1x64xf32, #tpu.memory_space<vmem>>, %arg7: memref<32x32xf32, #tpu.memory_space<vmem>>, %arg8: memref<1x32xf32, #tpu.memory_space<vmem>>, %arg9: memref<1x32xf32, #tpu.memory_space<vmem>>, %arg10: memref<1x32xf32, #tpu.memory_space<vmem>>, %arg11: memref<4x8x8xf32, #tpu.memory_space<vmem>>, %arg12: memref<1x32xf32, #tpu.memory_space<vmem>>, %arg13: memref<1x32xf32, #tpu.memory_space<vmem>>, %arg14: memref<32x64xf32, #tpu.memory_space<vmem>>, %arg15: memref<1x64xf32, #tpu.memory_space<vmem>>, %arg16: memref<32x32xf32, #tpu.memory_space<vmem>>, %arg17: memref<1x32xf32, #tpu.memory_space<vmem>>, %arg18: memref<1x32xf32, #tpu.memory_space<vmem>>, %arg19: memref<1x32xf32, #tpu.memory_space<vmem>>, %arg20: memref<1x8x32xf32, #tpu.memory_space<vmem>>, %arg21: memref<1x8x32xf32, #tpu.memory_space<vmem>>) attributes {dimension_semantics = [#tpu.dimension_semantics<parallel>], iteration_bounds = array<i64: 2>, scalar_prefetch = 0 : i64, scratch_operands = 0 : i64, tpu.core_type = #tpu.core_type<tc>, window_params = [{transform_indices = @transform_0, window_bounds = array<i64: 1, 16, 32>}, {pipeline_mode = #tpu.pipeline_mode<synchronous>, transform_indices = @transform_1, window_bounds = array<i64: 4, 8, 8>}, {pipeline_mode = #tpu.pipeline_mode<synchronous>, transform_indices = @transform_2, window_bounds = array<i64: 1, 32>}, {pipeline_mode = #tpu.pipeline_mode<synchronous>, transform_indices = @transform_3, window_bounds = array<i64: 1, 32>}, {pipeline_mode = #tpu.pipeline_mode<synchronous>, transform_indices = @transform_4, window_bounds = array<i64: 32, 64>}, {pipeline_mode = #tpu.pipeline_mode<synchronous>, transform_indices = @transform_5, window_bounds = array<i64: 1, 64>}, {pipeline_mode = #tpu.pipeline_mode<synchronous>, transform_indices = @transform_6, window_bounds = array<i64: 32, 32>}, {pipeline_mode = #tpu.pipeline_mode<synchronous>, transform_indices = @transform_7, window_bounds = array<i64: 1, 32>}, {pipeline_mode = #tpu.pipeline_mode<synchronous>, transform_indices = @transform_8, window_bounds = array<i64: 1, 32>}, {pipeline_mode = #tpu.pipeline_mode<synchronous>, transform_indices = @transform_9, window_bounds = array<i64: 1, 32>}, {pipeline_mode = #tpu.pipeline_mode<synchronous>, transform_indices = @transform_10, window_bounds = array<i64: 4, 8, 8>}, {pipeline_mode = #tpu.pipeline_mode<synchronous>, transform_indices = @transform_11, window_bounds = array<i64: 1, 32>}, {pipeline_mode = #tpu.pipeline_mode<synchronous>, transform_indices = @transform_12, window_bounds = array<i64: 1, 32>}, {pipeline_mode = #tpu.pipeline_mode<synchronous>, transform_indices = @transform_13, window_bounds = array<i64: 32, 64>}, {pipeline_mode = #tpu.pipeline_mode<synchronous>, transform_indices = @transform_14, window_bounds = array<i64: 1, 64>}, {pipeline_mode = #tpu.pipeline_mode<synchronous>, transform_indices = @transform_15, window_bounds = array<i64: 32, 32>}, {pipeline_mode = #tpu.pipeline_mode<synchronous>, transform_indices = @transform_16, window_bounds = array<i64: 1, 32>}, {pipeline_mode = #tpu.pipeline_mode<synchronous>, transform_indices = @transform_17, window_bounds = array<i64: 1, 32>}, {pipeline_mode = #tpu.pipeline_mode<synchronous>, transform_indices = @transform_18, window_bounds = array<i64: 1, 32>}, {transform_indices = @transform_19, window_bounds = array<i64: 1, 8, 32>}, {transform_indices = @transform_20, window_bounds = array<i64: 1, 8, 32>}]} {
    %c0 = arith.constant 0 : index
    %c0_0 = arith.constant 0 : index
    %c0_1 = arith.constant 0 : index
    %0 = vector.load %arg1[%c0, %c0_0, %c0_1] : memref<1x16x32xf32, #tpu.memory_space<vmem>>, vector<1x16x32xf32>
    %c0_2 = arith.constant 0 : index
    %c0_3 = arith.constant 0 : index
    %1 = vector.load %arg3[%c0_2, %c0_3] : memref<1x32xf32, #tpu.memory_space<vmem>>, vector<1x32xf32>
    %c0_4 = arith.constant 0 : index
    %c0_5 = arith.constant 0 : index
    %2 = vector.load %arg4[%c0_4, %c0_5] : memref<1x32xf32, #tpu.memory_space<vmem>>, vector<1x32xf32>
    %cst = arith.constant dense<0.000000e+00> : vector<1x16xf32>
    %3 = vector.multi_reduction <add>, %0, %cst [2] : vector<1x16x32xf32> to vector<1x16xf32>
    %4 = vector.shape_cast %3 : vector<1x16xf32> to vector<1x16x1xf32>
    %cst_6 = arith.constant 3.200000e+01 : f32
    %5 = vector.broadcast %cst_6 : f32 to vector<1x16x1xf32>
    %6 = arith.divf %4, %5 : vector<1x16x1xf32>
    %7 = vector.broadcast %6 : vector<1x16x1xf32> to vector<1x16x32xf32>
    %8 = arith.subf %0, %7 : vector<1x16x32xf32>
    %9 = arith.mulf %8, %8 : vector<1x16x32xf32>
    %cst_7 = arith.constant dense<0.000000e+00> : vector<1x16xf32>
    %10 = vector.multi_reduction <add>, %9, %cst_7 [2] : vector<1x16x32xf32> to vector<1x16xf32>
    %11 = vector.shape_cast %10 : vector<1x16xf32> to vector<1x16x1xf32>
    %cst_8 = arith.constant 3.200000e+01 : f32
    %12 = vector.broadcast %cst_8 : f32 to vector<1x16x1xf32>
    %13 = arith.divf %11, %12 : vector<1x16x1xf32>
    %14 = vector.broadcast %6 : vector<1x16x1xf32> to vector<1x16x32xf32>
    %15 = arith.subf %0, %14 : vector<1x16x32xf32>
    %cst_9 = arith.constant 9.99999974E-6 : f32
    %16 = vector.broadcast %cst_9 : f32 to vector<1x16x1xf32>
    %17 = arith.addf %13, %16 : vector<1x16x1xf32>
    %18 = math.rsqrt %17 : vector<1x16x1xf32>
    %19 = vector.broadcast %18 : vector<1x16x1xf32> to vector<1x16x32xf32>
    %20 = arith.mulf %15, %19 : vector<1x16x32xf32>
    %21 = vector.shape_cast %1 : vector<1x32xf32> to vector<1x1x32xf32>
    %22 = vector.broadcast %21 : vector<1x1x32xf32> to vector<1x16x32xf32>
    %23 = arith.mulf %20, %22 : vector<1x16x32xf32>
    %24 = vector.shape_cast %2 : vector<1x32xf32> to vector<1x1x32xf32>
    %25 = vector.broadcast %24 : vector<1x1x32xf32> to vector<1x16x32xf32>
    %26 = arith.addf %23, %25 : vector<1x16x32xf32>
    %27 = vector.shape_cast %26 : vector<1x16x32xf32> to vector<16x32xf32>
    %c0_10 = arith.constant 0 : index
    %c0_11 = arith.constant 0 : index
    %28 = vector.load %arg5[%c0_10, %c0_11] : memref<32x64xf32, #tpu.memory_space<vmem>>, vector<32x64xf32>
    %cst_12 = arith.constant dense<0.000000e+00> : vector<16x64xf32>
    %29 = tpu.matmul %27, %28, %cst_12 {dimension_numbers = #tpu.dot_dimension_numbers<[1], [0], [0], [1], [0, 0, 1, 1], [], []>} : vector<16x32xf32>, vector<32x64xf32>, vector<16x64xf32> -> vector<16x64xf32>
    %c0_13 = arith.constant 0 : index
    %c0_14 = arith.constant 0 : index
    %30 = vector.load %arg6[%c0_13, %c0_14] : memref<1x64xf32, #tpu.memory_space<vmem>>, vector<1x64xf32>
    %31 = vector.broadcast %30 : vector<1x64xf32> to vector<16x64xf32>
    %32 = arith.addf %29, %31 : vector<16x64xf32>
    %c0_15 = arith.constant 0 : index
    %c0_16 = arith.constant 0 : index
    %c0_17 = arith.constant 0 : index
    %33 = vector.load %arg2[%c0_15, %c0_16, %c0_17] : memref<4x8x8xf32, #tpu.memory_space<vmem>>, vector<4x8x8xf32>
    %34 = vector.extract_strided_slice %33 {offsets = [0, 0, 0], sizes = [1, 8, 8], strides = [1, 1, 1]} : vector<4x8x8xf32> to vector<1x8x8xf32>
    %35 = vector.shape_cast %34 : vector<1x8x8xf32> to vector<8x8xf32>
    %36 = vector.extract_strided_slice %32 {offsets = [0, 0], sizes = [16, 8], strides = [1, 1]} : vector<16x64xf32> to vector<16x8xf32>
    %37 = vector.extract_strided_slice %32 {offsets = [0, 32], sizes = [16, 8], strides = [1, 1]} : vector<16x64xf32> to vector<16x8xf32>
    %38 = vector.shape_cast %37 : vector<16x8xf32> to vector<1x16x8xf32>
    %cst_18 = arith.constant dense<0.000000e+00> : vector<8x16xf32>
    %39 = tpu.matmul %35, %36, %cst_18 {dimension_numbers = #tpu.dot_dimension_numbers<[1], [1], [0], [0], [0, 0, 1, 0], [], []>} : vector<8x8xf32>, vector<16x8xf32>, vector<8x16xf32> -> vector<8x16xf32>
    %40 = vector.shape_cast %39 : vector<8x16xf32> to vector<8x1x16xf32>
    %cst_19 = arith.constant dense<0xFF800000> : vector<8x1xf32>
    %41 = vector.multi_reduction <maximumf>, %40, %cst_19 [2] : vector<8x1x16xf32> to vector<8x1xf32>
    %42 = vector.shape_cast %41 : vector<8x1xf32> to vector<8x1x1xf32>
    %43 = vector.broadcast %42 : vector<8x1x1xf32> to vector<8x1x16xf32>
    %44 = arith.subf %40, %43 : vector<8x1x16xf32>
    %45 = math.exp %44 : vector<8x1x16xf32>
    %cst_20 = arith.constant dense<0.000000e+00> : vector<8x1xf32>
    %46 = vector.multi_reduction <add>, %45, %cst_20 [2] : vector<8x1x16xf32> to vector<8x1xf32>
    %47 = vector.shape_cast %46 : vector<8x1xf32> to vector<8x1x1xf32>
    %48 = tpu.reciprocal %47 : vector<8x1x1xf32> -> vector<8x1x1xf32>
    %49 = vector.broadcast %48 : vector<8x1x1xf32> to vector<8x1x16xf32>
    %50 = arith.mulf %45, %49 : vector<8x1x16xf32>
    "tpu.trace_start"() <{level = 10 : i32, message = "qbs,bsd->bqd"}> : () -> ()
    %cst_21 = arith.constant dense<0.000000e+00> : vector<1x8x8xf32>
    %51 = tpu.matmul %50, %38, %cst_21 {dimension_numbers = #tpu.dot_dimension_numbers<[2], [1], [0], [2], [0, 1, 0, 0, 1, 2], [1], [0]>} : vector<8x1x16xf32>, vector<1x16x8xf32>, vector<1x8x8xf32> -> vector<1x8x8xf32>
    "tpu.trace_stop"() : () -> ()
    %52 = vector.extract_strided_slice %33 {offsets = [1, 0, 0], sizes = [1, 8, 8], strides = [1, 1, 1]} : vector<4x8x8xf32> to vector<1x8x8xf32>
    %53 = vector.shape_cast %52 : vector<1x8x8xf32> to vector<8x8xf32>
    %54 = vector.extract_strided_slice %32 {offsets = [0, 8], sizes = [16, 8], strides = [1, 1]} : vector<16x64xf32> to vector<16x8xf32>
    %55 = vector.extract_strided_slice %32 {offsets = [0, 40], sizes = [16, 8], strides = [1, 1]} : vector<16x64xf32> to vector<16x8xf32>
    %56 = vector.shape_cast %55 : vector<16x8xf32> to vector<1x16x8xf32>
    %cst_22 = arith.constant dense<0.000000e+00> : vector<8x16xf32>
    %57 = tpu.matmul %53, %54, %cst_22 {dimension_numbers = #tpu.dot_dimension_numbers<[1], [1], [0], [0], [0, 0, 1, 0], [], []>} : vector<8x8xf32>, vector<16x8xf32>, vector<8x16xf32> -> vector<8x16xf32>
    %58 = vector.shape_cast %57 : vector<8x16xf32> to vector<8x1x16xf32>
    %cst_23 = arith.constant dense<0xFF800000> : vector<8x1xf32>
    %59 = vector.multi_reduction <maximumf>, %58, %cst_23 [2] : vector<8x1x16xf32> to vector<8x1xf32>
    %60 = vector.shape_cast %59 : vector<8x1xf32> to vector<8x1x1xf32>
    %61 = vector.broadcast %60 : vector<8x1x1xf32> to vector<8x1x16xf32>
    %62 = arith.subf %58, %61 : vector<8x1x16xf32>
    %63 = math.exp %62 : vector<8x1x16xf32>
    %cst_24 = arith.constant dense<0.000000e+00> : vector<8x1xf32>
    %64 = vector.multi_reduction <add>, %63, %cst_24 [2] : vector<8x1x16xf32> to vector<8x1xf32>
    %65 = vector.shape_cast %64 : vector<8x1xf32> to vector<8x1x1xf32>
    %66 = tpu.reciprocal %65 : vector<8x1x1xf32> -> vector<8x1x1xf32>
    %67 = vector.broadcast %66 : vector<8x1x1xf32> to vector<8x1x16xf32>
    %68 = arith.mulf %63, %67 : vector<8x1x16xf32>
    "tpu.trace_start"() <{level = 10 : i32, message = "qbs,bsd->bqd"}> : () -> ()
    %cst_25 = arith.constant dense<0.000000e+00> : vector<1x8x8xf32>
    %69 = tpu.matmul %68, %56, %cst_25 {dimension_numbers = #tpu.dot_dimension_numbers<[2], [1], [0], [2], [0, 1, 0, 0, 1, 2], [1], [0]>} : vector<8x1x16xf32>, vector<1x16x8xf32>, vector<1x8x8xf32> -> vector<1x8x8xf32>
    "tpu.trace_stop"() : () -> ()
    %70 = vector.extract_strided_slice %33 {offsets = [2, 0, 0], sizes = [1, 8, 8], strides = [1, 1, 1]} : vector<4x8x8xf32> to vector<1x8x8xf32>
    %71 = vector.shape_cast %70 : vector<1x8x8xf32> to vector<8x8xf32>
    %72 = vector.extract_strided_slice %32 {offsets = [0, 16], sizes = [16, 8], strides = [1, 1]} : vector<16x64xf32> to vector<16x8xf32>
    %73 = vector.extract_strided_slice %32 {offsets = [0, 48], sizes = [16, 8], strides = [1, 1]} : vector<16x64xf32> to vector<16x8xf32>
    %74 = vector.shape_cast %73 : vector<16x8xf32> to vector<1x16x8xf32>
    %cst_26 = arith.constant dense<0.000000e+00> : vector<8x16xf32>
    %75 = tpu.matmul %71, %72, %cst_26 {dimension_numbers = #tpu.dot_dimension_numbers<[1], [1], [0], [0], [0, 0, 1, 0], [], []>} : vector<8x8xf32>, vector<16x8xf32>, vector<8x16xf32> -> vector<8x16xf32>
    %76 = vector.shape_cast %75 : vector<8x16xf32> to vector<8x1x16xf32>
    %cst_27 = arith.constant dense<0xFF800000> : vector<8x1xf32>
    %77 = vector.multi_reduction <maximumf>, %76, %cst_27 [2] : vector<8x1x16xf32> to vector<8x1xf32>
    %78 = vector.shape_cast %77 : vector<8x1xf32> to vector<8x1x1xf32>
    %79 = vector.broadcast %78 : vector<8x1x1xf32> to vector<8x1x16xf32>
    %80 = arith.subf %76, %79 : vector<8x1x16xf32>
    %81 = math.exp %80 : vector<8x1x16xf32>
    %cst_28 = arith.constant dense<0.000000e+00> : vector<8x1xf32>
    %82 = vector.multi_reduction <add>, %81, %cst_28 [2] : vector<8x1x16xf32> to vector<8x1xf32>
    %83 = vector.shape_cast %82 : vector<8x1xf32> to vector<8x1x1xf32>
    %84 = tpu.reciprocal %83 : vector<8x1x1xf32> -> vector<8x1x1xf32>
    %85 = vector.broadcast %84 : vector<8x1x1xf32> to vector<8x1x16xf32>
    %86 = arith.mulf %81, %85 : vector<8x1x16xf32>
    "tpu.trace_start"() <{level = 10 : i32, message = "qbs,bsd->bqd"}> : () -> ()
    %cst_29 = arith.constant dense<0.000000e+00> : vector<1x8x8xf32>
    %87 = tpu.matmul %86, %74, %cst_29 {dimension_numbers = #tpu.dot_dimension_numbers<[2], [1], [0], [2], [0, 1, 0, 0, 1, 2], [1], [0]>} : vector<8x1x16xf32>, vector<1x16x8xf32>, vector<1x8x8xf32> -> vector<1x8x8xf32>
    "tpu.trace_stop"() : () -> ()
    %88 = vector.extract_strided_slice %33 {offsets = [3, 0, 0], sizes = [1, 8, 8], strides = [1, 1, 1]} : vector<4x8x8xf32> to vector<1x8x8xf32>
    %89 = vector.shape_cast %88 : vector<1x8x8xf32> to vector<8x8xf32>
    %90 = vector.extract_strided_slice %32 {offsets = [0, 24], sizes = [16, 8], strides = [1, 1]} : vector<16x64xf32> to vector<16x8xf32>
    %91 = vector.extract_strided_slice %32 {offsets = [0, 56], sizes = [16, 8], strides = [1, 1]} : vector<16x64xf32> to vector<16x8xf32>
    %92 = vector.shape_cast %91 : vector<16x8xf32> to vector<1x16x8xf32>
    %cst_30 = arith.constant dense<0.000000e+00> : vector<8x16xf32>
    %93 = tpu.matmul %89, %90, %cst_30 {dimension_numbers = #tpu.dot_dimension_numbers<[1], [1], [0], [0], [0, 0, 1, 0], [], []>} : vector<8x8xf32>, vector<16x8xf32>, vector<8x16xf32> -> vector<8x16xf32>
    %94 = vector.shape_cast %93 : vector<8x16xf32> to vector<8x1x16xf32>
    %cst_31 = arith.constant dense<0xFF800000> : vector<8x1xf32>
    %95 = vector.multi_reduction <maximumf>, %94, %cst_31 [2] : vector<8x1x16xf32> to vector<8x1xf32>
    %96 = vector.shape_cast %95 : vector<8x1xf32> to vector<8x1x1xf32>
    %97 = vector.broadcast %96 : vector<8x1x1xf32> to vector<8x1x16xf32>
    %98 = arith.subf %94, %97 : vector<8x1x16xf32>
    %99 = math.exp %98 : vector<8x1x16xf32>
    %cst_32 = arith.constant dense<0.000000e+00> : vector<8x1xf32>
    %100 = vector.multi_reduction <add>, %99, %cst_32 [2] : vector<8x1x16xf32> to vector<8x1xf32>
    %101 = vector.shape_cast %100 : vector<8x1xf32> to vector<8x1x1xf32>
    %102 = tpu.reciprocal %101 : vector<8x1x1xf32> -> vector<8x1x1xf32>
    %103 = vector.broadcast %102 : vector<8x1x1xf32> to vector<8x1x16xf32>
    %104 = arith.mulf %99, %103 : vector<8x1x16xf32>
    "tpu.trace_start"() <{level = 10 : i32, message = "qbs,bsd->bqd"}> : () -> ()
    %cst_33 = arith.constant dense<0.000000e+00> : vector<1x8x8xf32>
    %105 = tpu.matmul %104, %92, %cst_33 {dimension_numbers = #tpu.dot_dimension_numbers<[2], [1], [0], [2], [0, 1, 0, 0, 1, 2], [1], [0]>} : vector<8x1x16xf32>, vector<1x16x8xf32>, vector<1x8x8xf32> -> vector<1x8x8xf32>
    "tpu.trace_stop"() : () -> ()
    %106 = tpu.concatenate %51, %69, %87, %105 in 2 : vector<1x8x8xf32>, vector<1x8x8xf32>, vector<1x8x8xf32>, vector<1x8x8xf32> -> vector<1x8x32xf32>
    %107 = vector.shape_cast %106 : vector<1x8x32xf32> to vector<8x32xf32>
    %c0_34 = arith.constant 0 : index
    %c0_35 = arith.constant 0 : index
    %108 = vector.load %arg7[%c0_34, %c0_35] : memref<32x32xf32, #tpu.memory_space<vmem>>, vector<32x32xf32>
    %cst_36 = arith.constant dense<0.000000e+00> : vector<8x32xf32>
    %109 = tpu.matmul %107, %108, %cst_36 {dimension_numbers = #tpu.dot_dimension_numbers<[1], [0], [0], [1], [0, 0, 1, 1], [], []>} : vector<8x32xf32>, vector<32x32xf32>, vector<8x32xf32> -> vector<8x32xf32>
    %c0_37 = arith.constant 0 : index
    %c0_38 = arith.constant 0 : index
    %110 = vector.load %arg8[%c0_37, %c0_38] : memref<1x32xf32, #tpu.memory_space<vmem>>, vector<1x32xf32>
    %111 = vector.broadcast %110 : vector<1x32xf32> to vector<8x32xf32>
    %112 = arith.addf %109, %111 : vector<8x32xf32>
    %c0_39 = arith.constant 0 : index
    %c0_40 = arith.constant 0 : index
    %113 = vector.load %arg9[%c0_39, %c0_40] : memref<1x32xf32, #tpu.memory_space<vmem>>, vector<1x32xf32>
    %c0_41 = arith.constant 0 : index
    %c0_42 = arith.constant 0 : index
    %114 = vector.load %arg10[%c0_41, %c0_42] : memref<1x32xf32, #tpu.memory_space<vmem>>, vector<1x32xf32>
    %cst_43 = arith.constant dense<0.000000e+00> : vector<8xf32>
    %115 = vector.multi_reduction <add>, %112, %cst_43 [1] : vector<8x32xf32> to vector<8xf32>
    %116 = vector.shape_cast %115 : vector<8xf32> to vector<8x1xf32>
    %cst_44 = arith.constant 3.200000e+01 : f32
    %117 = vector.broadcast %cst_44 : f32 to vector<8x1xf32>
    %118 = arith.divf %116, %117 : vector<8x1xf32>
    %119 = vector.broadcast %118 : vector<8x1xf32> to vector<8x32xf32>
    %120 = arith.subf %112, %119 : vector<8x32xf32>
    %121 = arith.mulf %120, %120 : vector<8x32xf32>
    %cst_45 = arith.constant dense<0.000000e+00> : vector<8xf32>
    %122 = vector.multi_reduction <add>, %121, %cst_45 [1] : vector<8x32xf32> to vector<8xf32>
    %123 = vector.shape_cast %122 : vector<8xf32> to vector<8x1xf32>
    %cst_46 = arith.constant 3.200000e+01 : f32
    %124 = vector.broadcast %cst_46 : f32 to vector<8x1xf32>
    %125 = arith.divf %123, %124 : vector<8x1xf32>
    %126 = vector.broadcast %118 : vector<8x1xf32> to vector<8x32xf32>
    %127 = arith.subf %112, %126 : vector<8x32xf32>
    %cst_47 = arith.constant 9.99999974E-6 : f32
    %128 = vector.broadcast %cst_47 : f32 to vector<8x1xf32>
    %129 = arith.addf %125, %128 : vector<8x1xf32>
    %130 = math.rsqrt %129 : vector<8x1xf32>
    %131 = vector.broadcast %130 : vector<8x1xf32> to vector<8x32xf32>
    %132 = arith.mulf %127, %131 : vector<8x32xf32>
    %133 = vector.broadcast %113 : vector<1x32xf32> to vector<8x32xf32>
    %134 = arith.mulf %132, %133 : vector<8x32xf32>
    %135 = vector.broadcast %114 : vector<1x32xf32> to vector<8x32xf32>
    %136 = arith.addf %134, %135 : vector<8x32xf32>
    %137 = vector.shape_cast %136 : vector<8x32xf32> to vector<1x8x32xf32>
    %c0_48 = arith.constant 0 : index
    %c0_49 = arith.constant 0 : index
    %c0_50 = arith.constant 0 : index
    %138 = vector.load %arg20[%c0_48, %c0_49, %c0_50] : memref<1x8x32xf32, #tpu.memory_space<vmem>>, vector<1x8x32xf32>
    tpu.vector_store %arg20[%c0_48, %c0_49, %c0_50], %137 {strides = array<i32>} : memref<1x8x32xf32, #tpu.memory_space<vmem>>, vector<1x8x32xf32>,
    %c0_51 = arith.constant 0 : index
    %c0_52 = arith.constant 0 : index
    %139 = vector.load %arg12[%c0_51, %c0_52] : memref<1x32xf32, #tpu.memory_space<vmem>>, vector<1x32xf32>
    %c0_53 = arith.constant 0 : index
    %c0_54 = arith.constant 0 : index
    %140 = vector.load %arg13[%c0_53, %c0_54] : memref<1x32xf32, #tpu.memory_space<vmem>>, vector<1x32xf32>
    %cst_55 = arith.constant dense<0.000000e+00> : vector<1x8xf32>
    %141 = vector.multi_reduction <add>, %137, %cst_55 [2] : vector<1x8x32xf32> to vector<1x8xf32>
    %142 = vector.shape_cast %141 : vector<1x8xf32> to vector<1x8x1xf32>
    %cst_56 = arith.constant 3.200000e+01 : f32
    %143 = vector.broadcast %cst_56 : f32 to vector<1x8x1xf32>
    %144 = arith.divf %142, %143 : vector<1x8x1xf32>
    %145 = vector.broadcast %144 : vector<1x8x1xf32> to vector<1x8x32xf32>
    %146 = arith.subf %137, %145 : vector<1x8x32xf32>
    %147 = arith.mulf %146, %146 : vector<1x8x32xf32>
    %cst_57 = arith.constant dense<0.000000e+00> : vector<1x8xf32>
    %148 = vector.multi_reduction <add>, %147, %cst_57 [2] : vector<1x8x32xf32> to vector<1x8xf32>
    %149 = vector.shape_cast %148 : vector<1x8xf32> to vector<1x8x1xf32>
    %cst_58 = arith.constant 3.200000e+01 : f32
    %150 = vector.broadcast %cst_58 : f32 to vector<1x8x1xf32>
    %151 = arith.divf %149, %150 : vector<1x8x1xf32>
    %152 = vector.broadcast %144 : vector<1x8x1xf32> to vector<1x8x32xf32>
    %153 = arith.subf %137, %152 : vector<1x8x32xf32>
    %cst_59 = arith.constant 9.99999974E-6 : f32
    %154 = vector.broadcast %cst_59 : f32 to vector<1x8x1xf32>
    %155 = arith.addf %151, %154 : vector<1x8x1xf32>
    %156 = math.rsqrt %155 : vector<1x8x1xf32>
    %157 = vector.broadcast %156 : vector<1x8x1xf32> to vector<1x8x32xf32>
    %158 = arith.mulf %153, %157 : vector<1x8x32xf32>
    %159 = vector.shape_cast %139 : vector<1x32xf32> to vector<1x1x32xf32>
    %160 = vector.broadcast %159 : vector<1x1x32xf32> to vector<1x8x32xf32>
    %161 = arith.mulf %158, %160 : vector<1x8x32xf32>
    %162 = vector.shape_cast %140 : vector<1x32xf32> to vector<1x1x32xf32>
    %163 = vector.broadcast %162 : vector<1x1x32xf32> to vector<1x8x32xf32>
    %164 = arith.addf %161, %163 : vector<1x8x32xf32>
    %165 = vector.shape_cast %164 : vector<1x8x32xf32> to vector<8x32xf32>
    %c0_60 = arith.constant 0 : index
    %c0_61 = arith.constant 0 : index
    %166 = vector.load %arg14[%c0_60, %c0_61] : memref<32x64xf32, #tpu.memory_space<vmem>>, vector<32x64xf32>
    %cst_62 = arith.constant dense<0.000000e+00> : vector<8x64xf32>
    %167 = tpu.matmul %165, %166, %cst_62 {dimension_numbers = #tpu.dot_dimension_numbers<[1], [0], [0], [1], [0, 0, 1, 1], [], []>} : vector<8x32xf32>, vector<32x64xf32>, vector<8x64xf32> -> vector<8x64xf32>
    %c0_63 = arith.constant 0 : index
    %c0_64 = arith.constant 0 : index
    %168 = vector.load %arg15[%c0_63, %c0_64] : memref<1x64xf32, #tpu.memory_space<vmem>>, vector<1x64xf32>
    %169 = vector.broadcast %168 : vector<1x64xf32> to vector<8x64xf32>
    %170 = arith.addf %167, %169 : vector<8x64xf32>
    %c0_65 = arith.constant 0 : index
    %c0_66 = arith.constant 0 : index
    %c0_67 = arith.constant 0 : index
    %171 = vector.load %arg11[%c0_65, %c0_66, %c0_67] : memref<4x8x8xf32, #tpu.memory_space<vmem>>, vector<4x8x8xf32>
    %172 = vector.extract_strided_slice %171 {offsets = [0, 0, 0], sizes = [1, 8, 8], strides = [1, 1, 1]} : vector<4x8x8xf32> to vector<1x8x8xf32>
    %173 = vector.shape_cast %172 : vector<1x8x8xf32> to vector<8x8xf32>
    %174 = vector.extract_strided_slice %170 {offsets = [0, 0], sizes = [8, 8], strides = [1, 1]} : vector<8x64xf32> to vector<8x8xf32>
    %175 = vector.extract_strided_slice %170 {offsets = [0, 32], sizes = [8, 8], strides = [1, 1]} : vector<8x64xf32> to vector<8x8xf32>
    %176 = vector.shape_cast %175 : vector<8x8xf32> to vector<1x8x8xf32>
    %cst_68 = arith.constant dense<0.000000e+00> : vector<8x8xf32>
    %177 = tpu.matmul %173, %174, %cst_68 {dimension_numbers = #tpu.dot_dimension_numbers<[1], [1], [0], [0], [0, 0, 1, 0], [], []>} : vector<8x8xf32>, vector<8x8xf32>, vector<8x8xf32> -> vector<8x8xf32>
    %178 = vector.shape_cast %177 : vector<8x8xf32> to vector<8x1x8xf32>
    %cst_69 = arith.constant dense<0xFF800000> : vector<8x1xf32>
    %179 = vector.multi_reduction <maximumf>, %178, %cst_69 [2] : vector<8x1x8xf32> to vector<8x1xf32>
    %180 = vector.shape_cast %179 : vector<8x1xf32> to vector<8x1x1xf32>
    %181 = vector.broadcast %180 : vector<8x1x1xf32> to vector<8x1x8xf32>
    %182 = arith.subf %178, %181 : vector<8x1x8xf32>
    %183 = math.exp %182 : vector<8x1x8xf32>
    %cst_70 = arith.constant dense<0.000000e+00> : vector<8x1xf32>
    %184 = vector.multi_reduction <add>, %183, %cst_70 [2] : vector<8x1x8xf32> to vector<8x1xf32>
    %185 = vector.shape_cast %184 : vector<8x1xf32> to vector<8x1x1xf32>
    %186 = tpu.reciprocal %185 : vector<8x1x1xf32> -> vector<8x1x1xf32>
    %187 = vector.broadcast %186 : vector<8x1x1xf32> to vector<8x1x8xf32>
    %188 = arith.mulf %183, %187 : vector<8x1x8xf32>
    "tpu.trace_start"() <{level = 10 : i32, message = "qbs,bsd->bqd"}> : () -> ()
    %cst_71 = arith.constant dense<0.000000e+00> : vector<1x8x8xf32>
    %189 = tpu.matmul %188, %176, %cst_71 {dimension_numbers = #tpu.dot_dimension_numbers<[2], [1], [0], [2], [0, 1, 0, 0, 1, 2], [1], [0]>} : vector<8x1x8xf32>, vector<1x8x8xf32>, vector<1x8x8xf32> -> vector<1x8x8xf32>
    "tpu.trace_stop"() : () -> ()
    %190 = vector.extract_strided_slice %171 {offsets = [1, 0, 0], sizes = [1, 8, 8], strides = [1, 1, 1]} : vector<4x8x8xf32> to vector<1x8x8xf32>
    %191 = vector.shape_cast %190 : vector<1x8x8xf32> to vector<8x8xf32>
    %192 = vector.extract_strided_slice %170 {offsets = [0, 8], sizes = [8, 8], strides = [1, 1]} : vector<8x64xf32> to vector<8x8xf32>
    %193 = vector.extract_strided_slice %170 {offsets = [0, 40], sizes = [8, 8], strides = [1, 1]} : vector<8x64xf32> to vector<8x8xf32>
    %194 = vector.shape_cast %193 : vector<8x8xf32> to vector<1x8x8xf32>
    %cst_72 = arith.constant dense<0.000000e+00> : vector<8x8xf32>
    %195 = tpu.matmul %191, %192, %cst_72 {dimension_numbers = #tpu.dot_dimension_numbers<[1], [1], [0], [0], [0, 0, 1, 0], [], []>} : vector<8x8xf32>, vector<8x8xf32>, vector<8x8xf32> -> vector<8x8xf32>
    %196 = vector.shape_cast %195 : vector<8x8xf32> to vector<8x1x8xf32>
    %cst_73 = arith.constant dense<0xFF800000> : vector<8x1xf32>
    %197 = vector.multi_reduction <maximumf>, %196, %cst_73 [2] : vector<8x1x8xf32> to vector<8x1xf32>
    %198 = vector.shape_cast %197 : vector<8x1xf32> to vector<8x1x1xf32>
    %199 = vector.broadcast %198 : vector<8x1x1xf32> to vector<8x1x8xf32>
    %200 = arith.subf %196, %199 : vector<8x1x8xf32>
    %201 = math.exp %200 : vector<8x1x8xf32>
    %cst_74 = arith.constant dense<0.000000e+00> : vector<8x1xf32>
    %202 = vector.multi_reduction <add>, %201, %cst_74 [2] : vector<8x1x8xf32> to vector<8x1xf32>
    %203 = vector.shape_cast %202 : vector<8x1xf32> to vector<8x1x1xf32>
    %204 = tpu.reciprocal %203 : vector<8x1x1xf32> -> vector<8x1x1xf32>
    %205 = vector.broadcast %204 : vector<8x1x1xf32> to vector<8x1x8xf32>
    %206 = arith.mulf %201, %205 : vector<8x1x8xf32>
    "tpu.trace_start"() <{level = 10 : i32, message = "qbs,bsd->bqd"}> : () -> ()
    %cst_75 = arith.constant dense<0.000000e+00> : vector<1x8x8xf32>
    %207 = tpu.matmul %206, %194, %cst_75 {dimension_numbers = #tpu.dot_dimension_numbers<[2], [1], [0], [2], [0, 1, 0, 0, 1, 2], [1], [0]>} : vector<8x1x8xf32>, vector<1x8x8xf32>, vector<1x8x8xf32> -> vector<1x8x8xf32>
    "tpu.trace_stop"() : () -> ()
    %208 = vector.extract_strided_slice %171 {offsets = [2, 0, 0], sizes = [1, 8, 8], strides = [1, 1, 1]} : vector<4x8x8xf32> to vector<1x8x8xf32>
    %209 = vector.shape_cast %208 : vector<1x8x8xf32> to vector<8x8xf32>
    %210 = vector.extract_strided_slice %170 {offsets = [0, 16], sizes = [8, 8], strides = [1, 1]} : vector<8x64xf32> to vector<8x8xf32>
    %211 = vector.extract_strided_slice %170 {offsets = [0, 48], sizes = [8, 8], strides = [1, 1]} : vector<8x64xf32> to vector<8x8xf32>
    %212 = vector.shape_cast %211 : vector<8x8xf32> to vector<1x8x8xf32>
    %cst_76 = arith.constant dense<0.000000e+00> : vector<8x8xf32>
    %213 = tpu.matmul %209, %210, %cst_76 {dimension_numbers = #tpu.dot_dimension_numbers<[1], [1], [0], [0], [0, 0, 1, 0], [], []>} : vector<8x8xf32>, vector<8x8xf32>, vector<8x8xf32> -> vector<8x8xf32>
    %214 = vector.shape_cast %213 : vector<8x8xf32> to vector<8x1x8xf32>
    %cst_77 = arith.constant dense<0xFF800000> : vector<8x1xf32>
    %215 = vector.multi_reduction <maximumf>, %214, %cst_77 [2] : vector<8x1x8xf32> to vector<8x1xf32>
    %216 = vector.shape_cast %215 : vector<8x1xf32> to vector<8x1x1xf32>
    %217 = vector.broadcast %216 : vector<8x1x1xf32> to vector<8x1x8xf32>
    %218 = arith.subf %214, %217 : vector<8x1x8xf32>
    %219 = math.exp %218 : vector<8x1x8xf32>
    %cst_78 = arith.constant dense<0.000000e+00> : vector<8x1xf32>
    %220 = vector.multi_reduction <add>, %219, %cst_78 [2] : vector<8x1x8xf32> to vector<8x1xf32>
    %221 = vector.shape_cast %220 : vector<8x1xf32> to vector<8x1x1xf32>
    %222 = tpu.reciprocal %221 : vector<8x1x1xf32> -> vector<8x1x1xf32>
    %223 = vector.broadcast %222 : vector<8x1x1xf32> to vector<8x1x8xf32>
    %224 = arith.mulf %219, %223 : vector<8x1x8xf32>
    "tpu.trace_start"() <{level = 10 : i32, message = "qbs,bsd->bqd"}> : () -> ()
    %cst_79 = arith.constant dense<0.000000e+00> : vector<1x8x8xf32>
    %225 = tpu.matmul %224, %212, %cst_79 {dimension_numbers = #tpu.dot_dimension_numbers<[2], [1], [0], [2], [0, 1, 0, 0, 1, 2], [1], [0]>} : vector<8x1x8xf32>, vector<1x8x8xf32>, vector<1x8x8xf32> -> vector<1x8x8xf32>
    "tpu.trace_stop"() : () -> ()
    %226 = vector.extract_strided_slice %171 {offsets = [3, 0, 0], sizes = [1, 8, 8], strides = [1, 1, 1]} : vector<4x8x8xf32> to vector<1x8x8xf32>
    %227 = vector.shape_cast %226 : vector<1x8x8xf32> to vector<8x8xf32>
    %228 = vector.extract_strided_slice %170 {offsets = [0, 24], sizes = [8, 8], strides = [1, 1]} : vector<8x64xf32> to vector<8x8xf32>
    %229 = vector.extract_strided_slice %170 {offsets = [0, 56], sizes = [8, 8], strides = [1, 1]} : vector<8x64xf32> to vector<8x8xf32>
    %230 = vector.shape_cast %229 : vector<8x8xf32> to vector<1x8x8xf32>
    %cst_80 = arith.constant dense<0.000000e+00> : vector<8x8xf32>
    %231 = tpu.matmul %227, %228, %cst_80 {dimension_numbers = #tpu.dot_dimension_numbers<[1], [1], [0], [0], [0, 0, 1, 0], [], []>} : vector<8x8xf32>, vector<8x8xf32>, vector<8x8xf32> -> vector<8x8xf32>
    %232 = vector.shape_cast %231 : vector<8x8xf32> to vector<8x1x8xf32>
    %cst_81 = arith.constant dense<0xFF800000> : vector<8x1xf32>
    %233 = vector.multi_reduction <maximumf>, %232, %cst_81 [2] : vector<8x1x8xf32> to vector<8x1xf32>
    %234 = vector.shape_cast %233 : vector<8x1xf32> to vector<8x1x1xf32>
    %235 = vector.broadcast %234 : vector<8x1x1xf32> to vector<8x1x8xf32>
    %236 = arith.subf %232, %235 : vector<8x1x8xf32>
    %237 = math.exp %236 : vector<8x1x8xf32>
    %cst_82 = arith.constant dense<0.000000e+00> : vector<8x1xf32>
    %238 = vector.multi_reduction <add>, %237, %cst_82 [2] : vector<8x1x8xf32> to vector<8x1xf32>
    %239 = vector.shape_cast %238 : vector<8x1xf32> to vector<8x1x1xf32>
    %240 = tpu.reciprocal %239 : vector<8x1x1xf32> -> vector<8x1x1xf32>
    %241 = vector.broadcast %240 : vector<8x1x1xf32> to vector<8x1x8xf32>
    %242 = arith.mulf %237, %241 : vector<8x1x8xf32>
    "tpu.trace_start"() <{level = 10 : i32, message = "qbs,bsd->bqd"}> : () -> ()
    %cst_83 = arith.constant dense<0.000000e+00> : vector<1x8x8xf32>
    %243 = tpu.matmul %242, %230, %cst_83 {dimension_numbers = #tpu.dot_dimension_numbers<[2], [1], [0], [2], [0, 1, 0, 0, 1, 2], [1], [0]>} : vector<8x1x8xf32>, vector<1x8x8xf32>, vector<1x8x8xf32> -> vector<1x8x8xf32>
    "tpu.trace_stop"() : () -> ()
    %244 = tpu.concatenate %189, %207, %225, %243 in 2 : vector<1x8x8xf32>, vector<1x8x8xf32>, vector<1x8x8xf32>, vector<1x8x8xf32> -> vector<1x8x32xf32>
    %245 = vector.shape_cast %244 : vector<1x8x32xf32> to vector<8x32xf32>
    %c0_84 = arith.constant 0 : index
    %c0_85 = arith.constant 0 : index
    %246 = vector.load %arg16[%c0_84, %c0_85] : memref<32x32xf32, #tpu.memory_space<vmem>>, vector<32x32xf32>
    %cst_86 = arith.constant dense<0.000000e+00> : vector<8x32xf32>
    %247 = tpu.matmul %245, %246, %cst_86 {dimension_numbers = #tpu.dot_dimension_numbers<[1], [0], [0], [1], [0, 0, 1, 1], [], []>} : vector<8x32xf32>, vector<32x32xf32>, vector<8x32xf32> -> vector<8x32xf32>
    %c0_87 = arith.constant 0 : index
    %c0_88 = arith.constant 0 : index
    %248 = vector.load %arg17[%c0_87, %c0_88] : memref<1x32xf32, #tpu.memory_space<vmem>>, vector<1x32xf32>
    %249 = vector.broadcast %248 : vector<1x32xf32> to vector<8x32xf32>
    %250 = arith.addf %247, %249 : vector<8x32xf32>
    %c0_89 = arith.constant 0 : index
    %c0_90 = arith.constant 0 : index
    %251 = vector.load %arg18[%c0_89, %c0_90] : memref<1x32xf32, #tpu.memory_space<vmem>>, vector<1x32xf32>
    %c0_91 = arith.constant 0 : index
    %c0_92 = arith.constant 0 : index
    %252 = vector.load %arg19[%c0_91, %c0_92] : memref<1x32xf32, #tpu.memory_space<vmem>>, vector<1x32xf32>
    %cst_93 = arith.constant dense<0.000000e+00> : vector<8xf32>
    %253 = vector.multi_reduction <add>, %250, %cst_93 [1] : vector<8x32xf32> to vector<8xf32>
    %254 = vector.shape_cast %253 : vector<8xf32> to vector<8x1xf32>
    %cst_94 = arith.constant 3.200000e+01 : f32
    %255 = vector.broadcast %cst_94 : f32 to vector<8x1xf32>
    %256 = arith.divf %254, %255 : vector<8x1xf32>
    %257 = vector.broadcast %256 : vector<8x1xf32> to vector<8x32xf32>
    %258 = arith.subf %250, %257 : vector<8x32xf32>
    %259 = arith.mulf %258, %258 : vector<8x32xf32>
    %cst_95 = arith.constant dense<0.000000e+00> : vector<8xf32>
    %260 = vector.multi_reduction <add>, %259, %cst_95 [1] : vector<8x32xf32> to vector<8xf32>
    %261 = vector.shape_cast %260 : vector<8xf32> to vector<8x1xf32>
    %cst_96 = arith.constant 3.200000e+01 : f32
    %262 = vector.broadcast %cst_96 : f32 to vector<8x1xf32>
    %263 = arith.divf %261, %262 : vector<8x1xf32>
    %264 = vector.broadcast %256 : vector<8x1xf32> to vector<8x32xf32>
    %265 = arith.subf %250, %264 : vector<8x32xf32>
    %cst_97 = arith.constant 9.99999974E-6 : f32
    %266 = vector.broadcast %cst_97 : f32 to vector<8x1xf32>
    %267 = arith.addf %263, %266 : vector<8x1xf32>
    %268 = math.rsqrt %267 : vector<8x1xf32>
    %269 = vector.broadcast %268 : vector<8x1xf32> to vector<8x32xf32>
    %270 = arith.mulf %265, %269 : vector<8x32xf32>
    %271 = vector.broadcast %251 : vector<1x32xf32> to vector<8x32xf32>
    %272 = arith.mulf %270, %271 : vector<8x32xf32>
    %273 = vector.broadcast %252 : vector<1x32xf32> to vector<8x32xf32>
    %274 = arith.addf %272, %273 : vector<8x32xf32>
    %275 = vector.shape_cast %274 : vector<8x32xf32> to vector<1x8x32xf32>
    %c0_98 = arith.constant 0 : index
    %c0_99 = arith.constant 0 : index
    %c0_100 = arith.constant 0 : index
    %276 = vector.load %arg21[%c0_98, %c0_99, %c0_100] : memref<1x8x32xf32, #tpu.memory_space<vmem>>, vector<1x8x32xf32>
    tpu.vector_store %arg21[%c0_98, %c0_99, %c0_100], %275 {strides = array<i32>} : memref<1x8x32xf32, #tpu.memory_space<vmem>>, vector<1x8x32xf32>,
    return
  }
  func.func @transform_0(%arg0: i32) -> (i32, i32, i32) {
    %c0_i32 = arith.constant 0 : i32
    %c0_i32_0 = arith.constant 0 : i32
    %c0_i32_1 = arith.constant 0 : i32
    return %arg0, %c0_i32, %c0_i32_0 : i32, i32, i32
  }
  func.func @transform_1(%arg0: i32) -> (i32, i32, i32) {
    %c0_i32 = arith.constant 0 : i32
    %c0_i32_0 = arith.constant 0 : i32
    %c0_i32_1 = arith.constant 0 : i32
    %c0_i32_2 = arith.constant 0 : i32
    return %c0_i32, %c0_i32_0, %c0_i32_1 : i32, i32, i32
  }
  func.func @transform_2(%arg0: i32) -> (i32, i32) {
    %c0_i32 = arith.constant 0 : i32
    %c0_i32_0 = arith.constant 0 : i32
    %c0_i32_1 = arith.constant 0 : i32
    return %c0_i32, %c0_i32_0 : i32, i32
  }
  func.func @transform_3(%arg0: i32) -> (i32, i32) {
    %c0_i32 = arith.constant 0 : i32
    %c0_i32_0 = arith.constant 0 : i32
    %c0_i32_1 = arith.constant 0 : i32
    return %c0_i32, %c0_i32_0 : i32, i32
  }
  func.func @transform_4(%arg0: i32) -> (i32, i32) {
    %c0_i32 = arith.constant 0 : i32
    %c0_i32_0 = arith.constant 0 : i32
    %c0_i32_1 = arith.constant 0 : i32
    return %c0_i32, %c0_i32_0 : i32, i32
  }
  func.func @transform_5(%arg0: i32) -> (i32, i32) {
    %c0_i32 = arith.constant 0 : i32
    %c0_i32_0 = arith.constant 0 : i32
    %c0_i32_1 = arith.constant 0 : i32
    return %c0_i32, %c0_i32_0 : i32, i32
  }
  func.func @transform_6(%arg0: i32) -> (i32, i32) {
    %c0_i32 = arith.constant 0 : i32
    %c0_i32_0 = arith.constant 0 : i32
    %c0_i32_1 = arith.constant 0 : i32
    return %c0_i32, %c0_i32_0 : i32, i32
  }
  func.func @transform_7(%arg0: i32) -> (i32, i32) {
    %c0_i32 = arith.constant 0 : i32
    %c0_i32_0 = arith.constant 0 : i32
    %c0_i32_1 = arith.constant 0 : i32
    return %c0_i32, %c0_i32_0 : i32, i32
  }
  func.func @transform_8(%arg0: i32) -> (i32, i32) {
    %c0_i32 = arith.constant 0 : i32
    %c0_i32_0 = arith.constant 0 : i32
    %c0_i32_1 = arith.constant 0 : i32
    return %c0_i32, %c0_i32_0 : i32, i32
  }
  func.func @transform_9(%arg0: i32) -> (i32, i32) {
    %c0_i32 = arith.constant 0 : i32
    %c0_i32_0 = arith.constant 0 : i32
    %c0_i32_1 = arith.constant 0 : i32
    return %c0_i32, %c0_i32_0 : i32, i32
  }
  func.func @transform_10(%arg0: i32) -> (i32, i32, i32) {
    %c0_i32 = arith.constant 0 : i32
    %c0_i32_0 = arith.constant 0 : i32
    %c0_i32_1 = arith.constant 0 : i32
    %c0_i32_2 = arith.constant 0 : i32
    return %c0_i32, %c0_i32_0, %c0_i32_1 : i32, i32, i32
  }
  func.func @transform_11(%arg0: i32) -> (i32, i32) {
    %c0_i32 = arith.constant 0 : i32
    %c0_i32_0 = arith.constant 0 : i32
    %c0_i32_1 = arith.constant 0 : i32
    return %c0_i32, %c0_i32_0 : i32, i32
  }
  func.func @transform_12(%arg0: i32) -> (i32, i32) {
    %c0_i32 = arith.constant 0 : i32
    %c0_i32_0 = arith.constant 0 : i32
    %c0_i32_1 = arith.constant 0 : i32
    return %c0_i32, %c0_i32_0 : i32, i32
  }
  func.func @transform_13(%arg0: i32) -> (i32, i32) {
    %c0_i32 = arith.constant 0 : i32
    %c0_i32_0 = arith.constant 0 : i32
    %c0_i32_1 = arith.constant 0 : i32
    return %c0_i32, %c0_i32_0 : i32, i32
  }
  func.func @transform_14(%arg0: i32) -> (i32, i32) {
    %c0_i32 = arith.constant 0 : i32
    %c0_i32_0 = arith.constant 0 : i32
    %c0_i32_1 = arith.constant 0 : i32
    return %c0_i32, %c0_i32_0 : i32, i32
  }
  func.func @transform_15(%arg0: i32) -> (i32, i32) {
    %c0_i32 = arith.constant 0 : i32
    %c0_i32_0 = arith.constant 0 : i32
    %c0_i32_1 = arith.constant 0 : i32
    return %c0_i32, %c0_i32_0 : i32, i32
  }
  func.func @transform_16(%arg0: i32) -> (i32, i32) {
    %c0_i32 = arith.constant 0 : i32
    %c0_i32_0 = arith.constant 0 : i32
    %c0_i32_1 = arith.constant 0 : i32
    return %c0_i32, %c0_i32_0 : i32, i32
  }
  func.func @transform_17(%arg0: i32) -> (i32, i32) {
    %c0_i32 = arith.constant 0 : i32
    %c0_i32_0 = arith.constant 0 : i32
    %c0_i32_1 = arith.constant 0 : i32
    return %c0_i32, %c0_i32_0 : i32, i32
  }
  func.func @transform_18(%arg0: i32) -> (i32, i32) {
    %c0_i32 = arith.constant 0 : i32
    %c0_i32_0 = arith.constant 0 : i32
    %c0_i32_1 = arith.constant 0 : i32
    return %c0_i32, %c0_i32_0 : i32, i32
  }
  func.func @transform_19(%arg0: i32) -> (i32, i32, i32) {
    %c0_i32 = arith.constant 0 : i32
    %c0_i32_0 = arith.constant 0 : i32
    %c0_i32_1 = arith.constant 0 : i32
    return %arg0, %c0_i32, %c0_i32_0 : i32, i32, i32
  }
  func.func @transform_20(%arg0: i32) -> (i32, i32, i32) {
    %c0_i32 = arith.constant 0 : i32
    %c0_i32_0 = arith.constant 0 : i32
    %c0_i32_1 = arith.constant 0 : i32
    return %arg0, %c0_i32, %c0_i32_0 : i32, i32, i32
  }
}

</mosaic_0001>

<llo_original>
// kernel: tpu_custom_call.1
$region0: #{tpu_custom_call.1}
  #allocation0 [shape = 'u32[]', space=smem, size = 0x4, offset = 0x4, fixed_abs, tag = 'smem constant byte address 0x4 - core index']
  #allocation1 [shape = 'u32[144,128]{1,0:T(1,128)}', space=vmem, size = 0x12000, scoped, tag = 'internal scratch']
  %s0 = inlined_call_operand.hbm [shape: f32[2,16,32], index: 0, kind: input, shape index: {}]
  %s1 = inlined_call_operand.hbm [shape: f32[4,8,8], index: 1, kind: input, shape index: {}]
  %s2 = inlined_call_operand.vmem [shape: f32[1,32], index: 2, kind: input, shape index: {}]
  %s3 = inlined_call_operand.vmem [shape: f32[1,32], index: 3, kind: input, shape index: {}]
  %s4 = inlined_call_operand.hbm [shape: f32[32,64], index: 4, kind: input, shape index: {}]
  %s5 = inlined_call_operand.vmem [shape: f32[1,64], index: 5, kind: input, shape index: {}]
  %s6 = inlined_call_operand.hbm [shape: f32[32,32], index: 6, kind: input, shape index: {}]
  %s7 = inlined_call_operand.vmem [shape: f32[1,32], index: 7, kind: input, shape index: {}]
  %s8 = inlined_call_operand.vmem [shape: f32[1,32], index: 8, kind: input, shape index: {}]
  %s9 = inlined_call_operand.hbm [shape: f32[1,32], index: 9, kind: input, shape index: {}]
  %s10 = inlined_call_operand.vmem [shape: f32[4,8,8], index: 10, kind: input, shape index: {}]
  %s11 = inlined_call_operand.vmem [shape: f32[1,32], index: 11, kind: input, shape index: {}]
  %s12 = inlined_call_operand.vmem [shape: f32[1,32], index: 12, kind: input, shape index: {}]
  %s13 = inlined_call_operand.hbm [shape: f32[32,64], index: 13, kind: input, shape index: {}]
  %s14 = inlined_call_operand.vmem [shape: f32[1,64], index: 14, kind: input, shape index: {}]
  %s15 = inlined_call_operand.hbm [shape: f32[32,32], index: 15, kind: input, shape index: {}]
  %s16 = inlined_call_operand.vmem [shape: f32[1,32], index: 16, kind: input, shape index: {}]
  %s17 = inlined_call_operand.vmem [shape: f32[1,32], index: 17, kind: input, shape index: {}]
  %s18 = inlined_call_operand.vmem [shape: f32[1,32], index: 18, kind: input, shape index: {}]
  %s19 = inlined_call_operand.hbm [shape: f32[2,8,32], index: 19, kind: output, shape index: {0}]
  %s20 = inlined_call_operand.hbm [shape: f32[2,8,32], index: 20, kind: output, shape index: {1}]
  %21 = xla_tuple %s19, %s20
  %s22 = sld [smem:[#allocation0]]
  $region145: #{tpu_custom_call.1} parent=0
    _
  %s24 = ssub.s32 1, %s22
  %s25 = scalar_select 0, %s24, %s22
  $region1: #{tpu_custom_call.1} parent=0
    #allocation2 [shape = 'u8[16384]{0}', space=vmem, size = 0x4000, scoped, tag = 'input window, operand 0']
    #allocation3 [shape = 's32[2]{0}', space=sflag, size = 0x8, scoped, tag = 'scoped memory for tpu_custom_call.1']
    #allocation4 [shape = 's32[2]{0}', space=sflag, size = 0x8, scoped, tag = 'scoped memory for tpu_custom_call.1']
    #allocation5 [shape = 'u8[16384]{0}', space=vmem, size = 0x4000, scoped, tag = 'input window, operand 1, single buffered']
    #allocation6 [shape = 's32[1]{0}', space=sflag, size = 0x4, scoped, tag = 'scoped memory for tpu_custom_call.1']
    #allocation7 [shape = 'u8[16384]{0}', space=vmem, size = 0x4000, scoped, tag = 'input window, operand 4, single buffered']
    #allocation8 [shape = 'u8[16384]{0}', space=vmem, size = 0x4000, scoped, tag = 'input window, operand 6, single buffered']
    #allocation9 [shape = 's32[1]{0}', space=sflag, size = 0x4, scoped, tag = 'scoped memory for tpu_custom_call.1']
    #allocation10 [shape = 'u8[512]{0}', space=vmem, size = 0x400, scoped, tag = 'input window, operand 9, single buffered']
    #allocation11 [shape = 'u8[16384]{0}', space=vmem, size = 0x4000, scoped, tag = 'input window, operand 13, single buffered']
    #allocation12 [shape = 's32[1]{0}', space=sflag, size = 0x4, scoped, tag = 'scoped memory for tpu_custom_call.1']
    #allocation13 [shape = 'u8[16384]{0}', space=vmem, size = 0x4000, scoped, tag = 'input window, operand 15, single buffered']
    #allocation14 [shape = 'u8[8192]{0}', space=vmem, size = 0x2000, scoped, tag = 'output window, operand 0']
    #allocation15 [shape = 'u8[8192]{0}', space=vmem, size = 0x2000, scoped, tag = 'output window, operand 1']
    #allocation16 [shape = 's32[2]{0}', space=sflag, size = 0x8, scoped, tag = 'scoped memory for tpu_custom_call.1']
    %26 = vsyncpa [#allocation3], 0
    %s27 = scalar_lea.sflag [#allocation3], 1
    %28 = vsyncpa %s27, 0
    %29 = vsyncpa [#allocation6], 0
    %30 = vsyncpa [#allocation9], 0
    %31 = vsyncpa [#allocation12], 0
    %32 = vsyncpa [#allocation4], 0
    %s33 = scalar_lea.sflag [#allocation4], 1
    %34 = vsyncpa %s33, 0
    %35 = vsyncpa [#allocation16], 0
    %s36 = scalar_lea.sflag [#allocation16], 1
    %37 = vsyncpa %s36, 0
    loop: start=0, step=1, limit=4
    $region2: #{tpu_custom_call.1} parent=1 // loop_pre_header
      _
    $region3: #{tpu_custom_call.1} parent=1 // loop_header
      %s39 = sphi 0, %s43
      %p40 = scmp.ge.s32.totalorder %s39, 4
      %s49 = sphi 0, %s51
      %s52 = sphi 0, %s49
      %s53 = sphi 0, %s52
      %s69 = sphi 0, %s53
      %s73 = sphi 0, %s73
      %s75 = sphi 0, %s73
      %s76 = sphi 0, %s75
      %s90 = sphi 0, %s76
      %s94 = sphi 0, %s94
      %s96 = sphi 0, %s94
      %s97 = sphi 0, %s96
      %s111 = sphi 0, %s97
      %s115 = sphi 0, %s115
      %s117 = sphi 0, %s115
      %s118 = sphi 0, %s117
      %s132 = sphi 0, %s118
      %s136 = sphi 0, %s136
      %s138 = sphi 0, %s136
      %s139 = sphi 0, %s138
      %s153 = sphi 0, %s139
      %s157 = sphi 0, %s157
      %s159 = sphi 0, %s157
      %s160 = sphi 0, %s159
      %s174 = sphi 0, %s160
      %s178 = sphi 0, %s178
      %s180 = sphi 0, %s178
      %s181 = sphi 0, %s180
      %s195 = sphi 0, %s181
      %s199 = sphi 0, %s199
      %s201 = sphi 0, %s199
      %s202 = sphi 0, %s201
      %s216 = sphi 0, %s202
      %s220 = sphi 0, %s220
      %s222 = sphi 0, %s220
      %s223 = sphi 0, %s222
      %s237 = sphi 0, %s223
      %s241 = sphi 0, %s241
      %s243 = sphi 0, %s241
      %s244 = sphi 0, %s243
      %s258 = sphi 0, %s244
      %s262 = sphi 0, %s262
      %s264 = sphi 0, %s262
      %s265 = sphi 0, %s264
      %s279 = sphi 0, %s265
      %s283 = sphi 0, %s283
      %s285 = sphi 0, %s283
      %s286 = sphi 0, %s285
      %s300 = sphi 0, %s286
      %s304 = sphi 0, %s304
      %s306 = sphi 0, %s304
      %s307 = sphi 0, %s306
      %s321 = sphi 0, %s307
      %s325 = sphi 0, %s325
      %s327 = sphi 0, %s325
      %s328 = sphi 0, %s327
      %s342 = sphi 0, %s328
      %s346 = sphi 0, %s346
      %s348 = sphi 0, %s346
      %s349 = sphi 0, %s348
      %s363 = sphi 0, %s349
      %s367 = sphi 0, %s367
      %s369 = sphi 0, %s367
      %s370 = sphi 0, %s369
      %s384 = sphi 0, %s370
      %s388 = sphi 0, %s388
      %s390 = sphi 0, %s388
      %s391 = sphi 0, %s390
      %s405 = sphi 0, %s391
      %s409 = sphi 0, %s409
      %s411 = sphi 0, %s409
      %s412 = sphi 0, %s411
      %s426 = sphi 0, %s412
      %s430 = sphi 0, %s430
      %s432 = sphi 0, %s430
      %s433 = sphi 0, %s432
      %s447 = sphi 0, %s433
      %s453 = sphi 0, %s455
      %s456 = sphi 0, %s453
      %s457 = sphi 0, %s456
      %s473 = sphi 0, %s457
      %s479 = sphi 0, %s481
      %s482 = sphi 0, %s479
      %s483 = sphi 0, %s482
      %s499 = sphi 0, %s483
    $region4: #{tpu_custom_call.1} parent=1 // loop_header_branch
      %42 = sbr.rel (%p40) target = $region8
    $region5: #{tpu_custom_call.1} parent=1 // loop_body
      %s44 = ssub.s32 %s39, 1
      %s45 = ssub.s32 %s39, 2
      %s46 = sadd.s32 %s39, 1
      %s47 = ssub.s32 %s39, %s46
      %p48 = scmp.eq.s32.totalorder %s47, 0
      %s50 = sadd.s32 %s49, 1
      %s51 = scalar_select %p48, %s49, %s50
      %p54 = pneg %p48
      %p55 = scmp.eq.s32.totalorder %s39, 1
      %p56 = por %p54, %p55
      %p57 = scmp.ne.s32.totalorder %s49, %s52
      %p58 = scmp.eq.s32.totalorder %s39, 0
      %p59 = por %p57, %p58
      %p60 = scmp.ne.s32.totalorder %s49, %s52
      %p61 = scmp.eq.s32.totalorder %s44, 1
      %p62 = por %p60, %p61
      %p63 = scmp.ne.s32.totalorder %s52, %s53
      %p64 = scmp.eq.s32.totalorder %s44, 0
      %p65 = por %p63, %p64
      %p66 = scmp.ne.s32.totalorder %s52, %s53
      %p67 = scmp.eq.s32.totalorder %s45, 1
      %p68 = por %p66, %p67
      %p70 = scmp.ne.s32.totalorder %s53, %s69
      %p71 = scmp.eq.s32.totalorder %s45, 0
      %p72 = por %p70, %p71
      %s74 = sadd.s32 %s73, 1
      %p77 = scmp.eq.s32.totalorder %s39, 1
      %p78 = scmp.ne.s32.totalorder %s73, %s75
      %p79 = scmp.eq.s32.totalorder %s39, 0
      %p80 = por %p78, %p79
      %p81 = scmp.ne.s32.totalorder %s73, %s75
      %p82 = scmp.eq.s32.totalorder %s44, 1
      %p83 = por %p81, %p82
      %p84 = scmp.ne.s32.totalorder %s75, %s76
      %p85 = scmp.eq.s32.totalorder %s44, 0
      %p86 = por %p84, %p85
      %p87 = scmp.ne.s32.totalorder %s75, %s76
      %p88 = scmp.eq.s32.totalorder %s45, 1
      %p89 = por %p87, %p88
      %p91 = scmp.ne.s32.totalorder %s76, %s90
      %p92 = scmp.eq.s32.totalorder %s45, 0
      %p93 = por %p91, %p92
      %s95 = sadd.s32 %s94, 1
      %p98 = scmp.eq.s32.totalorder %s39, 1
      %p99 = scmp.ne.s32.totalorder %s94, %s96
      %p100 = scmp.eq.s32.totalorder %s39, 0
      %p101 = por %p99, %p100
      %p102 = scmp.ne.s32.totalorder %s94, %s96
      %p103 = scmp.eq.s32.totalorder %s44, 1
      %p104 = por %p102, %p103
      %p105 = scmp.ne.s32.totalorder %s96, %s97
      %p106 = scmp.eq.s32.totalorder %s44, 0
      %p107 = por %p105, %p106
      %p108 = scmp.ne.s32.totalorder %s96, %s97
      %p109 = scmp.eq.s32.totalorder %s45, 1
      %p110 = por %p108, %p109
      %p112 = scmp.ne.s32.totalorder %s97, %s111
      %p113 = scmp.eq.s32.totalorder %s45, 0
      %p114 = por %p112, %p113
      %s116 = sadd.s32 %s115, 1
      %p119 = scmp.eq.s32.totalorder %s39, 1
      %p120 = scmp.ne.s32.totalorder %s115, %s117
      %p121 = scmp.eq.s32.totalorder %s39, 0
      %p122 = por %p120, %p121
      %p123 = scmp.ne.s32.totalorder %s115, %s117
      %p124 = scmp.eq.s32.totalorder %s44, 1
      %p125 = por %p123, %p124
      %p126 = scmp.ne.s32.totalorder %s117, %s118
      %p127 = scmp.eq.s32.totalorder %s44, 0
      %p128 = por %p126, %p127
      %p129 = scmp.ne.s32.totalorder %s117, %s118
      %p130 = scmp.eq.s32.totalorder %s45, 1
      %p131 = por %p129, %p130
      %p133 = scmp.ne.s32.totalorder %s118, %s132
      %p134 = scmp.eq.s32.totalorder %s45, 0
      %p135 = por %p133, %p134
      %s137 = sadd.s32 %s136, 1
      %p140 = scmp.eq.s32.totalorder %s39, 1
      %p141 = scmp.ne.s32.totalorder %s136, %s138
      %p142 = scmp.eq.s32.totalorder %s39, 0
      %p143 = por %p141, %p142
      %p144 = scmp.ne.s32.totalorder %s136, %s138
      %p145 = scmp.eq.s32.totalorder %s44, 1
      %p146 = por %p144, %p145
      %p147 = scmp.ne.s32.totalorder %s138, %s139
      %p148 = scmp.eq.s32.totalorder %s44, 0
      %p149 = por %p147, %p148
      %p150 = scmp.ne.s32.totalorder %s138, %s139
      %p151 = scmp.eq.s32.totalorder %s45, 1
      %p152 = por %p150, %p151
      %p154 = scmp.ne.s32.totalorder %s139, %s153
      %p155 = scmp.eq.s32.totalorder %s45, 0
      %p156 = por %p154, %p155
      %s158 = sadd.s32 %s157, 1
      %p161 = scmp.eq.s32.totalorder %s39, 1
      %p162 = scmp.ne.s32.totalorder %s157, %s159
      %p163 = scmp.eq.s32.totalorder %s39, 0
      %p164 = por %p162, %p163
      %p165 = scmp.ne.s32.totalorder %s157, %s159
      %p166 = scmp.eq.s32.totalorder %s44, 1
      %p167 = por %p165, %p166
      %p168 = scmp.ne.s32.totalorder %s159, %s160
      %p169 = scmp.eq.s32.totalorder %s44, 0
      %p170 = por %p168, %p169
      %p171 = scmp.ne.s32.totalorder %s159, %s160
      %p172 = scmp.eq.s32.totalorder %s45, 1
      %p173 = por %p171, %p172
      %p175 = scmp.ne.s32.totalorder %s160, %s174
      %p176 = scmp.eq.s32.totalorder %s45, 0
      %p177 = por %p175, %p176
      %s179 = sadd.s32 %s178, 1
      %p182 = scmp.eq.s32.totalorder %s39, 1
      %p183 = scmp.ne.s32.totalorder %s178, %s180
      %p184 = scmp.eq.s32.totalorder %s39, 0
      %p185 = por %p183, %p184
      %p186 = scmp.ne.s32.totalorder %s178, %s180
      %p187 = scmp.eq.s32.totalorder %s44, 1
      %p188 = por %p186, %p187
      %p189 = scmp.ne.s32.totalorder %s180, %s181
      %p190 = scmp.eq.s32.totalorder %s44, 0
      %p191 = por %p189, %p190
      %p192 = scmp.ne.s32.totalorder %s180, %s181
      %p193 = scmp.eq.s32.totalorder %s45, 1
      %p194 = por %p192, %p193
      %p196 = scmp.ne.s32.totalorder %s181, %s195
      %p197 = scmp.eq.s32.totalorder %s45, 0
      %p198 = por %p196, %p197
      %s200 = sadd.s32 %s199, 1
      %p203 = scmp.eq.s32.totalorder %s39, 1
      %p204 = scmp.ne.s32.totalorder %s199, %s201
      %p205 = scmp.eq.s32.totalorder %s39, 0
      %p206 = por %p204, %p205
      %p207 = scmp.ne.s32.totalorder %s199, %s201
      %p208 = scmp.eq.s32.totalorder %s44, 1
      %p209 = por %p207, %p208
      %p210 = scmp.ne.s32.totalorder %s201, %s202
      %p211 = scmp.eq.s32.totalorder %s44, 0
      %p212 = por %p210, %p211
      %p213 = scmp.ne.s32.totalorder %s201, %s202
      %p214 = scmp.eq.s32.totalorder %s45, 1
      %p215 = por %p213, %p214
      %p217 = scmp.ne.s32.totalorder %s202, %s216
      %p218 = scmp.eq.s32.totalorder %s45, 0
      %p219 = por %p217, %p218
      %s221 = sadd.s32 %s220, 1
      %p224 = scmp.eq.s32.totalorder %s39, 1
      %p225 = scmp.ne.s32.totalorder %s220, %s222
      %p226 = scmp.eq.s32.totalorder %s39, 0
      %p227 = por %p225, %p226
      %p228 = scmp.ne.s32.totalorder %s220, %s222
      %p229 = scmp.eq.s32.totalorder %s44, 1
      %p230 = por %p228, %p229
      %p231 = scmp.ne.s32.totalorder %s222, %s223
      %p232 = scmp.eq.s32.totalorder %s44, 0
      %p233 = por %p231, %p232
      %p234 = scmp.ne.s32.totalorder %s222, %s223
      %p235 = scmp.eq.s32.totalorder %s45, 1
      %p236 = por %p234, %p235
      %p238 = scmp.ne.s32.totalorder %s223, %s237
      %p239 = scmp.eq.s32.totalorder %s45, 0
      %p240 = por %p238, %p239
      %s242 = sadd.s32 %s241, 1
      %p245 = scmp.eq.s32.totalorder %s39, 1
      %p246 = scmp.ne.s32.totalorder %s241, %s243
      %p247 = scmp.eq.s32.totalorder %s39, 0
      %p248 = por %p246, %p247
      %p249 = scmp.ne.s32.totalorder %s241, %s243
      %p250 = scmp.eq.s32.totalorder %s44, 1
      %p251 = por %p249, %p250
      %p252 = scmp.ne.s32.totalorder %s243, %s244
      %p253 = scmp.eq.s32.totalorder %s44, 0
      %p254 = por %p252, %p253
      %p255 = scmp.ne.s32.totalorder %s243, %s244
      %p256 = scmp.eq.s32.totalorder %s45, 1
      %p257 = por %p255, %p256
      %p259 = scmp.ne.s32.totalorder %s244, %s258
      %p260 = scmp.eq.s32.totalorder %s45, 0
      %p261 = por %p259, %p260
      %s263 = sadd.s32 %s262, 1
      %p266 = scmp.eq.s32.totalorder %s39, 1
      %p267 = scmp.ne.s32.totalorder %s262, %s264
      %p268 = scmp.eq.s32.totalorder %s39, 0
      %p269 = por %p267, %p268
      %p270 = scmp.ne.s32.totalorder %s262, %s264
      %p271 = scmp.eq.s32.totalorder %s44, 1
      %p272 = por %p270, %p271
      %p273 = scmp.ne.s32.totalorder %s264, %s265
      %p274 = scmp.eq.s32.totalorder %s44, 0
      %p275 = por %p273, %p274
      %p276 = scmp.ne.s32.totalorder %s264, %s265
      %p277 = scmp.eq.s32.totalorder %s45, 1
      %p278 = por %p276, %p277
      %p280 = scmp.ne.s32.totalorder %s265, %s279
      %p281 = scmp.eq.s32.totalorder %s45, 0
      %p282 = por %p280, %p281
      %s284 = sadd.s32 %s283, 1
      %p287 = scmp.eq.s32.totalorder %s39, 1
      %p288 = scmp.ne.s32.totalorder %s283, %s285
      %p289 = scmp.eq.s32.totalorder %s39, 0
      %p290 = por %p288, %p289
      %p291 = scmp.ne.s32.totalorder %s283, %s285
      %p292 = scmp.eq.s32.totalorder %s44, 1
      %p293 = por %p291, %p292
      %p294 = scmp.ne.s32.totalorder %s285, %s286
      %p295 = scmp.eq.s32.totalorder %s44, 0
      %p296 = por %p294, %p295
      %p297 = scmp.ne.s32.totalorder %s285, %s286
      %p298 = scmp.eq.s32.totalorder %s45, 1
      %p299 = por %p297, %p298
      %p301 = scmp.ne.s32.totalorder %s286, %s300
      %p302 = scmp.eq.s32.totalorder %s45, 0
      %p303 = por %p301, %p302
      %s305 = sadd.s32 %s304, 1
      %p308 = scmp.eq.s32.totalorder %s39, 1
      %p309 = scmp.ne.s32.totalorder %s304, %s306
      %p310 = scmp.eq.s32.totalorder %s39, 0
      %p311 = por %p309, %p310
      %p312 = scmp.ne.s32.totalorder %s304, %s306
      %p313 = scmp.eq.s32.totalorder %s44, 1
      %p314 = por %p312, %p313
      %p315 = scmp.ne.s32.totalorder %s306, %s307
      %p316 = scmp.eq.s32.totalorder %s44, 0
      %p317 = por %p315, %p316
      %p318 = scmp.ne.s32.totalorder %s306, %s307
      %p319 = scmp.eq.s32.totalorder %s45, 1
      %p320 = por %p318, %p319
      %p322 = scmp.ne.s32.totalorder %s307, %s321
      %p323 = scmp.eq.s32.totalorder %s45, 0
      %p324 = por %p322, %p323
      %s326 = sadd.s32 %s325, 1
      %p329 = scmp.eq.s32.totalorder %s39, 1
      %p330 = scmp.ne.s32.totalorder %s325, %s327
      %p331 = scmp.eq.s32.totalorder %s39, 0
      %p332 = por %p330, %p331
      %p333 = scmp.ne.s32.totalorder %s325, %s327
      %p334 = scmp.eq.s32.totalorder %s44, 1
      %p335 = por %p333, %p334
      %p336 = scmp.ne.s32.totalorder %s327, %s328
      %p337 = scmp.eq.s32.totalorder %s44, 0
      %p338 = por %p336, %p337
      %p339 = scmp.ne.s32.totalorder %s327, %s328
      %p340 = scmp.eq.s32.totalorder %s45, 1
      %p341 = por %p339, %p340
      %p343 = scmp.ne.s32.totalorder %s328, %s342
      %p344 = scmp.eq.s32.totalorder %s45, 0
      %p345 = por %p343, %p344
      %s347 = sadd.s32 %s346, 1
      %p350 = scmp.eq.s32.totalorder %s39, 1
      %p351 = scmp.ne.s32.totalorder %s346, %s348
      %p352 = scmp.eq.s32.totalorder %s39, 0
      %p353 = por %p351, %p352
      %p354 = scmp.ne.s32.totalorder %s346, %s348
      %p355 = scmp.eq.s32.totalorder %s44, 1
      %p356 = por %p354, %p355
      %p357 = scmp.ne.s32.totalorder %s348, %s349
      %p358 = scmp.eq.s32.totalorder %s44, 0
      %p359 = por %p357, %p358
      %p360 = scmp.ne.s32.totalorder %s348, %s349
      %p361 = scmp.eq.s32.totalorder %s45, 1
      %p362 = por %p360, %p361
      %p364 = scmp.ne.s32.totalorder %s349, %s363
      %p365 = scmp.eq.s32.totalorder %s45, 0
      %p366 = por %p364, %p365
      %s368 = sadd.s32 %s367, 1
      %p371 = scmp.eq.s32.totalorder %s39, 1
      %p372 = scmp.ne.s32.totalorder %s367, %s369
      %p373 = scmp.eq.s32.totalorder %s39, 0
      %p374 = por %p372, %p373
      %p375 = scmp.ne.s32.totalorder %s367, %s369
      %p376 = scmp.eq.s32.totalorder %s44, 1
      %p377 = por %p375, %p376
      %p378 = scmp.ne.s32.totalorder %s369, %s370
      %p379 = scmp.eq.s32.totalorder %s44, 0
      %p380 = por %p378, %p379
      %p381 = scmp.ne.s32.totalorder %s369, %s370
      %p382 = scmp.eq.s32.totalorder %s45, 1
      %p383 = por %p381, %p382
      %p385 = scmp.ne.s32.totalorder %s370, %s384
      %p386 = scmp.eq.s32.totalorder %s45, 0
      %p387 = por %p385, %p386
      %s389 = sadd.s32 %s388, 1
      %p392 = scmp.eq.s32.totalorder %s39, 1
      %p393 = scmp.ne.s32.totalorder %s388, %s390
      %p394 = scmp.eq.s32.totalorder %s39, 0
      %p395 = por %p393, %p394
      %p396 = scmp.ne.s32.totalorder %s388, %s390
      %p397 = scmp.eq.s32.totalorder %s44, 1
      %p398 = por %p396, %p397
      %p399 = scmp.ne.s32.totalorder %s390, %s391
      %p400 = scmp.eq.s32.totalorder %s44, 0
      %p401 = por %p399, %p400
      %p402 = scmp.ne.s32.totalorder %s390, %s391
      %p403 = scmp.eq.s32.totalorder %s45, 1
      %p404 = por %p402, %p403
      %p406 = scmp.ne.s32.totalorder %s391, %s405
      %p407 = scmp.eq.s32.totalorder %s45, 0
      %p408 = por %p406, %p407
      %s410 = sadd.s32 %s409, 1
      %p413 = scmp.eq.s32.totalorder %s39, 1
      %p414 = scmp.ne.s32.totalorder %s409, %s411
      %p415 = scmp.eq.s32.totalorder %s39, 0
      %p416 = por %p414, %p415
      %p417 = scmp.ne.s32.totalorder %s409, %s411
      %p418 = scmp.eq.s32.totalorder %s44, 1
      %p419 = por %p417, %p418
      %p420 = scmp.ne.s32.totalorder %s411, %s412
      %p421 = scmp.eq.s32.totalorder %s44, 0
      %p422 = por %p420, %p421
      %p423 = scmp.ne.s32.totalorder %s411, %s412
      %p424 = scmp.eq.s32.totalorder %s45, 1
      %p425 = por %p423, %p424
      %p427 = scmp.ne.s32.totalorder %s412, %s426
      %p428 = scmp.eq.s32.totalorder %s45, 0
      %p429 = por %p427, %p428
      %s431 = sadd.s32 %s430, 1
      %p434 = scmp.eq.s32.totalorder %s39, 1
      %p435 = scmp.ne.s32.totalorder %s430, %s432
      %p436 = scmp.eq.s32.totalorder %s39, 0
      %p437 = por %p435, %p436
      %p438 = scmp.ne.s32.totalorder %s430, %s432
      %p439 = scmp.eq.s32.totalorder %s44, 1
      %p440 = por %p438, %p439
      %p441 = scmp.ne.s32.totalorder %s432, %s433
      %p442 = scmp.eq.s32.totalorder %s44, 0
      %p443 = por %p441, %p442
      %p444 = scmp.ne.s32.totalorder %s432, %s433
      %p445 = scmp.eq.s32.totalorder %s45, 1
      %p446 = por %p444, %p445
      %p448 = scmp.ne.s32.totalorder %s433, %s447
      %p449 = scmp.eq.s32.totalorder %s45, 0
      %p450 = por %p448, %p449
      %s451 = ssub.s32 %s39, %s46
      %p452 = scmp.eq.s32.totalorder %s451, 0
      %s454 = sadd.s32 %s453, 1
      %s455 = scalar_select %p452, %s453, %s454
      %p458 = pneg %p452
      %p459 = scmp.eq.s32.totalorder %s39, 1
      %p460 = por %p458, %p459
      %p461 = scmp.ne.s32.totalorder %s453, %s456
      %p462 = scmp.eq.s32.totalorder %s39, 0
      %p463 = por %p461, %p462
      %p464 = scmp.ne.s32.totalorder %s453, %s456
      %p465 = scmp.eq.s32.totalorder %s44, 1
      %p466 = por %p464, %p465
      %p467 = scmp.ne.s32.totalorder %s456, %s457
      %p468 = scmp.eq.s32.totalorder %s44, 0
      %p469 = por %p467, %p468
      %p470 = scmp.ne.s32.totalorder %s456, %s457
      %p471 = scmp.eq.s32.totalorder %s45, 1
      %p472 = por %p470, %p471
      %p474 = scmp.ne.s32.totalorder %s457, %s473
      %p475 = scmp.eq.s32.totalorder %s45, 0
      %p476 = por %p474, %p475
      %s477 = ssub.s32 %s39, %s46
      %p478 = scmp.eq.s32.totalorder %s477, 0
      %s480 = sadd.s32 %s479, 1
      %s481 = scalar_select %p478, %s479, %s480
      %p484 = pneg %p478
      %p485 = scmp.eq.s32.totalorder %s39, 1
      %p486 = por %p484, %p485
      %p487 = scmp.ne.s32.totalorder %s479, %s482
      %p488 = scmp.eq.s32.totalorder %s39, 0
      %p489 = por %p487, %p488
      %p490 = scmp.ne.s32.totalorder %s479, %s482
      %p491 = scmp.eq.s32.totalorder %s44, 1
      %p492 = por %p490, %p491
      %p493 = scmp.ne.s32.totalorder %s482, %s483
      %p494 = scmp.eq.s32.totalorder %s44, 0
      %p495 = por %p493, %p494
      %p496 = scmp.ne.s32.totalorder %s482, %s483
      %p497 = scmp.eq.s32.totalorder %s45, 1
      %p498 = por %p496, %p497
      %p500 = scmp.ne.s32.totalorder %s483, %s499
      %p501 = scmp.eq.s32.totalorder %s45, 0
      %p502 = por %p500, %p501
      %p503 = scmp.le.s32.totalorder 1, %s39
      %p504 = scmp.lt.s32.totalorder %s39, 3
      %p505 = pnand %p503, %p504
      %p506 = pneg %p505
      // Predicated region
      $region9: #{tpu_custom_call.1} parent=5 // pred_check
        _
      $region10: #{tpu_custom_call.1} parent=5 // pred_check_branch
        %508 = sbr.rel (%p505) target = $region12
      $region11: #{tpu_custom_call.1} parent=5 // pred_region
        %s509 = ssub.s32 %s39, 1
        // Predicated region
        $region13: #{tpu_custom_call.1} parent=11 // pred_check
          %p510 = pneg %p86
        $region14: #{tpu_custom_call.1} parent=11 // pred_check_branch
          %512 = sbr.rel (%p510) target = $region16
        $region15: #{tpu_custom_call.1} parent=11 // pred_region
          %s514 = ssub.s32 512, 512
          %515 = vsyncadd [#allocation6], %s514
          %s516 = sshll.u32 [#allocation5], 4
          %s517 = int_to_ptr.vmem [resolvable:$true] %s516
          %522 = dma.hbm_to_vmem [thread:$0]  %s1, 512, %s517, [#allocation6], 128, 128, 8
        $region16: #{tpu_custom_call.1} parent=11 // pred_fallthru
          _
        // Predicated region
        $region17: #{tpu_custom_call.1} parent=11 // pred_check
          %p523 = pneg %p107
        $region18: #{tpu_custom_call.1} parent=11 // pred_check_branch
          %525 = sbr.rel (%p523) target = $region20
        $region19: #{tpu_custom_call.1} parent=11 // pred_region
          _
        $region20: #{tpu_custom_call.1} parent=11 // pred_fallthru
          _
        // Predicated region
        $region21: #{tpu_custom_call.1} parent=11 // pred_check
          %p526 = pneg %p128
        $region22: #{tpu_custom_call.1} parent=11 // pred_check_branch
          %528 = sbr.rel (%p526) target = $region24
        $region23: #{tpu_custom_call.1} parent=11 // pred_region
          _
        $region24: #{tpu_custom_call.1} parent=11 // pred_fallthru
          _
        // Predicated region
        $region25: #{tpu_custom_call.1} parent=11 // pred_check
          %p529 = pneg %p149
        $region26: #{tpu_custom_call.1} parent=11 // pred_check_branch
          %531 = sbr.rel (%p529) target = $region28
        $region27: #{tpu_custom_call.1} parent=11 // pred_region
          %s533 = ssub.s32 512, 512
          %534 = vsyncadd [#allocation6], %s533
          %s535 = sshll.u32 [#allocation7], 4
          %s536 = int_to_ptr.vmem [resolvable:$true] %s535
          %541 = dma.hbm_to_vmem [thread:$0]  %s4, 512, %s536, [#allocation6], 128, 128, 8
        $region28: #{tpu_custom_call.1} parent=11 // pred_fallthru
          _
        // Predicated region
        $region29: #{tpu_custom_call.1} parent=11 // pred_check
          %p542 = pneg %p170
        $region30: #{tpu_custom_call.1} parent=11 // pred_check_branch
          %544 = sbr.rel (%p542) target = $region32
        $region31: #{tpu_custom_call.1} parent=11 // pred_region
          _
        $region32: #{tpu_custom_call.1} parent=11 // pred_fallthru
          _
        // Predicated region
        $region33: #{tpu_custom_call.1} parent=11 // pred_check
          %p545 = pneg %p191
        $region34: #{tpu_custom_call.1} parent=11 // pred_check_branch
          %547 = sbr.rel (%p545) target = $region36
        $region35: #{tpu_custom_call.1} parent=11 // pred_region
          %s549 = ssub.s32 512, 512
          %550 = vsyncadd [#allocation9], %s549
          %s551 = sshll.u32 [#allocation8], 4
          %s552 = int_to_ptr.vmem [resolvable:$true] %s551
          %557 = dma.hbm_to_vmem [thread:$0]  %s6, 512, %s552, [#allocation9], 128, 128, 8
        $region36: #{tpu_custom_call.1} parent=11 // pred_fallthru
          _
        // Predicated region
        $region37: #{tpu_custom_call.1} parent=11 // pred_check
          %p558 = pneg %p212
        $region38: #{tpu_custom_call.1} parent=11 // pred_check_branch
          %560 = sbr.rel (%p558) target = $region40
        $region39: #{tpu_custom_call.1} parent=11 // pred_region
          _
        $region40: #{tpu_custom_call.1} parent=11 // pred_fallthru
          _
        // Predicated region
        $region41: #{tpu_custom_call.1} parent=11 // pred_check
          %p561 = pneg %p233
        $region42: #{tpu_custom_call.1} parent=11 // pred_check_branch
          %563 = sbr.rel (%p561) target = $region44
        $region43: #{tpu_custom_call.1} parent=11 // pred_region
          _
        $region44: #{tpu_custom_call.1} parent=11 // pred_fallthru
          _
        // Predicated region
        $region45: #{tpu_custom_call.1} parent=11 // pred_check
          %p564 = pneg %p254
        $region46: #{tpu_custom_call.1} parent=11 // pred_check_branch
          %566 = sbr.rel (%p564) target = $region48
        $region47: #{tpu_custom_call.1} parent=11 // pred_region
          %s568 = ssub.s32 16, 16
          %569 = vsyncadd [#allocation9], %s568
          %s571 = sshll.u32 [#allocation10], 4
          %s572 = int_to_ptr.vmem [resolvable:$true] %s571
          %574 = dma.hbm_to_vmem [thread:$0]  %s9, 16, %s572, [#allocation9]
        $region48: #{tpu_custom_call.1} parent=11 // pred_fallthru
          _
        // Predicated region
        $region49: #{tpu_custom_call.1} parent=11 // pred_check
          %p575 = pneg %p275
        $region50: #{tpu_custom_call.1} parent=11 // pred_check_branch
          %577 = sbr.rel (%p575) target = $region52
        $region51: #{tpu_custom_call.1} parent=11 // pred_region
          _
        $region52: #{tpu_custom_call.1} parent=11 // pred_fallthru
          _
        // Predicated region
        $region53: #{tpu_custom_call.1} parent=11 // pred_check
          %p578 = pneg %p296
        $region54: #{tpu_custom_call.1} parent=11 // pred_check_branch
          %580 = sbr.rel (%p578) target = $region56
        $region55: #{tpu_custom_call.1} parent=11 // pred_region
          _
        $region56: #{tpu_custom_call.1} parent=11 // pred_fallthru
          _
        // Predicated region
        $region57: #{tpu_custom_call.1} parent=11 // pred_check
          %p581 = pneg %p317
        $region58: #{tpu_custom_call.1} parent=11 // pred_check_branch
          %583 = sbr.rel (%p581) target = $region60
        $region59: #{tpu_custom_call.1} parent=11 // pred_region
          _
        $region60: #{tpu_custom_call.1} parent=11 // pred_fallthru
          _
        // Predicated region
        $region61: #{tpu_custom_call.1} parent=11 // pred_check
          %p584 = pneg %p338
        $region62: #{tpu_custom_call.1} parent=11 // pred_check_branch
          %586 = sbr.rel (%p584) target = $region64
        $region63: #{tpu_custom_call.1} parent=11 // pred_region
          %s588 = ssub.s32 512, 512
          %589 = vsyncadd [#allocation12], %s588
          %s590 = sshll.u32 [#allocation11], 4
          %s591 = int_to_ptr.vmem [resolvable:$true] %s590
          %596 = dma.hbm_to_vmem [thread:$0]  %s13, 512, %s591, [#allocation12], 128, 128, 8
        $region64: #{tpu_custom_call.1} parent=11 // pred_fallthru
          _
        // Predicated region
        $region65: #{tpu_custom_call.1} parent=11 // pred_check
          %p597 = pneg %p359
        $region66: #{tpu_custom_call.1} parent=11 // pred_check_branch
          %599 = sbr.rel (%p597) target = $region68
        $region67: #{tpu_custom_call.1} parent=11 // pred_region
          _
        $region68: #{tpu_custom_call.1} parent=11 // pred_fallthru
          _
        // Predicated region
        $region69: #{tpu_custom_call.1} parent=11 // pred_check
          %p600 = pneg %p380
        $region70: #{tpu_custom_call.1} parent=11 // pred_check_branch
          %602 = sbr.rel (%p600) target = $region72
        $region71: #{tpu_custom_call.1} parent=11 // pred_region
          %s604 = ssub.s32 512, 512
          %605 = vsyncadd [#allocation12], %s604
          %s606 = sshll.u32 [#allocation13], 4
          %s607 = int_to_ptr.vmem [resolvable:$true] %s606
          %612 = dma.hbm_to_vmem [thread:$0]  %s15, 512, %s607, [#allocation12], 128, 128, 8
        $region72: #{tpu_custom_call.1} parent=11 // pred_fallthru
          _
        // Predicated region
        $region73: #{tpu_custom_call.1} parent=11 // pred_check
          %p613 = pneg %p401
        $region74: #{tpu_custom_call.1} parent=11 // pred_check_branch
          %615 = sbr.rel (%p613) target = $region76
        $region75: #{tpu_custom_call.1} parent=11 // pred_region
          _
        $region76: #{tpu_custom_call.1} parent=11 // pred_fallthru
          _
        // Predicated region
        $region77: #{tpu_custom_call.1} parent=11 // pred_check
          %p616 = pneg %p422
        $region78: #{tpu_custom_call.1} parent=11 // pred_check_branch
          %618 = sbr.rel (%p616) target = $region80
        $region79: #{tpu_custom_call.1} parent=11 // pred_region
          _
        $region80: #{tpu_custom_call.1} parent=11 // pred_fallthru
          _
        // Predicated region
        $region81: #{tpu_custom_call.1} parent=11 // pred_check
          %p619 = pneg %p443
        $region82: #{tpu_custom_call.1} parent=11 // pred_check_branch
          %621 = sbr.rel (%p619) target = $region84
        $region83: #{tpu_custom_call.1} parent=11 // pred_region
          _
        $region84: #{tpu_custom_call.1} parent=11 // pred_fallthru
          _
      $region12: #{tpu_custom_call.1} parent=5 // pred_fallthru
        _
      %p622 = scmp.lt.s32.totalorder %s39, 2
      // Predicated region
      $region85: #{tpu_custom_call.1} parent=5 // pred_check
        %p623 = pneg %p622
      $region86: #{tpu_custom_call.1} parent=5 // pred_check_branch
        %625 = sbr.rel (%p623) target = $region88
      $region87: #{tpu_custom_call.1} parent=5 // pred_region
        // Predicated region
        $region89: #{tpu_custom_call.1} parent=87 // pred_check
          %p626 = pneg %p59
        $region90: #{tpu_custom_call.1} parent=87 // pred_check_branch
          %628 = sbr.rel (%p626) target = $region92
        $region91: #{tpu_custom_call.1} parent=87 // pred_region
          %s629 = sand.u32 %s49, 1
          %s630 = scalar_lea.sflag [#allocation3], %s629
          %s631 = sand.u32 %s49, 1
          %s632 = smul.addr %s631, 16
          %s633 = scalar_lea.vmem [#allocation2], %s632
          %s635 = ssub.s32 256, 256
          %636 = vsyncadd %s630, %s635
          %s637 = smul.addr %s39, 2
          %s638 = smul.addr %s637, 128
          %s639 = scalar_lea.hbm %s0, %s638
          %s640 = sshll.u32 %s633, 4
          %s641 = int_to_ptr.vmem [resolvable:$true] %s640
          %646 = dma.hbm_to_vmem [thread:$0]  %s639, 256, %s641, %s630, 128, 128, 8
        $region92: #{tpu_custom_call.1} parent=87 // pred_fallthru
          _
      $region88: #{tpu_custom_call.1} parent=5 // pred_fallthru
        _
      %p647 = scmp.le.s32.totalorder 1, %s39
      %p648 = scmp.lt.s32.totalorder %s39, 3
      %p649 = pnand %p647, %p648
      %p650 = pneg %p649
      // Predicated region
      $region93: #{tpu_custom_call.1} parent=5 // pred_check
        _
      $region94: #{tpu_custom_call.1} parent=5 // pred_check_branch
        %652 = sbr.rel (%p649) target = $region96
      $region95: #{tpu_custom_call.1} parent=5 // pred_region
        %s653 = ssub.s32 %s39, 1
        %s654 = sand.u32 %s52, 1
        %s655 = scalar_lea.sflag [#allocation3], %s654
        %s656 = sand.u32 %s52, 1
        %s657 = smul.addr %s656, 16
        %s658 = scalar_lea.vmem [#allocation2], %s657
        // Predicated region
        $region97: #{tpu_custom_call.1} parent=95 // pred_check
          %p659 = pneg %p65
        $region98: #{tpu_custom_call.1} parent=95 // pred_check_branch
          %661 = sbr.rel (%p659) target = $region100
        $region99: #{tpu_custom_call.1} parent=95 // pred_region
          %662 = dma.done %s655, 256
        $region100: #{tpu_custom_call.1} parent=95 // pred_fallthru
          _
        // Predicated region
        $region101: #{tpu_custom_call.1} parent=95 // pred_check
          %p663 = pneg %p86
        $region102: #{tpu_custom_call.1} parent=95 // pred_check_branch
          %665 = sbr.rel (%p663) target = $region104
        $region103: #{tpu_custom_call.1} parent=95 // pred_region
          %666 = dma.done [#allocation6], 512
        $region104: #{tpu_custom_call.1} parent=95 // pred_fallthru
          _
        // Predicated region
        $region105: #{tpu_custom_call.1} parent=95 // pred_check
          %p667 = pneg %p149
        $region106: #{tpu_custom_call.1} parent=95 // pred_check_branch
          %669 = sbr.rel (%p667) target = $region108
        $region107: #{tpu_custom_call.1} parent=95 // pred_region
          %670 = dma.done [#allocation6], 512
        $region108: #{tpu_custom_call.1} parent=95 // pred_fallthru
          _
        // Predicated region
        $region109: #{tpu_custom_call.1} parent=95 // pred_check
          %p671 = pneg %p191
        $region110: #{tpu_custom_call.1} parent=95 // pred_check_branch
          %673 = sbr.rel (%p671) target = $region112
        $region111: #{tpu_custom_call.1} parent=95 // pred_region
          %674 = dma.done [#allocation9], 512
        $region112: #{tpu_custom_call.1} parent=95 // pred_fallthru
          _
        // Predicated region
        $region113: #{tpu_custom_call.1} parent=95 // pred_check
          %p675 = pneg %p254
        $region114: #{tpu_custom_call.1} parent=95 // pred_check_branch
          %677 = sbr.rel (%p675) target = $region116
        $region115: #{tpu_custom_call.1} parent=95 // pred_region
          %678 = dma.done [#allocation9], 16
        $region116: #{tpu_custom_call.1} parent=95 // pred_fallthru
          _
        // Predicated region
        $region117: #{tpu_custom_call.1} parent=95 // pred_check
          %p679 = pneg %p338
        $region118: #{tpu_custom_call.1} parent=95 // pred_check_branch
          %681 = sbr.rel (%p679) target = $region120
        $region119: #{tpu_custom_call.1} parent=95 // pred_region
          %682 = dma.done [#allocation12], 512
        $region120: #{tpu_custom_call.1} parent=95 // pred_fallthru
          _
        // Predicated region
        $region121: #{tpu_custom_call.1} parent=95 // pred_check
          %p683 = pneg %p380
        $region122: #{tpu_custom_call.1} parent=95 // pred_check_branch
          %685 = sbr.rel (%p683) target = $region124
        $region123: #{tpu_custom_call.1} parent=95 // pred_region
          %686 = dma.done [#allocation12], 512
        $region124: #{tpu_custom_call.1} parent=95 // pred_fallthru
          _
        %s687 = sand.u32 %s52, 1
        %s688 = scalar_lea.sflag [#allocation3], %s687
        %s689 = sand.u32 %s52, 1
        %s690 = smul.addr %s689, 16
        %s691 = scalar_lea.vmem [#allocation2], %s690
        %p692 = pneg %p65
        %p693 = pneg %p62
        %p694 = pneg %p86
        %p695 = pneg %p83
        %p696 = pneg %p107
        %p697 = pneg %p104
        %p698 = pneg %p128
        %p699 = pneg %p125
        %p700 = pneg %p149
        %p701 = pneg %p146
        %p702 = pneg %p170
        %p703 = pneg %p167
        %p704 = pneg %p191
        %p705 = pneg %p188
        %p706 = pneg %p212
        %p707 = pneg %p209
        %p708 = pneg %p233
        %p709 = pneg %p230
        %p710 = pneg %p254
        %p711 = pneg %p251
        %p712 = pneg %p275
        %p713 = pneg %p272
        %p714 = pneg %p296
        %p715 = pneg %p293
        %p716 = pneg %p317
        %p717 = pneg %p314
        %p718 = pneg %p338
        %p719 = pneg %p335
        %p720 = pneg %p359
        %p721 = pneg %p356
        %p722 = pneg %p380
        %p723 = pneg %p377
        %p724 = pneg %p401
        %p725 = pneg %p398
        %p726 = pneg %p422
        %p727 = pneg %p419
        %p728 = pneg %p443
        %p729 = pneg %p440
        %p730 = pneg %p469
        %p731 = pneg %p466
        %s732 = sand.u32 %s456, 1
        %s733 = scalar_lea.sflag [#allocation4], %s732
        %s734 = sand.u32 %s456, 1
        %s735 = smul.addr %s734, 8
        %s736 = scalar_lea.vmem [#allocation14], %s735
        %p737 = pneg %p495
        %p738 = pneg %p492
        %s739 = sand.u32 %s482, 1
        %s740 = scalar_lea.sflag [#allocation16], %s739
        %s741 = sand.u32 %s482, 1
        %s742 = smul.addr %s741, 8
        %s743 = scalar_lea.vmem [#allocation15], %s742
        %v744 = vld [vmem:[%s658] sm:$0xff]
        %v745 = vld [vmem:[%s658 + $0x8] sm:$0xff]
        %v746 = vld [vmem:[%s2] sm:$0x1]
        %v747 = vld [vmem:[%s3] sm:$0x1]
        %vm748 = vcmask 261120
        %v749 = vsel %vm748, %v744, 0.0
        %750 = vadd.xlane.f32.xlu0 %v749
        %v751 = vpop.xlane.xlu0 %750
        %v752 = vsel %vm748, %v745, 0.0
        %753 = vadd.xlane.f32.xlu0 %v752
        %v754 = vpop.xlane.xlu0 %753
        %v755 = vrcp.pop 32.0
        %v756 = vmul.f32 %v751, %v755
        %v757 = vmul.f32 %v754, %v755
        %v758 = vsub.f32 %v744, %v756
        %v759 = vsub.f32 %v745, %v757
        %v760 = vmul.f32 %v758, %v758
        %v761 = vmul.f32 %v759, %v759
        %v762 = vsel %vm748, %v760, 0.0
        %763 = vadd.xlane.f32.xlu0 %v762
        %v764 = vpop.xlane.xlu0 %763
        %v765 = vsel %vm748, %v761, 0.0
        %766 = vadd.xlane.f32.xlu0 %v765
        %v767 = vpop.xlane.xlu0 %766
        %v768 = vmul.f32 %v764, %v755
        %v769 = vmul.f32 %v767, %v755
        %v770 = vadd.f32 %v768, 1e-05
        %v771 = vadd.f32 %v769, 1e-05
        %v772 = vrsqrt.pop %v770
        %v773 = vrsqrt.pop %v771
        %v774 = vmul.f32 %v758, %v772
        %v775 = vmul.f32 %v759, %v773
        %v777 = vlaneseq
        %v778 = vshrl.u32 %v777, 7
        %v779 = vsub.s32 0, %v778
        %v780 = vrot.slane %v746, %v779
        %v782 = vmul.f32 %v774, %v780
        %v783 = vmul.f32 %v775, %v780
        %v785 = vlaneseq
        %v786 = vshrl.u32 %v785, 7
        %v787 = vsub.s32 0, %v786
        %v788 = vrot.slane %v747, %v787
        %v790 = vadd.f32 %v782, %v788
        %v791 = vadd.f32 %v783, %v788
        %v792 = vld [vmem:[#allocation7] sm:$0xff]
        %v793 = vld [vmem:[#allocation7 + $0x8] sm:$0xff]
        %v794 = vld [vmem:[#allocation7 + $0x10] sm:$0xff]
        %v795 = vld [vmem:[#allocation7 + $0x18] sm:$0xff]
        %v796 = vld [vmem:[%s5] sm:$0x1]
        %v798 = vlaneseq
        %v799 = vshrl.u32 %v798, 7
        %v800 = vsub.s32 0, %v799
        %v801 = vrot.slane %v796, %v800
        %v804 = vsel %vm748, %v790, 0
        %v807 = vsel %vm748, %v791, 0
        %809 = vmatprep.subr.mxu0 0.0
        %810 = vmatpush1.msra.mxu0 %v792
        %811 = vmatprep.subr.mxu0 0.0
        %812 = vmatpush1.msra.mxu0 %v793
        %813 = vmatprep.subr.mxu0 0.0
        %814 = vmatpush1.msra.mxu0 %v794
        %815 = vmatprep.subr.mxu0 0.0
        %816 = vmatpush1.msra.mxu0 %v795
        %817 = vmatprep.subr.mxu0 0.0
        %818 = vmatpush1.msra.mxu0 0.0
        %819 = vmatprep.subr.mxu0 0.0
        %820 = vmatpush1.msra.mxu0 0.0
        %821 = vmatprep.subr.mxu0 0.0
        %822 = vmatpush1.msra.mxu0 0.0
        %823 = vmatprep.subr.mxu0 0.0
        %824 = vmatpush1.msra.mxu0 0.0
        %825 = vmatprep.subr.mxu0 0.0
        %826 = vmatpush1.msra.mxu0 0.0
        %827 = vmatprep.subr.mxu0 0.0
        %828 = vmatpush1.msra.mxu0 0.0
        %829 = vmatprep.subr.mxu0 0.0
        %830 = vmatpush1.msra.mxu0 0.0
        %831 = vmatprep.subr.mxu0 0.0
        %832 = vmatpush1.msra.mxu0 0.0
        %833 = vmatprep.subr.mxu0 0.0
        %834 = vmatpush1.msra.mxu0 0.0
        %835 = vmatprep.subr.mxu0 0.0
        %836 = vmatpush1.msra.mxu0 0.0
        %837 = vmatprep.subr.mxu0 0.0
        %838 = vmatpush1.msra.mxu0 0.0
        %839 = vmatprep.subr.mxu0 0.0
        %840 = vmatpush1.msra.mxu0 0.0
        %841 = vmatprep.subr.mxu0 0.0
        %842 = vmatpush1.msra.mxu0 0.0
        %843 = vmatprep.subr.mxu0 0.0
        %844 = vmatpush1.msra.mxu0 0.0
        %845 = vmatprep.subr.mxu0 0.0
        %846 = vmatpush1.msra.mxu0 0.0
        %847 = vmatprep.subr.mxu0 0.0
        %848 = vmatpush1.msra.mxu0 0.0
        %849 = vmatprep.subr.mxu0 0.0
        %850 = vmatpush1.msra.mxu0 0.0
        %851 = vmatprep.subr.mxu0 0.0
        %852 = vmatpush1.msra.mxu0 0.0
        %853 = vmatprep.subr.mxu0 0.0
        %854 = vmatpush1.msra.mxu0 0.0
        %855 = vmatprep.subr.mxu0 0.0
        %856 = vmatpush1.msra.mxu0 0.0
        %857 = vmatprep.subr.mxu0 0.0
        %858 = vmatpush1.msra.mxu0 0.0
        %859 = vmatprep.subr.mxu0 0.0
        %860 = vmatpush1.msra.mxu0 0.0
        %861 = vmatprep.subr.mxu0 0.0
        %862 = vmatpush1.msra.mxu0 0.0
        %863 = vmatprep.subr.mxu0 0.0
        %864 = vmatpush1.msra.mxu0 0.0
        %865 = vmatprep.subr.mxu0 0.0
        %866 = vmatpush1.msra.mxu0 0.0
        %867 = vmatprep.subr.mxu0 0.0
        %868 = vmatpush1.msra.mxu0 0.0
        %869 = vmatprep.subr.mxu0 0.0
        %870 = vmatpush1.msra.mxu0 0.0
        %871 = vmatprep.subr.mxu0 0.0
        %872 = vmatpush1.msra.mxu0 0.0
        %873 = vmatprep.mubr.f32.mxu0 0.0
        %874 = vmatmul.mubr.f32.gmra.mrb[0].mxu0 %v804
        %v875 = vpop.f32.mrb[0].mxu0
        %v876 = vadd.f32 %v801, %v875
        %v877 = vpop.f32.mrb[0].mxu0
        %878 = vmatprep.mubr.f32.mxu0 0.0
        %879 = vmatmul.mubr.f32.gmra.mrb[0].mxu0 %v807
        %v880 = vpop.f32.mrb[0].mxu0
        %v881 = vadd.f32 %v801, %v880
        %v882 = vpop.f32.mrb[0].mxu0
        %883 = vdwg.mxu0
        %v884 = vld [vmem:[#allocation5] sm:$0xff]
        %v885 = vld [vmem:[#allocation5 + $0x8] sm:$0xff]
        %v886 = vld [vmem:[#allocation5 + $0x10] sm:$0xff]
        %v887 = vld [vmem:[#allocation5 + $0x18] sm:$0xff]
        %vm888 = vcmask 64512
        %v890 = vsel %vm888, %v884, 0
        %v893 = vsel %vm888, %v876, 0
        %v896 = vsel %vm888, %v881, 0
        %898 = vmatprep.subr.mxu0 0.0
        %899 = vmatpush1.xpose.msra.mxu0 %v893
        %900 = vmatprep.subr.mxu0 0.0
        %901 = vmatpush1.xpose.msra.mxu0 %v896
        %902 = vmatprep.subr.mxu0 0.0
        %903 = vmatpush1.xpose.msra.mxu0 0.0
        %904 = vmatprep.subr.mxu0 0.0
        %905 = vmatpush1.xpose.msra.mxu0 0.0
        %906 = vmatprep.subr.mxu0 0.0
        %907 = vmatpush1.xpose.msra.mxu0 0.0
        %908 = vmatprep.subr.mxu0 0.0
        %909 = vmatpush1.xpose.msra.mxu0 0.0
        %910 = vmatprep.subr.mxu0 0.0
        %911 = vmatpush1.xpose.msra.mxu0 0.0
        %912 = vmatprep.subr.mxu0 0.0
        %913 = vmatpush1.xpose.msra.mxu0 0.0
        %914 = vmatprep.subr.mxu0 0.0
        %915 = vmatpush1.xpose.msra.mxu0 0.0
        %916 = vmatprep.subr.mxu0 0.0
        %917 = vmatpush1.xpose.msra.mxu0 0.0
        %918 = vmatprep.subr.mxu0 0.0
        %919 = vmatpush1.xpose.msra.mxu0 0.0
        %920 = vmatprep.subr.mxu0 0.0
        %921 = vmatpush1.xpose.msra.mxu0 0.0
        %922 = vmatprep.subr.mxu0 0.0
        %923 = vmatpush1.xpose.msra.mxu0 0.0
        %924 = vmatprep.subr.mxu0 0.0
        %925 = vmatpush1.xpose.msra.mxu0 0.0
        %926 = vmatprep.subr.mxu0 0.0
        %927 = vmatpush1.xpose.msra.mxu0 0.0
        %928 = vmatprep.subr.mxu0 0.0
        %929 = vmatpush1.xpose.msra.mxu0 0.0
        %930 = vmatprep.subr.mxu0 0.0
        %931 = vmatpush1.xpose.msra.mxu0 0.0
        %932 = vmatprep.subr.mxu0 0.0
        %933 = vmatpush1.xpose.msra.mxu0 0.0
        %934 = vmatprep.subr.mxu0 0.0
        %935 = vmatpush1.xpose.msra.mxu0 0.0
        %936 = vmatprep.subr.mxu0 0.0
        %937 = vmatpush1.xpose.msra.mxu0 0.0
        %938 = vmatprep.subr.mxu0 0.0
        %939 = vmatpush1.xpose.msra.mxu0 0.0
        %940 = vmatprep.subr.mxu0 0.0
        %941 = vmatpush1.xpose.msra.mxu0 0.0
        %942 = vmatprep.subr.mxu0 0.0
        %943 = vmatpush1.xpose.msra.mxu0 0.0
        %944 = vmatprep.subr.mxu0 0.0
        %945 = vmatpush1.xpose.msra.mxu0 0.0
        %946 = vmatprep.subr.mxu0 0.0
        %947 = vmatpush1.xpose.msra.mxu0 0.0
        %948 = vmatprep.subr.mxu0 0.0
        %949 = vmatpush1.xpose.msra.mxu0 0.0
        %950 = vmatprep.subr.mxu0 0.0
        %951 = vmatpush1.xpose.msra.mxu0 0.0
        %952 = vmatprep.subr.mxu0 0.0
        %953 = vmatpush1.xpose.msra.mxu0 0.0
        %954 = vmatprep.subr.mxu0 0.0
        %955 = vmatpush1.xpose.msra.mxu0 0.0
        %956 = vmatprep.subr.mxu0 0.0
        %957 = vmatpush1.xpose.msra.mxu0 0.0
        %958 = vmatprep.subr.mxu0 0.0
        %959 = vmatpush1.xpose.msra.mxu0 0.0
        %960 = vmatprep.subr.mxu0 0.0
        %961 = vmatpush1.xpose.msra.mxu0 0.0
        %962 = vmatprep.mubr.f32.mxu0 0.0
        %963 = vmatmul.mubr.f32.gmra.mrb[0].mxu0 %v890
        %v964 = vpop.f32.mrb[0].mxu0
        %v965 = vadd.f32 0.0, %v964
        %v966 = vpop.f32.mrb[0].mxu0
        %967 = vdwg.mxu0
        %v969 = vcombine.high %v965, %v965
        %v971 = vunpack.c.l.s4 1966171168
        %v972 = vunpack.c.0.s8 %v971
        %v973 = vlaneseq
        %v974 = vshrl.u32 %v973, 7
        %v975 = vsub.s32 %v972, %v974
        %v976 = vrot.slane %v965, %v975
        %v978 = vunpack.c.l.s4 1966171168
        %v979 = vunpack.c.0.s8 %v978
        %v980 = vlaneseq
        %v981 = vshrl.u32 %v980, 7
        %v982 = vsub.s32 %v979, %v981
        %v983 = vrot.slane %v969, %v982
        %v984 = vcombine.high %v976, %v976
        %v985 = vcombine.high %v983, %v983
        %v987 = vunpack.c.l.s4 1966171168
        %v988 = vunpack.c.0.s8 %v987
        %v989 = vlaneseq
        %v990 = vshrl.u32 %v989, 7
        %v991 = vsub.s32 %v988, %v990
        %v992 = vrot.slane %v976, %v991
        %v994 = vunpack.c.l.s4 1966171168
        %v995 = vunpack.c.0.s8 %v994
        %v996 = vlaneseq
        %v997 = vshrl.u32 %v996, 7
        %v998 = vsub.s32 %v995, %v997
        %v999 = vrot.slane %v983, %v998
        %v1001 = vunpack.c.l.s4 1966171168
        %v1002 = vunpack.c.0.s8 %v1001
        %v1003 = vlaneseq
        %v1004 = vshrl.u32 %v1003, 7
        %v1005 = vsub.s32 %v1002, %v1004
        %v1006 = vrot.slane %v984, %v1005
        %v1008 = vunpack.c.l.s4 1966171168
        %v1009 = vunpack.c.0.s8 %v1008
        %v1010 = vlaneseq
        %v1011 = vshrl.u32 %v1010, 7
        %v1012 = vsub.s32 %v1009, %v1011
        %v1013 = vrot.slane %v985, %v1012
        %v1014 = vcombine.high %v992, %v992
        %v1015 = vcombine.high %v999, %v999
        %v1016 = vcombine.high %v1006, %v1006
        %v1017 = vcombine.high %v1013, %v1013
        %vm1026 = vcmask 122880
        %v1027 = vsel %vm1026, %v992, -inf
        %1028 = vmax.xlane.f32.xlu0 %v1027
        %v1029 = vpop.xlane.xlu0 %1028
        %v1030 = vsel %vm1026, %v1006, -inf
        %1031 = vmax.xlane.f32.xlu0 %v1030
        %v1032 = vpop.xlane.xlu0 %1031
        %v1033 = vsel %vm1026, %v1014, -inf
        %1034 = vmax.xlane.f32.xlu0 %v1033
        %v1035 = vpop.xlane.xlu0 %1034
        %v1036 = vsel %vm1026, %v1016, -inf
        %1037 = vmax.xlane.f32.xlu0 %v1036
        %v1038 = vpop.xlane.xlu0 %1037
        %v1039 = vsel %vm1026, %v999, -inf
        %1040 = vmax.xlane.f32.xlu0 %v1039
        %v1041 = vpop.xlane.xlu0 %1040
        %v1042 = vsel %vm1026, %v1013, -inf
        %1043 = vmax.xlane.f32.xlu0 %v1042
        %v1044 = vpop.xlane.xlu0 %1043
        %v1045 = vsel %vm1026, %v1015, -inf
        %1046 = vmax.xlane.f32.xlu0 %v1045
        %v1047 = vpop.xlane.xlu0 %1046
        %v1048 = vsel %vm1026, %v1017, -inf
        %1049 = vmax.xlane.f32.xlu0 %v1048
        %v1050 = vpop.xlane.xlu0 %1049
        %v1051 = vsub.f32 %v992, %v1029
        %v1052 = vsub.f32 %v1006, %v1032
        %v1053 = vsub.f32 %v1014, %v1035
        %v1054 = vsub.f32 %v1016, %v1038
        %v1055 = vsub.f32 %v999, %v1041
        %v1056 = vsub.f32 %v1013, %v1044
        %v1057 = vsub.f32 %v1015, %v1047
        %v1058 = vsub.f32 %v1017, %v1050
        %v1059 = vmul.f32 %v1051, 1.442695
        %v1060 = vpow.pop %v1059
        %v1061 = vmul.f32 %v1052, 1.442695
        %v1062 = vpow.pop %v1061
        %v1063 = vmul.f32 %v1053, 1.442695
        %v1064 = vpow.pop %v1063
        %v1065 = vmul.f32 %v1054, 1.442695
        %v1066 = vpow.pop %v1065
        %v1067 = vmul.f32 %v1055, 1.442695
        %v1068 = vpow.pop %v1067
        %v1069 = vmul.f32 %v1056, 1.442695
        %v1070 = vpow.pop %v1069
        %v1071 = vmul.f32 %v1057, 1.442695
        %v1072 = vpow.pop %v1071
        %v1073 = vmul.f32 %v1058, 1.442695
        %v1074 = vpow.pop %v1073
        %v1075 = vsel %vm1026, %v1060, 0.0
        %1076 = vadd.xlane.f32.xlu0 %v1075
        %v1077 = vpop.xlane.xlu0 %1076
        %v1078 = vsel %vm1026, %v1062, 0.0
        %1079 = vadd.xlane.f32.xlu0 %v1078
        %v1080 = vpop.xlane.xlu0 %1079
        %v1081 = vsel %vm1026, %v1064, 0.0
        %1082 = vadd.xlane.f32.xlu0 %v1081
        %v1083 = vpop.xlane.xlu0 %1082
        %v1084 = vsel %vm1026, %v1066, 0.0
        %1085 = vadd.xlane.f32.xlu0 %v1084
        %v1086 = vpop.xlane.xlu0 %1085
        %v1087 = vsel %vm1026, %v1068, 0.0
        %1088 = vadd.xlane.f32.xlu0 %v1087
        %v1089 = vpop.xlane.xlu0 %1088
        %v1090 = vsel %vm1026, %v1070, 0.0
        %1091 = vadd.xlane.f32.xlu0 %v1090
        %v1092 = vpop.xlane.xlu0 %1091
        %v1093 = vsel %vm1026, %v1072, 0.0
        %1094 = vadd.xlane.f32.xlu0 %v1093
        %v1095 = vpop.xlane.xlu0 %1094
        %v1096 = vsel %vm1026, %v1074, 0.0
        %1097 = vadd.xlane.f32.xlu0 %v1096
        %v1098 = vpop.xlane.xlu0 %1097
        %v1099 = vrcp.pop %v1077
        %v1100 = vrcp.pop %v1080
        %v1101 = vrcp.pop %v1083
        %v1102 = vrcp.pop %v1086
        %v1103 = vrcp.pop %v1089
        %v1104 = vrcp.pop %v1092
        %v1105 = vrcp.pop %v1095
        %v1106 = vrcp.pop %v1098
        %v1107 = vmul.f32 %v1060, %v1099
        %v1108 = vmul.f32 %v1062, %v1100
        %v1109 = vmul.f32 %v1064, %v1101
        %v1110 = vmul.f32 %v1066, %v1102
        %v1111 = vmul.f32 %v1068, %v1103
        %v1112 = vmul.f32 %v1070, %v1104
        %v1113 = vmul.f32 %v1072, %v1105
        %v1114 = vmul.f32 %v1074, %v1106
        %v1123 = vcombine.low %v1107, %v1108
        %v1124 = vcombine.low %v1109, %v1110
        %v1125 = vcombine.low %v1111, %v1112
        %v1126 = vcombine.low %v1113, %v1114
        %v1128 = vunpack.c.l.s4 1966171168
        %v1129 = vunpack.c.0.s8 %v1128
        %v1130 = vlaneseq
        %v1131 = vshrl.u32 %v1130, 7
        %v1132 = vsub.s32 %v1129, %v1131
        %v1133 = vrot.slane %v1123, %v1132
        %v1135 = vunpack.c.l.s4 1966171168
        %v1136 = vunpack.c.0.s8 %v1135
        %v1137 = vlaneseq
        %v1138 = vshrl.u32 %v1137, 7
        %v1139 = vsub.s32 %v1136, %v1138
        %v1140 = vrot.slane %v1124, %v1139
        %v1142 = vunpack.c.l.s4 1966171168
        %v1143 = vunpack.c.0.s8 %v1142
        %v1144 = vlaneseq
        %v1145 = vshrl.u32 %v1144, 7
        %v1146 = vsub.s32 %v1143, %v1145
        %v1147 = vrot.slane %v1125, %v1146
        %v1149 = vunpack.c.l.s4 1966171168
        %v1150 = vunpack.c.0.s8 %v1149
        %v1151 = vlaneseq
        %v1152 = vshrl.u32 %v1151, 7
        %v1153 = vsub.s32 %v1150, %v1152
        %v1154 = vrot.slane %v1126, %v1153
        %v1155 = vcombine.low %v1133, %v1140
        %v1156 = vcombine.low %v1147, %v1154
        %v1158 = vunpack.c.l.s4 1966171168
        %v1159 = vunpack.c.0.s8 %v1158
        %v1160 = vlaneseq
        %v1161 = vshrl.u32 %v1160, 7
        %v1162 = vsub.s32 %v1159, %v1161
        %v1163 = vrot.slane %v1155, %v1162
        %v1165 = vunpack.c.l.s4 1966171168
        %v1166 = vunpack.c.0.s8 %v1165
        %v1167 = vlaneseq
        %v1168 = vshrl.u32 %v1167, 7
        %v1169 = vsub.s32 %v1166, %v1168
        %v1170 = vrot.slane %v1156, %v1169
        %v1171 = vcombine.low %v1163, %v1170
        %1172 = vrot.lane.b32.xlu0 %v876, 96
        %v1173 = vpop.permute.xlu0 %1172
        %1174 = vrot.lane.b32.xlu0 %v881, 96
        %v1175 = vpop.permute.xlu0 %1174
        %vm1178 = vcmask 130048
        %v1179 = vsel %vm1178, %v1171, 0
        %1181 = vmatprep.subr.mxu0 0.0
        %1182 = vmatpush1.msra.mxu0 %v1173
        %1183 = vmatprep.subr.mxu0 0.0
        %1184 = vmatpush1.msra.mxu0 %v1175
        %1185 = vmatprep.subr.mxu0 0.0
        %1186 = vmatpush1.msra.mxu0 0.0
        %1187 = vmatprep.subr.mxu0 0.0
        %1188 = vmatpush1.msra.mxu0 0.0
        %1189 = vmatprep.subr.mxu0 0.0
        %1190 = vmatpush1.msra.mxu0 0.0
        %1191 = vmatprep.subr.mxu0 0.0
        %1192 = vmatpush1.msra.mxu0 0.0
        %1193 = vmatprep.subr.mxu0 0.0
        %1194 = vmatpush1.msra.mxu0 0.0
        %1195 = vmatprep.subr.mxu0 0.0
        %1196 = vmatpush1.msra.mxu0 0.0
        %1197 = vmatprep.subr.mxu0 0.0
        %1198 = vmatpush1.msra.mxu0 0.0
        %1199 = vmatprep.subr.mxu0 0.0
        %1200 = vmatpush1.msra.mxu0 0.0
        %1201 = vmatprep.subr.mxu0 0.0
        %1202 = vmatpush1.msra.mxu0 0.0
        %1203 = vmatprep.subr.mxu0 0.0
        %1204 = vmatpush1.msra.mxu0 0.0
        %1205 = vmatprep.subr.mxu0 0.0
        %1206 = vmatpush1.msra.mxu0 0.0
        %1207 = vmatprep.subr.mxu0 0.0
        %1208 = vmatpush1.msra.mxu0 0.0
        %1209 = vmatprep.subr.mxu0 0.0
        %1210 = vmatpush1.msra.mxu0 0.0
        %1211 = vmatprep.subr.mxu0 0.0
        %1212 = vmatpush1.msra.mxu0 0.0
        %1213 = vmatprep.subr.mxu0 0.0
        %1214 = vmatpush1.msra.mxu0 0.0
        %1215 = vmatprep.subr.mxu0 0.0
        %1216 = vmatpush1.msra.mxu0 0.0
        %1217 = vmatprep.subr.mxu0 0.0
        %1218 = vmatpush1.msra.mxu0 0.0
        %1219 = vmatprep.subr.mxu0 0.0
        %1220 = vmatpush1.msra.mxu0 0.0
        %1221 = vmatprep.subr.mxu0 0.0
        %1222 = vmatpush1.msra.mxu0 0.0
        %1223 = vmatprep.subr.mxu0 0.0
        %1224 = vmatpush1.msra.mxu0 0.0
        %1225 = vmatprep.subr.mxu0 0.0
        %1226 = vmatpush1.msra.mxu0 0.0
        %1227 = vmatprep.subr.mxu0 0.0
        %1228 = vmatpush1.msra.mxu0 0.0
        %1229 = vmatprep.subr.mxu0 0.0
        %1230 = vmatpush1.msra.mxu0 0.0
        %1231 = vmatprep.subr.mxu0 0.0
        %1232 = vmatpush1.msra.mxu0 0.0
        %1233 = vmatprep.subr.mxu0 0.0
        %1234 = vmatpush1.msra.mxu0 0.0
        %1235 = vmatprep.subr.mxu0 0.0
        %1236 = vmatpush1.msra.mxu0 0.0
        %1237 = vmatprep.subr.mxu0 0.0
        %1238 = vmatpush1.msra.mxu0 0.0
        %1239 = vmatprep.subr.mxu0 0.0
        %1240 = vmatpush1.msra.mxu0 0.0
        %1241 = vmatprep.subr.mxu0 0.0
        %1242 = vmatpush1.msra.mxu0 0.0
        %1243 = vmatprep.subr.mxu0 0.0
        %1244 = vmatpush1.msra.mxu0 0.0
        %1245 = vmatprep.mubr.f32.mxu0 0.0
        %1246 = vmatmul.mubr.f32.gmra.mrb[0].mxu0 %v1179
        %v1247 = vpop.f32.mrb[0].mxu0
        %v1248 = vadd.f32 0.0, %v1247
        %v1249 = vpop.f32.mrb[0].mxu0
        %1250 = vdwg.mxu0
        %1251 = vrot.lane.b32.xlu0 %v876, 120
        %v1252 = vpop.permute.xlu0 %1251
        %1253 = vrot.lane.b32.xlu0 %v881, 120
        %v1254 = vpop.permute.xlu0 %1253
        %v1256 = vsel %vm888, %v885, 0
        %v1258 = vsel %vm888, %v1252, 0
        %v1260 = vsel %vm888, %v1254, 0
        %1262 = vmatprep.subr.mxu0 0.0
        %1263 = vmatpush1.xpose.msra.mxu0 %v1258
        %1264 = vmatprep.subr.mxu0 0.0
        %1265 = vmatpush1.xpose.msra.mxu0 %v1260
        %1266 = vmatprep.subr.mxu0 0.0
        %1267 = vmatpush1.xpose.msra.mxu0 0.0
        %1268 = vmatprep.subr.mxu0 0.0
        %1269 = vmatpush1.xpose.msra.mxu0 0.0
        %1270 = vmatprep.subr.mxu0 0.0
        %1271 = vmatpush1.xpose.msra.mxu0 0.0
        %1272 = vmatprep.subr.mxu0 0.0
        %1273 = vmatpush1.xpose.msra.mxu0 0.0
        %1274 = vmatprep.subr.mxu0 0.0
        %1275 = vmatpush1.xpose.msra.mxu0 0.0
        %1276 = vmatprep.subr.mxu0 0.0
        %1277 = vmatpush1.xpose.msra.mxu0 0.0
        %1278 = vmatprep.subr.mxu0 0.0
        %1279 = vmatpush1.xpose.msra.mxu0 0.0
        %1280 = vmatprep.subr.mxu0 0.0
        %1281 = vmatpush1.xpose.msra.mxu0 0.0
        %1282 = vmatprep.subr.mxu0 0.0
        %1283 = vmatpush1.xpose.msra.mxu0 0.0
        %1284 = vmatprep.subr.mxu0 0.0
        %1285 = vmatpush1.xpose.msra.mxu0 0.0
        %1286 = vmatprep.subr.mxu0 0.0
        %1287 = vmatpush1.xpose.msra.mxu0 0.0
        %1288 = vmatprep.subr.mxu0 0.0
        %1289 = vmatpush1.xpose.msra.mxu0 0.0
        %1290 = vmatprep.subr.mxu0 0.0
        %1291 = vmatpush1.xpose.msra.mxu0 0.0
        %1292 = vmatprep.subr.mxu0 0.0
        %1293 = vmatpush1.xpose.msra.mxu0 0.0
        %1294 = vmatprep.subr.mxu0 0.0
        %1295 = vmatpush1.xpose.msra.mxu0 0.0
        %1296 = vmatprep.subr.mxu0 0.0
        %1297 = vmatpush1.xpose.msra.mxu0 0.0
        %1298 = vmatprep.subr.mxu0 0.0
        %1299 = vmatpush1.xpose.msra.mxu0 0.0
        %1300 = vmatprep.subr.mxu0 0.0
        %1301 = vmatpush1.xpose.msra.mxu0 0.0
        %1302 = vmatprep.subr.mxu0 0.0
        %1303 = vmatpush1.xpose.msra.mxu0 0.0
        %1304 = vmatprep.subr.mxu0 0.0
        %1305 = vmatpush1.xpose.msra.mxu0 0.0
        %1306 = vmatprep.subr.mxu0 0.0
        %1307 = vmatpush1.xpose.msra.mxu0 0.0
        %1308 = vmatprep.subr.mxu0 0.0
        %1309 = vmatpush1.xpose.msra.mxu0 0.0
        %1310 = vmatprep.subr.mxu0 0.0
        %1311 = vmatpush1.xpose.msra.mxu0 0.0
        %1312 = vmatprep.subr.mxu0 0.0
        %1313 = vmatpush1.xpose.msra.mxu0 0.0
        %1314 = vmatprep.subr.mxu0 0.0
        %1315 = vmatpush1.xpose.msra.mxu0 0.0
        %1316 = vmatprep.subr.mxu0 0.0
        %1317 = vmatpush1.xpose.msra.mxu0 0.0
        %1318 = vmatprep.subr.mxu0 0.0
        %1319 = vmatpush1.xpose.msra.mxu0 0.0
        %1320 = vmatprep.subr.mxu0 0.0
        %1321 = vmatpush1.xpose.msra.mxu0 0.0
        %1322 = vmatprep.subr.mxu0 0.0
        %1323 = vmatpush1.xpose.msra.mxu0 0.0
        %1324 = vmatprep.subr.mxu0 0.0
        %1325 = vmatpush1.xpose.msra.mxu0 0.0
        %1326 = vmatprep.mubr.f32.mxu0 0.0
        %1327 = vmatmul.mubr.f32.gmra.mrb[0].mxu0 %v1256
        %v1328 = vpop.f32.mrb[0].mxu0
        %v1329 = vadd.f32 0.0, %v1328
        %v1330 = vpop.f32.mrb[0].mxu0
        %1331 = vdwg.mxu0
        %v1333 = vcombine.high %v1329, %v1329
        %v1335 = vunpack.c.l.s4 1966171168
        %v1336 = vunpack.c.0.s8 %v1335
        %v1337 = vlaneseq
        %v1338 = vshrl.u32 %v1337, 7
        %v1339 = vsub.s32 %v1336, %v1338
        %v1340 = vrot.slane %v1329, %v1339
        %v1342 = vunpack.c.l.s4 1966171168
        %v1343 = vunpack.c.0.s8 %v1342
        %v1344 = vlaneseq
        %v1345 = vshrl.u32 %v1344, 7
        %v1346 = vsub.s32 %v1343, %v1345
        %v1347 = vrot.slane %v1333, %v1346
        %v1348 = vcombine.high %v1340, %v1340
        %v1349 = vcombine.high %v1347, %v1347
        %v1351 = vunpack.c.l.s4 1966171168
        %v1352 = vunpack.c.0.s8 %v1351
        %v1353 = vlaneseq
        %v1354 = vshrl.u32 %v1353, 7
        %v1355 = vsub.s32 %v1352, %v1354
        %v1356 = vrot.slane %v1340, %v1355
        %v1358 = vunpack.c.l.s4 1966171168
        %v1359 = vunpack.c.0.s8 %v1358
        %v1360 = vlaneseq
        %v1361 = vshrl.u32 %v1360, 7
        %v1362 = vsub.s32 %v1359, %v1361
        %v1363 = vrot.slane %v1347, %v1362
        %v1365 = vunpack.c.l.s4 1966171168
        %v1366 = vunpack.c.0.s8 %v1365
        %v1367 = vlaneseq
        %v1368 = vshrl.u32 %v1367, 7
        %v1369 = vsub.s32 %v1366, %v1368
        %v1370 = vrot.slane %v1348, %v1369
        %v1372 = vunpack.c.l.s4 1966171168
        %v1373 = vunpack.c.0.s8 %v1372
        %v1374 = vlaneseq
        %v1375 = vshrl.u32 %v1374, 7
        %v1376 = vsub.s32 %v1373, %v1375
        %v1377 = vrot.slane %v1349, %v1376
        %v1378 = vcombine.high %v1356, %v1356
        %v1379 = vcombine.high %v1363, %v1363
        %v1380 = vcombine.high %v1370, %v1370
        %v1381 = vcombine.high %v1377, %v1377
        %v1390 = vsel %vm1026, %v1356, -inf
        %1391 = vmax.xlane.f32.xlu0 %v1390
        %v1392 = vpop.xlane.xlu0 %1391
        %v1393 = vsel %vm1026, %v1370, -inf
        %1394 = vmax.xlane.f32.xlu0 %v1393
        %v1395 = vpop.xlane.xlu0 %1394
        %v1396 = vsel %vm1026, %v1378, -inf
        %1397 = vmax.xlane.f32.xlu0 %v1396
        %v1398 = vpop.xlane.xlu0 %1397
        %v1399 = vsel %vm1026, %v1380, -inf
        %1400 = vmax.xlane.f32.xlu0 %v1399
        %v1401 = vpop.xlane.xlu0 %1400
        %v1402 = vsel %vm1026, %v1363, -inf
        %1403 = vmax.xlane.f32.xlu0 %v1402
        %v1404 = vpop.xlane.xlu0 %1403
        %v1405 = vsel %vm1026, %v1377, -inf
        %1406 = vmax.xlane.f32.xlu0 %v1405
        %v1407 = vpop.xlane.xlu0 %1406
        %v1408 = vsel %vm1026, %v1379, -inf
        %1409 = vmax.xlane.f32.xlu0 %v1408
        %v1410 = vpop.xlane.xlu0 %1409
        %v1411 = vsel %vm1026, %v1381, -inf
        %1412 = vmax.xlane.f32.xlu0 %v1411
        %v1413 = vpop.xlane.xlu0 %1412
        %v1414 = vsub.f32 %v1356, %v1392
        %v1415 = vsub.f32 %v1370, %v1395
        %v1416 = vsub.f32 %v1378, %v1398
        %v1417 = vsub.f32 %v1380, %v1401
        %v1418 = vsub.f32 %v1363, %v1404
        %v1419 = vsub.f32 %v1377, %v1407
        %v1420 = vsub.f32 %v1379, %v1410
        %v1421 = vsub.f32 %v1381, %v1413
        %v1422 = vmul.f32 %v1414, 1.442695
        %v1423 = vpow.pop %v1422
        %v1424 = vmul.f32 %v1415, 1.442695
        %v1425 = vpow.pop %v1424
        %v1426 = vmul.f32 %v1416, 1.442695
        %v1427 = vpow.pop %v1426
        %v1428 = vmul.f32 %v1417, 1.442695
        %v1429 = vpow.pop %v1428
        %v1430 = vmul.f32 %v1418, 1.442695
        %v1431 = vpow.pop %v1430
        %v1432 = vmul.f32 %v1419, 1.442695
        %v1433 = vpow.pop %v1432
        %v1434 = vmul.f32 %v1420, 1.442695
        %v1435 = vpow.pop %v1434
        %v1436 = vmul.f32 %v1421, 1.442695
        %v1437 = vpow.pop %v1436
        %v1438 = vsel %vm1026, %v1423, 0.0
        %1439 = vadd.xlane.f32.xlu0 %v1438
        %v1440 = vpop.xlane.xlu0 %1439
        %v1441 = vsel %vm1026, %v1425, 0.0
        %1442 = vadd.xlane.f32.xlu0 %v1441
        %v1443 = vpop.xlane.xlu0 %1442
        %v1444 = vsel %vm1026, %v1427, 0.0
        %1445 = vadd.xlane.f32.xlu0 %v1444
        %v1446 = vpop.xlane.xlu0 %1445
        %v1447 = vsel %vm1026, %v1429, 0.0
        %1448 = vadd.xlane.f32.xlu0 %v1447
        %v1449 = vpop.xlane.xlu0 %1448
        %v1450 = vsel %vm1026, %v1431, 0.0
        %1451 = vadd.xlane.f32.xlu0 %v1450
        %v1452 = vpop.xlane.xlu0 %1451
        %v1453 = vsel %vm1026, %v1433, 0.0
        %1454 = vadd.xlane.f32.xlu0 %v1453
        %v1455 = vpop.xlane.xlu0 %1454
        %v1456 = vsel %vm1026, %v1435, 0.0
        %1457 = vadd.xlane.f32.xlu0 %v1456
        %v1458 = vpop.xlane.xlu0 %1457
        %v1459 = vsel %vm1026, %v1437, 0.0
        %1460 = vadd.xlane.f32.xlu0 %v1459
        %v1461 = vpop.xlane.xlu0 %1460
        %v1462 = vrcp.pop %v1440
        %v1463 = vrcp.pop %v1443
        %v1464 = vrcp.pop %v1446
        %v1465 = vrcp.pop %v1449
        %v1466 = vrcp.pop %v1452
        %v1467 = vrcp.pop %v1455
        %v1468 = vrcp.pop %v1458
        %v1469 = vrcp.pop %v1461
        %v1470 = vmul.f32 %v1423, %v1462
        %v1471 = vmul.f32 %v1425, %v1463
        %v1472 = vmul.f32 %v1427, %v1464
        %v1473 = vmul.f32 %v1429, %v1465
        %v1474 = vmul.f32 %v1431, %v1466
        %v1475 = vmul.f32 %v1433, %v1467
        %v1476 = vmul.f32 %v1435, %v1468
        %v1477 = vmul.f32 %v1437, %v1469
        %v1486 = vcombine.low %v1470, %v1471
        %v1487 = vcombine.low %v1472, %v1473
        %v1488 = vcombine.low %v1474, %v1475
        %v1489 = vcombine.low %v1476, %v1477
        %v1491 = vunpack.c.l.s4 1966171168
        %v1492 = vunpack.c.0.s8 %v1491
        %v1493 = vlaneseq
        %v1494 = vshrl.u32 %v1493, 7
        %v1495 = vsub.s32 %v1492, %v1494
        %v1496 = vrot.slane %v1486, %v1495
        %v1498 = vunpack.c.l.s4 1966171168
        %v1499 = vunpack.c.0.s8 %v1498
        %v1500 = vlaneseq
        %v1501 = vshrl.u32 %v1500, 7
        %v1502 = vsub.s32 %v1499, %v1501
        %v1503 = vrot.slane %v1487, %v1502
        %v1505 = vunpack.c.l.s4 1966171168
        %v1506 = vunpack.c.0.s8 %v1505
        %v1507 = vlaneseq
        %v1508 = vshrl.u32 %v1507, 7
        %v1509 = vsub.s32 %v1506, %v1508
        %v1510 = vrot.slane %v1488, %v1509
        %v1512 = vunpack.c.l.s4 1966171168
        %v1513 = vunpack.c.0.s8 %v1512
        %v1514 = vlaneseq
        %v1515 = vshrl.u32 %v1514, 7
        %v1516 = vsub.s32 %v1513, %v1515
        %v1517 = vrot.slane %v1489, %v1516
        %v1518 = vcombine.low %v1496, %v1503
        %v1519 = vcombine.low %v1510, %v1517
        %v1521 = vunpack.c.l.s4 1966171168
        %v1522 = vunpack.c.0.s8 %v1521
        %v1523 = vlaneseq
        %v1524 = vshrl.u32 %v1523, 7
        %v1525 = vsub.s32 %v1522, %v1524
        %v1526 = vrot.slane %v1518, %v1525
        %v1528 = vunpack.c.l.s4 1966171168
        %v1529 = vunpack.c.0.s8 %v1528
        %v1530 = vlaneseq
        %v1531 = vshrl.u32 %v1530, 7
        %v1532 = vsub.s32 %v1529, %v1531
        %v1533 = vrot.slane %v1519, %v1532
        %v1534 = vcombine.low %v1526, %v1533
        %1535 = vrot.lane.b32.xlu0 %v876, 88
        %v1536 = vpop.permute.xlu0 %1535
        %1537 = vrot.lane.b32.xlu0 %v881, 88
        %v1538 = vpop.permute.xlu0 %1537
        %v1541 = vsel %vm1178, %v1534, 0
        %1543 = vmatprep.subr.mxu0 0.0
        %1544 = vmatpush1.msra.mxu0 %v1536
        %1545 = vmatprep.subr.mxu0 0.0
        %1546 = vmatpush1.msra.mxu0 %v1538
        %1547 = vmatprep.subr.mxu0 0.0
        %1548 = vmatpush1.msra.mxu0 0.0
        %1549 = vmatprep.subr.mxu0 0.0
        %1550 = vmatpush1.msra.mxu0 0.0
        %1551 = vmatprep.subr.mxu0 0.0
        %1552 = vmatpush1.msra.mxu0 0.0
        %1553 = vmatprep.subr.mxu0 0.0
        %1554 = vmatpush1.msra.mxu0 0.0
        %1555 = vmatprep.subr.mxu0 0.0
        %1556 = vmatpush1.msra.mxu0 0.0
        %1557 = vmatprep.subr.mxu0 0.0
        %1558 = vmatpush1.msra.mxu0 0.0
        %1559 = vmatprep.subr.mxu0 0.0
        %1560 = vmatpush1.msra.mxu0 0.0
        %1561 = vmatprep.subr.mxu0 0.0
        %1562 = vmatpush1.msra.mxu0 0.0
        %1563 = vmatprep.subr.mxu0 0.0
        %1564 = vmatpush1.msra.mxu0 0.0
        %1565 = vmatprep.subr.mxu0 0.0
        %1566 = vmatpush1.msra.mxu0 0.0
        %1567 = vmatprep.subr.mxu0 0.0
        %1568 = vmatpush1.msra.mxu0 0.0
        %1569 = vmatprep.subr.mxu0 0.0
        %1570 = vmatpush1.msra.mxu0 0.0
        %1571 = vmatprep.subr.mxu0 0.0
        %1572 = vmatpush1.msra.mxu0 0.0
        %1573 = vmatprep.subr.mxu0 0.0
        %1574 = vmatpush1.msra.mxu0 0.0
        %1575 = vmatprep.subr.mxu0 0.0
        %1576 = vmatpush1.msra.mxu0 0.0
        %1577 = vmatprep.subr.mxu0 0.0
        %1578 = vmatpush1.msra.mxu0 0.0
        %1579 = vmatprep.subr.mxu0 0.0
        %1580 = vmatpush1.msra.mxu0 0.0
        %1581 = vmatprep.subr.mxu0 0.0
        %1582 = vmatpush1.msra.mxu0 0.0
        %1583 = vmatprep.subr.mxu0 0.0
        %1584 = vmatpush1.msra.mxu0 0.0
        %1585 = vmatprep.subr.mxu0 0.0
        %1586 = vmatpush1.msra.mxu0 0.0
        %1587 = vmatprep.subr.mxu0 0.0
        %1588 = vmatpush1.msra.mxu0 0.0
        %1589 = vmatprep.subr.mxu0 0.0
        %1590 = vmatpush1.msra.mxu0 0.0
        %1591 = vmatprep.subr.mxu0 0.0
        %1592 = vmatpush1.msra.mxu0 0.0
        %1593 = vmatprep.subr.mxu0 0.0
        %1594 = vmatpush1.msra.mxu0 0.0
        %1595 = vmatprep.subr.mxu0 0.0
        %1596 = vmatpush1.msra.mxu0 0.0
        %1597 = vmatprep.subr.mxu0 0.0
        %1598 = vmatpush1.msra.mxu0 0.0
        %1599 = vmatprep.subr.mxu0 0.0
        %1600 = vmatpush1.msra.mxu0 0.0
        %1601 = vmatprep.subr.mxu0 0.0
        %1602 = vmatpush1.msra.mxu0 0.0
        %1603 = vmatprep.subr.mxu0 0.0
        %1604 = vmatpush1.msra.mxu0 0.0
        %1605 = vmatprep.subr.mxu0 0.0
        %1606 = vmatpush1.msra.mxu0 0.0
        %1607 = vmatprep.mubr.f32.mxu0 0.0
        %1608 = vmatmul.mubr.f32.gmra.mrb[0].mxu0 %v1541
        %v1609 = vpop.f32.mrb[0].mxu0
        %v1610 = vadd.f32 0.0, %v1609
        %v1611 = vpop.f32.mrb[0].mxu0
        %1612 = vdwg.mxu0
        %1613 = vrot.lane.b32.xlu0 %v876, 112
        %v1614 = vpop.permute.xlu0 %1613
        %1615 = vrot.lane.b32.xlu0 %v881, 112
        %v1616 = vpop.permute.xlu0 %1615
        %v1618 = vsel %vm888, %v886, 0
        %v1620 = vsel %vm888, %v1614, 0
        %v1622 = vsel %vm888, %v1616, 0
        %1624 = vmatprep.subr.mxu0 0.0
        %1625 = vmatpush1.xpose.msra.mxu0 %v1620
        %1626 = vmatprep.subr.mxu0 0.0
        %1627 = vmatpush1.xpose.msra.mxu0 %v1622
        %1628 = vmatprep.subr.mxu0 0.0
        %1629 = vmatpush1.xpose.msra.mxu0 0.0
        %1630 = vmatprep.subr.mxu0 0.0
        %1631 = vmatpush1.xpose.msra.mxu0 0.0
        %1632 = vmatprep.subr.mxu0 0.0
        %1633 = vmatpush1.xpose.msra.mxu0 0.0
        %1634 = vmatprep.subr.mxu0 0.0
        %1635 = vmatpush1.xpose.msra.mxu0 0.0
        %1636 = vmatprep.subr.mxu0 0.0
        %1637 = vmatpush1.xpose.msra.mxu0 0.0
        %1638 = vmatprep.subr.mxu0 0.0
        %1639 = vmatpush1.xpose.msra.mxu0 0.0
        %1640 = vmatprep.subr.mxu0 0.0
        %1641 = vmatpush1.xpose.msra.mxu0 0.0
        %1642 = vmatprep.subr.mxu0 0.0
        %1643 = vmatpush1.xpose.msra.mxu0 0.0
        %1644 = vmatprep.subr.mxu0 0.0
        %1645 = vmatpush1.xpose.msra.mxu0 0.0
        %1646 = vmatprep.subr.mxu0 0.0
        %1647 = vmatpush1.xpose.msra.mxu0 0.0
        %1648 = vmatprep.subr.mxu0 0.0
        %1649 = vmatpush1.xpose.msra.mxu0 0.0
        %1650 = vmatprep.subr.mxu0 0.0
        %1651 = vmatpush1.xpose.msra.mxu0 0.0
        %1652 = vmatprep.subr.mxu0 0.0
        %1653 = vmatpush1.xpose.msra.mxu0 0.0
        %1654 = vmatprep.subr.mxu0 0.0
        %1655 = vmatpush1.xpose.msra.mxu0 0.0
        %1656 = vmatprep.subr.mxu0 0.0
        %1657 = vmatpush1.xpose.msra.mxu0 0.0
        %1658 = vmatprep.subr.mxu0 0.0
        %1659 = vmatpush1.xpose.msra.mxu0 0.0
        %1660 = vmatprep.subr.mxu0 0.0
        %1661 = vmatpush1.xpose.msra.mxu0 0.0
        %1662 = vmatprep.subr.mxu0 0.0
        %1663 = vmatpush1.xpose.msra.mxu0 0.0
        %1664 = vmatprep.subr.mxu0 0.0
        %1665 = vmatpush1.xpose.msra.mxu0 0.0
        %1666 = vmatprep.subr.mxu0 0.0
        %1667 = vmatpush1.xpose.msra.mxu0 0.0
        %1668 = vmatprep.subr.mxu0 0.0
        %1669 = vmatpush1.xpose.msra.mxu0 0.0
        %1670 = vmatprep.subr.mxu0 0.0
        %1671 = vmatpush1.xpose.msra.mxu0 0.0
        %1672 = vmatprep.subr.mxu0 0.0
        %1673 = vmatpush1.xpose.msra.mxu0 0.0
        %1674 = vmatprep.subr.mxu0 0.0
        %1675 = vmatpush1.xpose.msra.mxu0 0.0
        %1676 = vmatprep.subr.mxu0 0.0
        %1677 = vmatpush1.xpose.msra.mxu0 0.0
        %1678 = vmatprep.subr.mxu0 0.0
        %1679 = vmatpush1.xpose.msra.mxu0 0.0
        %1680 = vmatprep.subr.mxu0 0.0
        %1681 = vmatpush1.xpose.msra.mxu0 0.0
        %1682 = vmatprep.subr.mxu0 0.0
        %1683 = vmatpush1.xpose.msra.mxu0 0.0
        %1684 = vmatprep.subr.mxu0 0.0
        %1685 = vmatpush1.xpose.msra.mxu0 0.0
        %1686 = vmatprep.subr.mxu0 0.0
        %1687 = vmatpush1.xpose.msra.mxu0 0.0
        %1688 = vmatprep.mubr.f32.mxu0 0.0
        %1689 = vmatmul.mubr.f32.gmra.mrb[0].mxu0 %v1618
        %v1690 = vpop.f32.mrb[0].mxu0
        %v1691 = vadd.f32 0.0, %v1690
        %v1692 = vpop.f32.mrb[0].mxu0
        %1693 = vdwg.mxu0
        %v1695 = vcombine.high %v1691, %v1691
        %v1697 = vunpack.c.l.s4 1966171168
        %v1698 = vunpack.c.0.s8 %v1697
        %v1699 = vlaneseq
        %v1700 = vshrl.u32 %v1699, 7
        %v1701 = vsub.s32 %v1698, %v1700
        %v1702 = vrot.slane %v1691, %v1701
        %v1704 = vunpack.c.l.s4 1966171168
        %v1705 = vunpack.c.0.s8 %v1704
        %v1706 = vlaneseq
        %v1707 = vshrl.u32 %v1706, 7
        %v1708 = vsub.s32 %v1705, %v1707
        %v1709 = vrot.slane %v1695, %v1708
        %v1710 = vcombine.high %v1702, %v1702
        %v1711 = vcombine.high %v1709, %v1709
        %v1713 = vunpack.c.l.s4 1966171168
        %v1714 = vunpack.c.0.s8 %v1713
        %v1715 = vlaneseq
        %v1716 = vshrl.u32 %v1715, 7
        %v1717 = vsub.s32 %v1714, %v1716
        %v1718 = vrot.slane %v1702, %v1717
        %v1720 = vunpack.c.l.s4 1966171168
        %v1721 = vunpack.c.0.s8 %v1720
        %v1722 = vlaneseq
        %v1723 = vshrl.u32 %v1722, 7
        %v1724 = vsub.s32 %v1721, %v1723
        %v1725 = vrot.slane %v1709, %v1724
        %v1727 = vunpack.c.l.s4 1966171168
        %v1728 = vunpack.c.0.s8 %v1727
        %v1729 = vlaneseq
        %v1730 = vshrl.u32 %v1729, 7
        %v1731 = vsub.s32 %v1728, %v1730
        %v1732 = vrot.slane %v1710, %v1731
        %v1734 = vunpack.c.l.s4 1966171168
        %v1735 = vunpack.c.0.s8 %v1734
        %v1736 = vlaneseq
        %v1737 = vshrl.u32 %v1736, 7
        %v1738 = vsub.s32 %v1735, %v1737
        %v1739 = vrot.slane %v1711, %v1738
        %v1740 = vcombine.high %v1718, %v1718
        %v1741 = vcombine.high %v1725, %v1725
        %v1742 = vcombine.high %v1732, %v1732
        %v1743 = vcombine.high %v1739, %v1739
        %v1752 = vsel %vm1026, %v1718, -inf
        %1753 = vmax.xlane.f32.xlu0 %v1752
        %v1754 = vpop.xlane.xlu0 %1753
        %v1755 = vsel %vm1026, %v1732, -inf
        %1756 = vmax.xlane.f32.xlu0 %v1755
        %v1757 = vpop.xlane.xlu0 %1756
        %v1758 = vsel %vm1026, %v1740, -inf
        %1759 = vmax.xlane.f32.xlu0 %v1758
        %v1760 = vpop.xlane.xlu0 %1759
        %v1761 = vsel %vm1026, %v1742, -inf
        %1762 = vmax.xlane.f32.xlu0 %v1761
        %v1763 = vpop.xlane.xlu0 %1762
        %v1764 = vsel %vm1026, %v1725, -inf
        %1765 = vmax.xlane.f32.xlu0 %v1764
        %v1766 = vpop.xlane.xlu0 %1765
        %v1767 = vsel %vm1026, %v1739, -inf
        %1768 = vmax.xlane.f32.xlu0 %v1767
        %v1769 = vpop.xlane.xlu0 %1768
        %v1770 = vsel %vm1026, %v1741, -inf
        %1771 = vmax.xlane.f32.xlu0 %v1770
        %v1772 = vpop.xlane.xlu0 %1771
        %v1773 = vsel %vm1026, %v1743, -inf
        %1774 = vmax.xlane.f32.xlu0 %v1773
        %v1775 = vpop.xlane.xlu0 %1774
        %v1776 = vsub.f32 %v1718, %v1754
        %v1777 = vsub.f32 %v1732, %v1757
        %v1778 = vsub.f32 %v1740, %v1760
        %v1779 = vsub.f32 %v1742, %v1763
        %v1780 = vsub.f32 %v1725, %v1766
        %v1781 = vsub.f32 %v1739, %v1769
        %v1782 = vsub.f32 %v1741, %v1772
        %v1783 = vsub.f32 %v1743, %v1775
        %v1784 = vmul.f32 %v1776, 1.442695
        %v1785 = vpow.pop %v1784
        %v1786 = vmul.f32 %v1777, 1.442695
        %v1787 = vpow.pop %v1786
        %v1788 = vmul.f32 %v1778, 1.442695
        %v1789 = vpow.pop %v1788
        %v1790 = vmul.f32 %v1779, 1.442695
        %v1791 = vpow.pop %v1790
        %v1792 = vmul.f32 %v1780, 1.442695
        %v1793 = vpow.pop %v1792
        %v1794 = vmul.f32 %v1781, 1.442695
        %v1795 = vpow.pop %v1794
        %v1796 = vmul.f32 %v1782, 1.442695
        %v1797 = vpow.pop %v1796
        %v1798 = vmul.f32 %v1783, 1.442695
        %v1799 = vpow.pop %v1798
        %v1800 = vsel %vm1026, %v1785, 0.0
        %1801 = vadd.xlane.f32.xlu0 %v1800
        %v1802 = vpop.xlane.xlu0 %1801
        %v1803 = vsel %vm1026, %v1787, 0.0
        %1804 = vadd.xlane.f32.xlu0 %v1803
        %v1805 = vpop.xlane.xlu0 %1804
        %v1806 = vsel %vm1026, %v1789, 0.0
        %1807 = vadd.xlane.f32.xlu0 %v1806
        %v1808 = vpop.xlane.xlu0 %1807
        %v1809 = vsel %vm1026, %v1791, 0.0
        %1810 = vadd.xlane.f32.xlu0 %v1809
        %v1811 = vpop.xlane.xlu0 %1810
        %v1812 = vsel %vm1026, %v1793, 0.0
        %1813 = vadd.xlane.f32.xlu0 %v1812
        %v1814 = vpop.xlane.xlu0 %1813
        %v1815 = vsel %vm1026, %v1795, 0.0
        %1816 = vadd.xlane.f32.xlu0 %v1815
        %v1817 = vpop.xlane.xlu0 %1816
        %v1818 = vsel %vm1026, %v1797, 0.0
        %1819 = vadd.xlane.f32.xlu0 %v1818
        %v1820 = vpop.xlane.xlu0 %1819
        %v1821 = vsel %vm1026, %v1799, 0.0
        %1822 = vadd.xlane.f32.xlu0 %v1821
        %v1823 = vpop.xlane.xlu0 %1822
        %v1824 = vrcp.pop %v1802
        %v1825 = vrcp.pop %v1805
        %v1826 = vrcp.pop %v1808
        %v1827 = vrcp.pop %v1811
        %v1828 = vrcp.pop %v1814
        %v1829 = vrcp.pop %v1817
        %v1830 = vrcp.pop %v1820
        %v1831 = vrcp.pop %v1823
        %v1832 = vmul.f32 %v1785, %v1824
        %v1833 = vmul.f32 %v1787, %v1825
        %v1834 = vmul.f32 %v1789, %v1826
        %v1835 = vmul.f32 %v1791, %v1827
        %v1836 = vmul.f32 %v1793, %v1828
        %v1837 = vmul.f32 %v1795, %v1829
        %v1838 = vmul.f32 %v1797, %v1830
        %v1839 = vmul.f32 %v1799, %v1831
        %v1848 = vcombine.low %v1832, %v1833
        %v1849 = vcombine.low %v1834, %v1835
        %v1850 = vcombine.low %v1836, %v1837
        %v1851 = vcombine.low %v1838, %v1839
        %v1853 = vunpack.c.l.s4 1966171168
        %v1854 = vunpack.c.0.s8 %v1853
        %v1855 = vlaneseq
        %v1856 = vshrl.u32 %v1855, 7
        %v1857 = vsub.s32 %v1854, %v1856
        %v1858 = vrot.slane %v1848, %v1857
        %v1860 = vunpack.c.l.s4 1966171168
        %v1861 = vunpack.c.0.s8 %v1860
        %v1862 = vlaneseq
        %v1863 = vshrl.u32 %v1862, 7
        %v1864 = vsub.s32 %v1861, %v1863
        %v1865 = vrot.slane %v1849, %v1864
        %v1867 = vunpack.c.l.s4 1966171168
        %v1868 = vunpack.c.0.s8 %v1867
        %v1869 = vlaneseq
        %v1870 = vshrl.u32 %v1869, 7
        %v1871 = vsub.s32 %v1868, %v1870
        %v1872 = vrot.slane %v1850, %v1871
        %v1874 = vunpack.c.l.s4 1966171168
        %v1875 = vunpack.c.0.s8 %v1874
        %v1876 = vlaneseq
        %v1877 = vshrl.u32 %v1876, 7
        %v1878 = vsub.s32 %v1875, %v1877
        %v1879 = vrot.slane %v1851, %v1878
        %v1880 = vcombine.low %v1858, %v1865
        %v1881 = vcombine.low %v1872, %v1879
        %v1883 = vunpack.c.l.s4 1966171168
        %v1884 = vunpack.c.0.s8 %v1883
        %v1885 = vlaneseq
        %v1886 = vshrl.u32 %v1885, 7
        %v1887 = vsub.s32 %v1884, %v1886
        %v1888 = vrot.slane %v1880, %v1887
        %v1890 = vunpack.c.l.s4 1966171168
        %v1891 = vunpack.c.0.s8 %v1890
        %v1892 = vlaneseq
        %v1893 = vshrl.u32 %v1892, 7
        %v1894 = vsub.s32 %v1891, %v1893
        %v1895 = vrot.slane %v1881, %v1894
        %v1896 = vcombine.low %v1888, %v1895
        %1897 = vrot.lane.b32.xlu0 %v876, 80
        %v1898 = vpop.permute.xlu0 %1897
        %1899 = vrot.lane.b32.xlu0 %v881, 80
        %v1900 = vpop.permute.xlu0 %1899
        %v1903 = vsel %vm1178, %v1896, 0
        %1905 = vmatprep.subr.mxu0 0.0
        %1906 = vmatpush1.msra.mxu0 %v1898
        %1907 = vmatprep.subr.mxu0 0.0
        %1908 = vmatpush1.msra.mxu0 %v1900
        %1909 = vmatprep.subr.mxu0 0.0
        %1910 = vmatpush1.msra.mxu0 0.0
        %1911 = vmatprep.subr.mxu0 0.0
        %1912 = vmatpush1.msra.mxu0 0.0
        %1913 = vmatprep.subr.mxu0 0.0
        %1914 = vmatpush1.msra.mxu0 0.0
        %1915 = vmatprep.subr.mxu0 0.0
        %1916 = vmatpush1.msra.mxu0 0.0
        %1917 = vmatprep.subr.mxu0 0.0
        %1918 = vmatpush1.msra.mxu0 0.0
        %1919 = vmatprep.subr.mxu0 0.0
        %1920 = vmatpush1.msra.mxu0 0.0
        %1921 = vmatprep.subr.mxu0 0.0
        %1922 = vmatpush1.msra.mxu0 0.0
        %1923 = vmatprep.subr.mxu0 0.0
        %1924 = vmatpush1.msra.mxu0 0.0
        %1925 = vmatprep.subr.mxu0 0.0
        %1926 = vmatpush1.msra.mxu0 0.0
        %1927 = vmatprep.subr.mxu0 0.0
        %1928 = vmatpush1.msra.mxu0 0.0
        %1929 = vmatprep.subr.mxu0 0.0
        %1930 = vmatpush1.msra.mxu0 0.0
        %1931 = vmatprep.subr.mxu0 0.0
        %1932 = vmatpush1.msra.mxu0 0.0
        %1933 = vmatprep.subr.mxu0 0.0
        %1934 = vmatpush1.msra.mxu0 0.0
        %1935 = vmatprep.subr.mxu0 0.0
        %1936 = vmatpush1.msra.mxu0 0.0
        %1937 = vmatprep.subr.mxu0 0.0
        %1938 = vmatpush1.msra.mxu0 0.0
        %1939 = vmatprep.subr.mxu0 0.0
        %1940 = vmatpush1.msra.mxu0 0.0
        %1941 = vmatprep.subr.mxu0 0.0
        %1942 = vmatpush1.msra.mxu0 0.0
        %1943 = vmatprep.subr.mxu0 0.0
        %1944 = vmatpush1.msra.mxu0 0.0
        %1945 = vmatprep.subr.mxu0 0.0
        %1946 = vmatpush1.msra.mxu0 0.0
        %1947 = vmatprep.subr.mxu0 0.0
        %1948 = vmatpush1.msra.mxu0 0.0
        %1949 = vmatprep.subr.mxu0 0.0
        %1950 = vmatpush1.msra.mxu0 0.0
        %1951 = vmatprep.subr.mxu0 0.0
        %1952 = vmatpush1.msra.mxu0 0.0
        %1953 = vmatprep.subr.mxu0 0.0
        %1954 = vmatpush1.msra.mxu0 0.0
        %1955 = vmatprep.subr.mxu0 0.0
        %1956 = vmatpush1.msra.mxu0 0.0
        %1957 = vmatprep.subr.mxu0 0.0
        %1958 = vmatpush1.msra.mxu0 0.0
        %1959 = vmatprep.subr.mxu0 0.0
        %1960 = vmatpush1.msra.mxu0 0.0
        %1961 = vmatprep.subr.mxu0 0.0
        %1962 = vmatpush1.msra.mxu0 0.0
        %1963 = vmatprep.subr.mxu0 0.0
        %1964 = vmatpush1.msra.mxu0 0.0
        %1965 = vmatprep.subr.mxu0 0.0
        %1966 = vmatpush1.msra.mxu0 0.0
        %1967 = vmatprep.subr.mxu0 0.0
        %1968 = vmatpush1.msra.mxu0 0.0
        %1969 = vmatprep.mubr.f32.mxu0 0.0
        %1970 = vmatmul.mubr.f32.gmra.mrb[0].mxu0 %v1903
        %v1971 = vpop.f32.mrb[0].mxu0
        %v1972 = vadd.f32 0.0, %v1971
        %v1973 = vpop.f32.mrb[0].mxu0
        %1974 = vdwg.mxu0
        %1975 = vrot.lane.b32.xlu0 %v876, 104
        %v1976 = vpop.permute.xlu0 %1975
        %1977 = vrot.lane.b32.xlu0 %v881, 104
        %v1978 = vpop.permute.xlu0 %1977
        %v1980 = vsel %vm888, %v887, 0
        %v1982 = vsel %vm888, %v1976, 0
        %v1984 = vsel %vm888, %v1978, 0
        %1986 = vmatprep.subr.mxu0 0.0
        %1987 = vmatpush1.xpose.msra.mxu0 %v1982
        %1988 = vmatprep.subr.mxu0 0.0
        %1989 = vmatpush1.xpose.msra.mxu0 %v1984
        %1990 = vmatprep.subr.mxu0 0.0
        %1991 = vmatpush1.xpose.msra.mxu0 0.0
        %1992 = vmatprep.subr.mxu0 0.0
        %1993 = vmatpush1.xpose.msra.mxu0 0.0
        %1994 = vmatprep.subr.mxu0 0.0
        %1995 = vmatpush1.xpose.msra.mxu0 0.0
        %1996 = vmatprep.subr.mxu0 0.0
        %1997 = vmatpush1.xpose.msra.mxu0 0.0
        %1998 = vmatprep.subr.mxu0 0.0
        %1999 = vmatpush1.xpose.msra.mxu0 0.0
        %2000 = vmatprep.subr.mxu0 0.0
        %2001 = vmatpush1.xpose.msra.mxu0 0.0
        %2002 = vmatprep.subr.mxu0 0.0
        %2003 = vmatpush1.xpose.msra.mxu0 0.0
        %2004 = vmatprep.subr.mxu0 0.0
        %2005 = vmatpush1.xpose.msra.mxu0 0.0
        %2006 = vmatprep.subr.mxu0 0.0
        %2007 = vmatpush1.xpose.msra.mxu0 0.0
        %2008 = vmatprep.subr.mxu0 0.0
        %2009 = vmatpush1.xpose.msra.mxu0 0.0
        %2010 = vmatprep.subr.mxu0 0.0
        %2011 = vmatpush1.xpose.msra.mxu0 0.0
        %2012 = vmatprep.subr.mxu0 0.0
        %2013 = vmatpush1.xpose.msra.mxu0 0.0
        %2014 = vmatprep.subr.mxu0 0.0
        %2015 = vmatpush1.xpose.msra.mxu0 0.0
        %2016 = vmatprep.subr.mxu0 0.0
        %2017 = vmatpush1.xpose.msra.mxu0 0.0
        %2018 = vmatprep.subr.mxu0 0.0
        %2019 = vmatpush1.xpose.msra.mxu0 0.0
        %2020 = vmatprep.subr.mxu0 0.0
        %2021 = vmatpush1.xpose.msra.mxu0 0.0
        %2022 = vmatprep.subr.mxu0 0.0
        %2023 = vmatpush1.xpose.msra.mxu0 0.0
        %2024 = vmatprep.subr.mxu0 0.0
        %2025 = vmatpush1.xpose.msra.mxu0 0.0
        %2026 = vmatprep.subr.mxu0 0.0
        %2027 = vmatpush1.xpose.msra.mxu0 0.0
        %2028 = vmatprep.subr.mxu0 0.0
        %2029 = vmatpush1.xpose.msra.mxu0 0.0
        %2030 = vmatprep.subr.mxu0 0.0
        %2031 = vmatpush1.xpose.msra.mxu0 0.0
        %2032 = vmatprep.subr.mxu0 0.0
        %2033 = vmatpush1.xpose.msra.mxu0 0.0
        %2034 = vmatprep.subr.mxu0 0.0
        %2035 = vmatpush1.xpose.msra.mxu0 0.0
        %2036 = vmatprep.subr.mxu0 0.0
        %2037 = vmatpush1.xpose.msra.mxu0 0.0
        %2038 = vmatprep.subr.mxu0 0.0
        %2039 = vmatpush1.xpose.msra.mxu0 0.0
        %2040 = vmatprep.subr.mxu0 0.0
        %2041 = vmatpush1.xpose.msra.mxu0 0.0
        %2042 = vmatprep.subr.mxu0 0.0
        %2043 = vmatpush1.xpose.msra.mxu0 0.0
        %2044 = vmatprep.subr.mxu0 0.0
        %2045 = vmatpush1.xpose.msra.mxu0 0.0
        %2046 = vmatprep.subr.mxu0 0.0
        %2047 = vmatpush1.xpose.msra.mxu0 0.0
        %2048 = vmatprep.subr.mxu0 0.0
        %2049 = vmatpush1.xpose.msra.mxu0 0.0
        %2050 = vmatprep.mubr.f32.mxu0 0.0
        %2051 = vmatmul.mubr.f32.gmra.mrb[0].mxu0 %v1980
        %v2052 = vpop.f32.mrb[0].mxu0
        %v2053 = vadd.f32 0.0, %v2052
        %v2054 = vpop.f32.mrb[0].mxu0
        %2055 = vdwg.mxu0
        %v2057 = vcombine.high %v2053, %v2053
        %v2059 = vunpack.c.l.s4 1966171168
        %v2060 = vunpack.c.0.s8 %v2059
        %v2061 = vlaneseq
        %v2062 = vshrl.u32 %v2061, 7
        %v2063 = vsub.s32 %v2060, %v2062
        %v2064 = vrot.slane %v2053, %v2063
        %v2066 = vunpack.c.l.s4 1966171168
        %v2067 = vunpack.c.0.s8 %v2066
        %v2068 = vlaneseq
        %v2069 = vshrl.u32 %v2068, 7
        %v2070 = vsub.s32 %v2067, %v2069
        %v2071 = vrot.slane %v2057, %v2070
        %v2072 = vcombine.high %v2064, %v2064
        %v2073 = vcombine.high %v2071, %v2071
        %v2075 = vunpack.c.l.s4 1966171168
        %v2076 = vunpack.c.0.s8 %v2075
        %v2077 = vlaneseq
        %v2078 = vshrl.u32 %v2077, 7
        %v2079 = vsub.s32 %v2076, %v2078
        %v2080 = vrot.slane %v2064, %v2079
        %v2082 = vunpack.c.l.s4 1966171168
        %v2083 = vunpack.c.0.s8 %v2082
        %v2084 = vlaneseq
        %v2085 = vshrl.u32 %v2084, 7
        %v2086 = vsub.s32 %v2083, %v2085
        %v2087 = vrot.slane %v2071, %v2086
        %v2089 = vunpack.c.l.s4 1966171168
        %v2090 = vunpack.c.0.s8 %v2089
        %v2091 = vlaneseq
        %v2092 = vshrl.u32 %v2091, 7
        %v2093 = vsub.s32 %v2090, %v2092
        %v2094 = vrot.slane %v2072, %v2093
        %v2096 = vunpack.c.l.s4 1966171168
        %v2097 = vunpack.c.0.s8 %v2096
        %v2098 = vlaneseq
        %v2099 = vshrl.u32 %v2098, 7
        %v2100 = vsub.s32 %v2097, %v2099
        %v2101 = vrot.slane %v2073, %v2100
        %v2102 = vcombine.high %v2080, %v2080
        %v2103 = vcombine.high %v2087, %v2087
        %v2104 = vcombine.high %v2094, %v2094
        %v2105 = vcombine.high %v2101, %v2101
        %v2114 = vsel %vm1026, %v2080, -inf
        %2115 = vmax.xlane.f32.xlu0 %v2114
        %v2116 = vpop.xlane.xlu0 %2115
        %v2117 = vsel %vm1026, %v2094, -inf
        %2118 = vmax.xlane.f32.xlu0 %v2117
        %v2119 = vpop.xlane.xlu0 %2118
        %v2120 = vsel %vm1026, %v2102, -inf
        %2121 = vmax.xlane.f32.xlu0 %v2120
        %v2122 = vpop.xlane.xlu0 %2121
        %v2123 = vsel %vm1026, %v2104, -inf
        %2124 = vmax.xlane.f32.xlu0 %v2123
        %v2125 = vpop.xlane.xlu0 %2124
        %v2126 = vsel %vm1026, %v2087, -inf
        %2127 = vmax.xlane.f32.xlu0 %v2126
        %v2128 = vpop.xlane.xlu0 %2127
        %v2129 = vsel %vm1026, %v2101, -inf
        %2130 = vmax.xlane.f32.xlu0 %v2129
        %v2131 = vpop.xlane.xlu0 %2130
        %v2132 = vsel %vm1026, %v2103, -inf
        %2133 = vmax.xlane.f32.xlu0 %v2132
        %v2134 = vpop.xlane.xlu0 %2133
        %v2135 = vsel %vm1026, %v2105, -inf
        %2136 = vmax.xlane.f32.xlu0 %v2135
        %v2137 = vpop.xlane.xlu0 %2136
        %v2138 = vsub.f32 %v2080, %v2116
        %v2139 = vsub.f32 %v2094, %v2119
        %v2140 = vsub.f32 %v2102, %v2122
        %v2141 = vsub.f32 %v2104, %v2125
        %v2142 = vsub.f32 %v2087, %v2128
        %v2143 = vsub.f32 %v2101, %v2131
        %v2144 = vsub.f32 %v2103, %v2134
        %v2145 = vsub.f32 %v2105, %v2137
        %v2146 = vmul.f32 %v2138, 1.442695
        %v2147 = vpow.pop %v2146
        %v2148 = vmul.f32 %v2139, 1.442695
        %v2149 = vpow.pop %v2148
        %v2150 = vmul.f32 %v2140, 1.442695
        %v2151 = vpow.pop %v2150
        %v2152 = vmul.f32 %v2141, 1.442695
        %v2153 = vpow.pop %v2152
        %v2154 = vmul.f32 %v2142, 1.442695
        %v2155 = vpow.pop %v2154
        %v2156 = vmul.f32 %v2143, 1.442695
        %v2157 = vpow.pop %v2156
        %v2158 = vmul.f32 %v2144, 1.442695
        %v2159 = vpow.pop %v2158
        %v2160 = vmul.f32 %v2145, 1.442695
        %v2161 = vpow.pop %v2160
        %v2162 = vsel %vm1026, %v2147, 0.0
        %2163 = vadd.xlane.f32.xlu0 %v2162
        %v2164 = vpop.xlane.xlu0 %2163
        %v2165 = vsel %vm1026, %v2149, 0.0
        %2166 = vadd.xlane.f32.xlu0 %v2165
        %v2167 = vpop.xlane.xlu0 %2166
        %v2168 = vsel %vm1026, %v2151, 0.0
        %2169 = vadd.xlane.f32.xlu0 %v2168
        %v2170 = vpop.xlane.xlu0 %2169
        %v2171 = vsel %vm1026, %v2153, 0.0
        %2172 = vadd.xlane.f32.xlu0 %v2171
        %v2173 = vpop.xlane.xlu0 %2172
        %v2174 = vsel %vm1026, %v2155, 0.0
        %2175 = vadd.xlane.f32.xlu0 %v2174
        %v2176 = vpop.xlane.xlu0 %2175
        %v2177 = vsel %vm1026, %v2157, 0.0
        %2178 = vadd.xlane.f32.xlu0 %v2177
        %v2179 = vpop.xlane.xlu0 %2178
        %v2180 = vsel %vm1026, %v2159, 0.0
        %2181 = vadd.xlane.f32.xlu0 %v2180
        %v2182 = vpop.xlane.xlu0 %2181
        %v2183 = vsel %vm1026, %v2161, 0.0
        %2184 = vadd.xlane.f32.xlu0 %v2183
        %v2185 = vpop.xlane.xlu0 %2184
        %v2186 = vrcp.pop %v2164
        %v2187 = vrcp.pop %v2167
        %v2188 = vrcp.pop %v2170
        %v2189 = vrcp.pop %v2173
        %v2190 = vrcp.pop %v2176
        %v2191 = vrcp.pop %v2179
        %v2192 = vrcp.pop %v2182
        %v2193 = vrcp.pop %v2185
        %v2194 = vmul.f32 %v2147, %v2186
        %v2195 = vmul.f32 %v2149, %v2187
        %v2196 = vmul.f32 %v2151, %v2188
        %v2197 = vmul.f32 %v2153, %v2189
        %v2198 = vmul.f32 %v2155, %v2190
        %v2199 = vmul.f32 %v2157, %v2191
        %v2200 = vmul.f32 %v2159, %v2192
        %v2201 = vmul.f32 %v2161, %v2193
        %v2210 = vcombine.low %v2194, %v2195
        %v2211 = vcombine.low %v2196, %v2197
        %v2212 = vcombine.low %v2198, %v2199
        %v2213 = vcombine.low %v2200, %v2201
        %v2215 = vunpack.c.l.s4 1966171168
        %v2216 = vunpack.c.0.s8 %v2215
        %v2217 = vlaneseq
        %v2218 = vshrl.u32 %v2217, 7
        %v2219 = vsub.s32 %v2216, %v2218
        %v2220 = vrot.slane %v2210, %v2219
        %v2222 = vunpack.c.l.s4 1966171168
        %v2223 = vunpack.c.0.s8 %v2222
        %v2224 = vlaneseq
        %v2225 = vshrl.u32 %v2224, 7
        %v2226 = vsub.s32 %v2223, %v2225
        %v2227 = vrot.slane %v2211, %v2226
        %v2229 = vunpack.c.l.s4 1966171168
        %v2230 = vunpack.c.0.s8 %v2229
        %v2231 = vlaneseq
        %v2232 = vshrl.u32 %v2231, 7
        %v2233 = vsub.s32 %v2230, %v2232
        %v2234 = vrot.slane %v2212, %v2233
        %v2236 = vunpack.c.l.s4 1966171168
        %v2237 = vunpack.c.0.s8 %v2236
        %v2238 = vlaneseq
        %v2239 = vshrl.u32 %v2238, 7
        %v2240 = vsub.s32 %v2237, %v2239
        %v2241 = vrot.slane %v2213, %v2240
        %v2242 = vcombine.low %v2220, %v2227
        %v2243 = vcombine.low %v2234, %v2241
        %v2245 = vunpack.c.l.s4 1966171168
        %v2246 = vunpack.c.0.s8 %v2245
        %v2247 = vlaneseq
        %v2248 = vshrl.u32 %v2247, 7
        %v2249 = vsub.s32 %v2246, %v2248
        %v2250 = vrot.slane %v2242, %v2249
        %v2252 = vunpack.c.l.s4 1966171168
        %v2253 = vunpack.c.0.s8 %v2252
        %v2254 = vlaneseq
        %v2255 = vshrl.u32 %v2254, 7
        %v2256 = vsub.s32 %v2253, %v2255
        %v2257 = vrot.slane %v2243, %v2256
        %v2258 = vcombine.low %v2250, %v2257
        %2259 = vrot.lane.b32.xlu0 %v876, 72
        %v2260 = vpop.permute.xlu0 %2259
        %2261 = vrot.lane.b32.xlu0 %v881, 72
        %v2262 = vpop.permute.xlu0 %2261
        %v2265 = vsel %vm1178, %v2258, 0
        %2267 = vmatprep.subr.mxu0 0.0
        %2268 = vmatpush1.msra.mxu0 %v2260
        %2269 = vmatprep.subr.mxu0 0.0
        %2270 = vmatpush1.msra.mxu0 %v2262
        %2271 = vmatprep.subr.mxu0 0.0
        %2272 = vmatpush1.msra.mxu0 0.0
        %2273 = vmatprep.subr.mxu0 0.0
        %2274 = vmatpush1.msra.mxu0 0.0
        %2275 = vmatprep.subr.mxu0 0.0
        %2276 = vmatpush1.msra.mxu0 0.0
        %2277 = vmatprep.subr.mxu0 0.0
        %2278 = vmatpush1.msra.mxu0 0.0
        %2279 = vmatprep.subr.mxu0 0.0
        %2280 = vmatpush1.msra.mxu0 0.0
        %2281 = vmatprep.subr.mxu0 0.0
        %2282 = vmatpush1.msra.mxu0 0.0
        %2283 = vmatprep.subr.mxu0 0.0
        %2284 = vmatpush1.msra.mxu0 0.0
        %2285 = vmatprep.subr.mxu0 0.0
        %2286 = vmatpush1.msra.mxu0 0.0
        %2287 = vmatprep.subr.mxu0 0.0
        %2288 = vmatpush1.msra.mxu0 0.0
        %2289 = vmatprep.subr.mxu0 0.0
        %2290 = vmatpush1.msra.mxu0 0.0
        %2291 = vmatprep.subr.mxu0 0.0
        %2292 = vmatpush1.msra.mxu0 0.0
        %2293 = vmatprep.subr.mxu0 0.0
        %2294 = vmatpush1.msra.mxu0 0.0
        %2295 = vmatprep.subr.mxu0 0.0
        %2296 = vmatpush1.msra.mxu0 0.0
        %2297 = vmatprep.subr.mxu0 0.0
        %2298 = vmatpush1.msra.mxu0 0.0
        %2299 = vmatprep.subr.mxu0 0.0
        %2300 = vmatpush1.msra.mxu0 0.0
        %2301 = vmatprep.subr.mxu0 0.0
        %2302 = vmatpush1.msra.mxu0 0.0
        %2303 = vmatprep.subr.mxu0 0.0
        %2304 = vmatpush1.msra.mxu0 0.0
        %2305 = vmatprep.subr.mxu0 0.0
        %2306 = vmatpush1.msra.mxu0 0.0
        %2307 = vmatprep.subr.mxu0 0.0
        %2308 = vmatpush1.msra.mxu0 0.0
        %2309 = vmatprep.subr.mxu0 0.0
        %2310 = vmatpush1.msra.mxu0 0.0
        %2311 = vmatprep.subr.mxu0 0.0
        %2312 = vmatpush1.msra.mxu0 0.0
        %2313 = vmatprep.subr.mxu0 0.0
        %2314 = vmatpush1.msra.mxu0 0.0
        %2315 = vmatprep.subr.mxu0 0.0
        %2316 = vmatpush1.msra.mxu0 0.0
        %2317 = vmatprep.subr.mxu0 0.0
        %2318 = vmatpush1.msra.mxu0 0.0
        %2319 = vmatprep.subr.mxu0 0.0
        %2320 = vmatpush1.msra.mxu0 0.0
        %2321 = vmatprep.subr.mxu0 0.0
        %2322 = vmatpush1.msra.mxu0 0.0
        %2323 = vmatprep.subr.mxu0 0.0
        %2324 = vmatpush1.msra.mxu0 0.0
        %2325 = vmatprep.subr.mxu0 0.0
        %2326 = vmatpush1.msra.mxu0 0.0
        %2327 = vmatprep.subr.mxu0 0.0
        %2328 = vmatpush1.msra.mxu0 0.0
        %2329 = vmatprep.subr.mxu0 0.0
        %2330 = vmatpush1.msra.mxu0 0.0
        %2331 = vmatprep.mubr.f32.mxu0 0.0
        %2332 = vmatmul.mubr.f32.gmra.mrb[0].mxu0 %v2265
        %v2333 = vpop.f32.mrb[0].mxu0
        %v2334 = vadd.f32 0.0, %v2333
        %v2335 = vpop.f32.mrb[0].mxu0
        %2336 = vdwg.mxu0
        %2338 = vrot.lane.b32.xlu0 %v1610, 8
        %v2339 = vpop.permute.xlu0 %2338
        %2342 = vrot.lane.b32.xlu0 %v1972, 16
        %v2343 = vpop.permute.xlu0 %2342
        %2346 = vrot.lane.b32.xlu0 %v2334, 24
        %v2347 = vpop.permute.xlu0 %2346
        %v2349 = vsel %vm888, %v1248, %v2339
        %v2350 = vsel %vm1178, %v2349, %v2343
        %vm2351 = vcmask 195584
        %v2352 = vsel %vm2351, %v2350, %v2347
        %v2353 = vld [vmem:[#allocation8] sm:$0xff]
        %v2354 = vld [vmem:[#allocation8 + $0x8] sm:$0xff]
        %v2355 = vld [vmem:[#allocation8 + $0x10] sm:$0xff]
        %v2356 = vld [vmem:[#allocation8 + $0x18] sm:$0xff]
        %v2357 = vld [vmem:[%s7] sm:$0x1]
        %v2359 = vlaneseq
        %v2360 = vshrl.u32 %v2359, 7
        %v2361 = vsub.s32 0, %v2360
        %v2362 = vrot.slane %v2357, %v2361
        %v2365 = vsel %vm748, %v2352, 0
        %2367 = vmatprep.subr.mxu0 0.0
        %2368 = vmatpush1.msra.mxu0 %v2353
        %2369 = vmatprep.subr.mxu0 0.0
        %2370 = vmatpush1.msra.mxu0 %v2354
        %2371 = vmatprep.subr.mxu0 0.0
        %2372 = vmatpush1.msra.mxu0 %v2355
        %2373 = vmatprep.subr.mxu0 0.0
        %2374 = vmatpush1.msra.mxu0 %v2356
        %2375 = vmatprep.subr.mxu0 0.0
        %2376 = vmatpush1.msra.mxu0 0.0
        %2377 = vmatprep.subr.mxu0 0.0
        %2378 = vmatpush1.msra.mxu0 0.0
        %2379 = vmatprep.subr.mxu0 0.0
        %2380 = vmatpush1.msra.mxu0 0.0
        %2381 = vmatprep.subr.mxu0 0.0
        %2382 = vmatpush1.msra.mxu0 0.0
        %2383 = vmatprep.subr.mxu0 0.0
        %2384 = vmatpush1.msra.mxu0 0.0
        %2385 = vmatprep.subr.mxu0 0.0
        %2386 = vmatpush1.msra.mxu0 0.0
        %2387 = vmatprep.subr.mxu0 0.0
        %2388 = vmatpush1.msra.mxu0 0.0
        %2389 = vmatprep.subr.mxu0 0.0
        %2390 = vmatpush1.msra.mxu0 0.0
        %2391 = vmatprep.subr.mxu0 0.0
        %2392 = vmatpush1.msra.mxu0 0.0
        %2393 = vmatprep.subr.mxu0 0.0
        %2394 = vmatpush1.msra.mxu0 0.0
        %2395 = vmatprep.subr.mxu0 0.0
        %2396 = vmatpush1.msra.mxu0 0.0
        %2397 = vmatprep.subr.mxu0 0.0
        %2398 = vmatpush1.msra.mxu0 0.0
        %2399 = vmatprep.subr.mxu0 0.0
        %2400 = vmatpush1.msra.mxu0 0.0
        %2401 = vmatprep.subr.mxu0 0.0
        %2402 = vmatpush1.msra.mxu0 0.0
        %2403 = vmatprep.subr.mxu0 0.0
        %2404 = vmatpush1.msra.mxu0 0.0
        %2405 = vmatprep.subr.mxu0 0.0
        %2406 = vmatpush1.msra.mxu0 0.0
        %2407 = vmatprep.subr.mxu0 0.0
        %2408 = vmatpush1.msra.mxu0 0.0
        %2409 = vmatprep.subr.mxu0 0.0
        %2410 = vmatpush1.msra.mxu0 0.0
        %2411 = vmatprep.subr.mxu0 0.0
        %2412 = vmatpush1.msra.mxu0 0.0
        %2413 = vmatprep.subr.mxu0 0.0
        %2414 = vmatpush1.msra.mxu0 0.0
        %2415 = vmatprep.subr.mxu0 0.0
        %2416 = vmatpush1.msra.mxu0 0.0
        %2417 = vmatprep.subr.mxu0 0.0
        %2418 = vmatpush1.msra.mxu0 0.0
        %2419 = vmatprep.subr.mxu0 0.0
        %2420 = vmatpush1.msra.mxu0 0.0
        %2421 = vmatprep.subr.mxu0 0.0
        %2422 = vmatpush1.msra.mxu0 0.0
        %2423 = vmatprep.subr.mxu0 0.0
        %2424 = vmatpush1.msra.mxu0 0.0
        %2425 = vmatprep.subr.mxu0 0.0
        %2426 = vmatpush1.msra.mxu0 0.0
        %2427 = vmatprep.subr.mxu0 0.0
        %2428 = vmatpush1.msra.mxu0 0.0
        %2429 = vmatprep.subr.mxu0 0.0
        %2430 = vmatpush1.msra.mxu0 0.0
        %2431 = vmatprep.mubr.f32.mxu0 0.0
        %2432 = vmatmul.mubr.f32.gmra.mrb[0].mxu0 %v2365
        %v2433 = vpop.f32.mrb[0].mxu0
        %v2434 = vadd.f32 %v2362, %v2433
        %v2435 = vpop.f32.mrb[0].mxu0
        %2436 = vdwg.mxu0
        %v2437 = vld [vmem:[%s8] sm:$0x1]
        %v2438 = vld [vmem:[#allocation10] sm:$0x1]
        %v2439 = vsel %vm748, %v2434, 0.0
        %2440 = vadd.xlane.f32.xlu0 %v2439
        %v2441 = vpop.xlane.xlu0 %2440
        %v2442 = vmul.f32 %v2441, %v755
        %v2443 = vsub.f32 %v2434, %v2442
        %v2444 = vmul.f32 %v2443, %v2443
        %v2445 = vsel %vm748, %v2444, 0.0
        %2446 = vadd.xlane.f32.xlu0 %v2445
        %v2447 = vpop.xlane.xlu0 %2446
        %v2448 = vmul.f32 %v2447, %v755
        %v2449 = vadd.f32 %v2448, 1e-05
        %v2450 = vrsqrt.pop %v2449
        %v2451 = vmul.f32 %v2443, %v2450
        %v2453 = vlaneseq
        %v2454 = vshrl.u32 %v2453, 7
        %v2455 = vsub.s32 0, %v2454
        %v2456 = vrot.slane %v2437, %v2455
        %v2458 = vmul.f32 %v2451, %v2456
        %v2460 = vlaneseq
        %v2461 = vshrl.u32 %v2460, 7
        %v2462 = vsub.s32 0, %v2461
        %v2463 = vrot.slane %v2438, %v2462
        %v2465 = vadd.f32 %v2458, %v2463
        %2466 = vst.msk [vmem:[%s736] sm:$0xff] %vm748, %v2465
        %v2467 = vld [vmem:[%s11] sm:$0x1]
        %v2468 = vld [vmem:[%s12] sm:$0x1]
        %v2469 = vsel %vm748, %v2465, 0.0
        %2470 = vadd.xlane.f32.xlu0 %v2469
        %v2471 = vpop.xlane.xlu0 %2470
        %v2472 = vmul.f32 %v2471, %v755
        %v2473 = vsub.f32 %v2465, %v2472
        %v2474 = vmul.f32 %v2473, %v2473
        %v2475 = vsel %vm748, %v2474, 0.0
        %2476 = vadd.xlane.f32.xlu0 %v2475
        %v2477 = vpop.xlane.xlu0 %2476
        %v2478 = vmul.f32 %v2477, %v755
        %v2479 = vadd.f32 %v2478, 1e-05
        %v2480 = vrsqrt.pop %v2479
        %v2481 = vmul.f32 %v2473, %v2480
        %v2483 = vlaneseq
        %v2484 = vshrl.u32 %v2483, 7
        %v2485 = vsub.s32 0, %v2484
        %v2486 = vrot.slane %v2467, %v2485
        %v2488 = vmul.f32 %v2481, %v2486
        %v2490 = vlaneseq
        %v2491 = vshrl.u32 %v2490, 7
        %v2492 = vsub.s32 0, %v2491
        %v2493 = vrot.slane %v2468, %v2492
        %v2495 = vadd.f32 %v2488, %v2493
        %v2496 = vld [vmem:[#allocation11] sm:$0xff]
        %v2497 = vld [vmem:[#allocation11 + $0x8] sm:$0xff]
        %v2498 = vld [vmem:[#allocation11 + $0x10] sm:$0xff]
        %v2499 = vld [vmem:[#allocation11 + $0x18] sm:$0xff]
        %v2500 = vld [vmem:[%s14] sm:$0x1]
        %v2502 = vlaneseq
        %v2503 = vshrl.u32 %v2502, 7
        %v2504 = vsub.s32 0, %v2503
        %v2505 = vrot.slane %v2500, %v2504
        %v2508 = vsel %vm748, %v2495, 0
        %2510 = vmatprep.subr.mxu0 0.0
        %2511 = vmatpush1.msra.mxu0 %v2496
        %2512 = vmatprep.subr.mxu0 0.0
        %2513 = vmatpush1.msra.mxu0 %v2497
        %2514 = vmatprep.subr.mxu0 0.0
        %2515 = vmatpush1.msra.mxu0 %v2498
        %2516 = vmatprep.subr.mxu0 0.0
        %2517 = vmatpush1.msra.mxu0 %v2499
        %2518 = vmatprep.subr.mxu0 0.0
        %2519 = vmatpush1.msra.mxu0 0.0
        %2520 = vmatprep.subr.mxu0 0.0
        %2521 = vmatpush1.msra.mxu0 0.0
        %2522 = vmatprep.subr.mxu0 0.0
        %2523 = vmatpush1.msra.mxu0 0.0
        %2524 = vmatprep.subr.mxu0 0.0
        %2525 = vmatpush1.msra.mxu0 0.0
        %2526 = vmatprep.subr.mxu0 0.0
        %2527 = vmatpush1.msra.mxu0 0.0
        %2528 = vmatprep.subr.mxu0 0.0
        %2529 = vmatpush1.msra.mxu0 0.0
        %2530 = vmatprep.subr.mxu0 0.0
        %2531 = vmatpush1.msra.mxu0 0.0
        %2532 = vmatprep.subr.mxu0 0.0
        %2533 = vmatpush1.msra.mxu0 0.0
        %2534 = vmatprep.subr.mxu0 0.0
        %2535 = vmatpush1.msra.mxu0 0.0
        %2536 = vmatprep.subr.mxu0 0.0
        %2537 = vmatpush1.msra.mxu0 0.0
        %2538 = vmatprep.subr.mxu0 0.0
        %2539 = vmatpush1.msra.mxu0 0.0
        %2540 = vmatprep.subr.mxu0 0.0
        %2541 = vmatpush1.msra.mxu0 0.0
        %2542 = vmatprep.subr.mxu0 0.0
        %2543 = vmatpush1.msra.mxu0 0.0
        %2544 = vmatprep.subr.mxu0 0.0
        %2545 = vmatpush1.msra.mxu0 0.0
        %2546 = vmatprep.subr.mxu0 0.0
        %2547 = vmatpush1.msra.mxu0 0.0
        %2548 = vmatprep.subr.mxu0 0.0
        %2549 = vmatpush1.msra.mxu0 0.0
        %2550 = vmatprep.subr.mxu0 0.0
        %2551 = vmatpush1.msra.mxu0 0.0
        %2552 = vmatprep.subr.mxu0 0.0
        %2553 = vmatpush1.msra.mxu0 0.0
        %2554 = vmatprep.subr.mxu0 0.0
        %2555 = vmatpush1.msra.mxu0 0.0
        %2556 = vmatprep.subr.mxu0 0.0
        %2557 = vmatpush1.msra.mxu0 0.0
        %2558 = vmatprep.subr.mxu0 0.0
        %2559 = vmatpush1.msra.mxu0 0.0
        %2560 = vmatprep.subr.mxu0 0.0
        %2561 = vmatpush1.msra.mxu0 0.0
        %2562 = vmatprep.subr.mxu0 0.0
        %2563 = vmatpush1.msra.mxu0 0.0
        %2564 = vmatprep.subr.mxu0 0.0
        %2565 = vmatpush1.msra.mxu0 0.0
        %2566 = vmatprep.subr.mxu0 0.0
        %2567 = vmatpush1.msra.mxu0 0.0
        %2568 = vmatprep.subr.mxu0 0.0
        %2569 = vmatpush1.msra.mxu0 0.0
        %2570 = vmatprep.subr.mxu0 0.0
        %2571 = vmatpush1.msra.mxu0 0.0
        %2572 = vmatprep.subr.mxu0 0.0
        %2573 = vmatpush1.msra.mxu0 0.0
        %2574 = vmatprep.mubr.f32.mxu0 0.0
        %2575 = vmatmul.mubr.f32.gmra.mrb[0].mxu0 %v2508
        %v2576 = vpop.f32.mrb[0].mxu0
        %v2577 = vadd.f32 %v2505, %v2576
        %v2578 = vpop.f32.mrb[0].mxu0
        %2579 = vdwg.mxu0
        %v2580 = vld [vmem:[%s10] sm:$0xff]
        %v2581 = vld [vmem:[%s10 + $0x8] sm:$0xff]
        %v2582 = vld [vmem:[%s10 + $0x10] sm:$0xff]
        %v2583 = vld [vmem:[%s10 + $0x18] sm:$0xff]
        %v2585 = vsel %vm888, %v2580, 0
        %v2588 = vsel %vm888, %v2577, 0
        %2590 = vmatprep.subr.mxu0 0.0
        %2591 = vmatpush1.xpose.msra.mxu0 %v2588
        %2592 = vmatprep.subr.mxu0 0.0
        %2593 = vmatpush1.xpose.msra.mxu0 0.0
        %2594 = vmatprep.subr.mxu0 0.0
        %2595 = vmatpush1.xpose.msra.mxu0 0.0
        %2596 = vmatprep.subr.mxu0 0.0
        %2597 = vmatpush1.xpose.msra.mxu0 0.0
        %2598 = vmatprep.subr.mxu0 0.0
        %2599 = vmatpush1.xpose.msra.mxu0 0.0
        %2600 = vmatprep.subr.mxu0 0.0
        %2601 = vmatpush1.xpose.msra.mxu0 0.0
        %2602 = vmatprep.subr.mxu0 0.0
        %2603 = vmatpush1.xpose.msra.mxu0 0.0
        %2604 = vmatprep.subr.mxu0 0.0
        %2605 = vmatpush1.xpose.msra.mxu0 0.0
        %2606 = vmatprep.subr.mxu0 0.0
        %2607 = vmatpush1.xpose.msra.mxu0 0.0
        %2608 = vmatprep.subr.mxu0 0.0
        %2609 = vmatpush1.xpose.msra.mxu0 0.0
        %2610 = vmatprep.subr.mxu0 0.0
        %2611 = vmatpush1.xpose.msra.mxu0 0.0
        %2612 = vmatprep.subr.mxu0 0.0
        %2613 = vmatpush1.xpose.msra.mxu0 0.0
        %2614 = vmatprep.subr.mxu0 0.0
        %2615 = vmatpush1.xpose.msra.mxu0 0.0
        %2616 = vmatprep.subr.mxu0 0.0
        %2617 = vmatpush1.xpose.msra.mxu0 0.0
        %2618 = vmatprep.subr.mxu0 0.0
        %2619 = vmatpush1.xpose.msra.mxu0 0.0
        %2620 = vmatprep.subr.mxu0 0.0
        %2621 = vmatpush1.xpose.msra.mxu0 0.0
        %2622 = vmatprep.subr.mxu0 0.0
        %2623 = vmatpush1.xpose.msra.mxu0 0.0
        %2624 = vmatprep.subr.mxu0 0.0
        %2625 = vmatpush1.xpose.msra.mxu0 0.0
        %2626 = vmatprep.subr.mxu0 0.0
        %2627 = vmatpush1.xpose.msra.mxu0 0.0
        %2628 = vmatprep.subr.mxu0 0.0
        %2629 = vmatpush1.xpose.msra.mxu0 0.0
        %2630 = vmatprep.subr.mxu0 0.0
        %2631 = vmatpush1.xpose.msra.mxu0 0.0
        %2632 = vmatprep.subr.mxu0 0.0
        %2633 = vmatpush1.xpose.msra.mxu0 0.0
        %2634 = vmatprep.subr.mxu0 0.0
        %2635 = vmatpush1.xpose.msra.mxu0 0.0
        %2636 = vmatprep.subr.mxu0 0.0
        %2637 = vmatpush1.xpose.msra.mxu0 0.0
        %2638 = vmatprep.subr.mxu0 0.0
        %2639 = vmatpush1.xpose.msra.mxu0 0.0
        %2640 = vmatprep.subr.mxu0 0.0
        %2641 = vmatpush1.xpose.msra.mxu0 0.0
        %2642 = vmatprep.subr.mxu0 0.0
        %2643 = vmatpush1.xpose.msra.mxu0 0.0
        %2644 = vmatprep.subr.mxu0 0.0
        %2645 = vmatpush1.xpose.msra.mxu0 0.0
        %2646 = vmatprep.subr.mxu0 0.0
        %2647 = vmatpush1.xpose.msra.mxu0 0.0
        %2648 = vmatprep.subr.mxu0 0.0
        %2649 = vmatpush1.xpose.msra.mxu0 0.0
        %2650 = vmatprep.subr.mxu0 0.0
        %2651 = vmatpush1.xpose.msra.mxu0 0.0
        %2652 = vmatprep.subr.mxu0 0.0
        %2653 = vmatpush1.xpose.msra.mxu0 0.0
        %2654 = vmatprep.mubr.f32.mxu0 0.0
        %2655 = vmatmul.mubr.f32.gmra.mrb[0].mxu0 %v2585
        %v2656 = vpop.f32.mrb[0].mxu0
        %v2657 = vadd.f32 0.0, %v2656
        %v2658 = vpop.f32.mrb[0].mxu0
        %2659 = vdwg.mxu0
        %v2661 = vcombine.high %v2657, %v2657
        %v2663 = vunpack.c.l.s4 1966171168
        %v2664 = vunpack.c.0.s8 %v2663
        %v2665 = vlaneseq
        %v2666 = vshrl.u32 %v2665, 7
        %v2667 = vsub.s32 %v2664, %v2666
        %v2668 = vrot.slane %v2657, %v2667
        %v2670 = vunpack.c.l.s4 1966171168
        %v2671 = vunpack.c.0.s8 %v2670
        %v2672 = vlaneseq
        %v2673 = vshrl.u32 %v2672, 7
        %v2674 = vsub.s32 %v2671, %v2673
        %v2675 = vrot.slane %v2661, %v2674
        %v2676 = vcombine.high %v2668, %v2668
        %v2677 = vcombine.high %v2675, %v2675
        %v2679 = vunpack.c.l.s4 1966171168
        %v2680 = vunpack.c.0.s8 %v2679
        %v2681 = vlaneseq
        %v2682 = vshrl.u32 %v2681, 7
        %v2683 = vsub.s32 %v2680, %v2682
        %v2684 = vrot.slane %v2668, %v2683
        %v2686 = vunpack.c.l.s4 1966171168
        %v2687 = vunpack.c.0.s8 %v2686
        %v2688 = vlaneseq
        %v2689 = vshrl.u32 %v2688, 7
        %v2690 = vsub.s32 %v2687, %v2689
        %v2691 = vrot.slane %v2675, %v2690
        %v2693 = vunpack.c.l.s4 1966171168
        %v2694 = vunpack.c.0.s8 %v2693
        %v2695 = vlaneseq
        %v2696 = vshrl.u32 %v2695, 7
        %v2697 = vsub.s32 %v2694, %v2696
        %v2698 = vrot.slane %v2676, %v2697
        %v2700 = vunpack.c.l.s4 1966171168
        %v2701 = vunpack.c.0.s8 %v2700
        %v2702 = vlaneseq
        %v2703 = vshrl.u32 %v2702, 7
        %v2704 = vsub.s32 %v2701, %v2703
        %v2705 = vrot.slane %v2677, %v2704
        %v2706 = vcombine.high %v2684, %v2684
        %v2707 = vcombine.high %v2691, %v2691
        %v2708 = vcombine.high %v2698, %v2698
        %v2709 = vcombine.high %v2705, %v2705
        %vm2718 = vcmask 57344
        %v2719 = vsel %vm2718, %v2684, -inf
        %2720 = vmax.xlane.f32.xlu0 %v2719
        %v2721 = vpop.xlane.xlu0 %2720
        %v2722 = vsel %vm2718, %v2698, -inf
        %2723 = vmax.xlane.f32.xlu0 %v2722
        %v2724 = vpop.xlane.xlu0 %2723
        %v2725 = vsel %vm2718, %v2706, -inf
        %2726 = vmax.xlane.f32.xlu0 %v2725
        %v2727 = vpop.xlane.xlu0 %2726
        %v2728 = vsel %vm2718, %v2708, -inf
        %2729 = vmax.xlane.f32.xlu0 %v2728
        %v2730 = vpop.xlane.xlu0 %2729
        %v2731 = vsel %vm2718, %v2691, -inf
        %2732 = vmax.xlane.f32.xlu0 %v2731
        %v2733 = vpop.xlane.xlu0 %2732
        %v2734 = vsel %vm2718, %v2705, -inf
        %2735 = vmax.xlane.f32.xlu0 %v2734
        %v2736 = vpop.xlane.xlu0 %2735
        %v2737 = vsel %vm2718, %v2707, -inf
        %2738 = vmax.xlane.f32.xlu0 %v2737
        %v2739 = vpop.xlane.xlu0 %2738
        %v2740 = vsel %vm2718, %v2709, -inf
        %2741 = vmax.xlane.f32.xlu0 %v2740
        %v2742 = vpop.xlane.xlu0 %2741
        %v2743 = vsub.f32 %v2684, %v2721
        %v2744 = vsub.f32 %v2698, %v2724
        %v2745 = vsub.f32 %v2706, %v2727
        %v2746 = vsub.f32 %v2708, %v2730
        %v2747 = vsub.f32 %v2691, %v2733
        %v2748 = vsub.f32 %v2705, %v2736
        %v2749 = vsub.f32 %v2707, %v2739
        %v2750 = vsub.f32 %v2709, %v2742
        %v2751 = vmul.f32 %v2743, 1.442695
        %v2752 = vpow.pop %v2751
        %v2753 = vmul.f32 %v2744, 1.442695
        %v2754 = vpow.pop %v2753
        %v2755 = vmul.f32 %v2745, 1.442695
        %v2756 = vpow.pop %v2755
        %v2757 = vmul.f32 %v2746, 1.442695
        %v2758 = vpow.pop %v2757
        %v2759 = vmul.f32 %v2747, 1.442695
        %v2760 = vpow.pop %v2759
        %v2761 = vmul.f32 %v2748, 1.442695
        %v2762 = vpow.pop %v2761
        %v2763 = vmul.f32 %v2749, 1.442695
        %v2764 = vpow.pop %v2763
        %v2765 = vmul.f32 %v2750, 1.442695
        %v2766 = vpow.pop %v2765
        %v2767 = vsel %vm2718, %v2752, 0.0
        %2768 = vadd.xlane.f32.xlu0 %v2767
        %v2769 = vpop.xlane.xlu0 %2768
        %v2770 = vsel %vm2718, %v2754, 0.0
        %2771 = vadd.xlane.f32.xlu0 %v2770
        %v2772 = vpop.xlane.xlu0 %2771
        %v2773 = vsel %vm2718, %v2756, 0.0
        %2774 = vadd.xlane.f32.xlu0 %v2773
        %v2775 = vpop.xlane.xlu0 %2774
        %v2776 = vsel %vm2718, %v2758, 0.0
        %2777 = vadd.xlane.f32.xlu0 %v2776
        %v2778 = vpop.xlane.xlu0 %2777
        %v2779 = vsel %vm2718, %v2760, 0.0
        %2780 = vadd.xlane.f32.xlu0 %v2779
        %v2781 = vpop.xlane.xlu0 %2780
        %v2782 = vsel %vm2718, %v2762, 0.0
        %2783 = vadd.xlane.f32.xlu0 %v2782
        %v2784 = vpop.xlane.xlu0 %2783
        %v2785 = vsel %vm2718, %v2764, 0.0
        %2786 = vadd.xlane.f32.xlu0 %v2785
        %v2787 = vpop.xlane.xlu0 %2786
        %v2788 = vsel %vm2718, %v2766, 0.0
        %2789 = vadd.xlane.f32.xlu0 %v2788
        %v2790 = vpop.xlane.xlu0 %2789
        %v2791 = vrcp.pop %v2769
        %v2792 = vrcp.pop %v2772
        %v2793 = vrcp.pop %v2775
        %v2794 = vrcp.pop %v2778
        %v2795 = vrcp.pop %v2781
        %v2796 = vrcp.pop %v2784
        %v2797 = vrcp.pop %v2787
        %v2798 = vrcp.pop %v2790
        %v2799 = vmul.f32 %v2752, %v2791
        %v2800 = vmul.f32 %v2754, %v2792
        %v2801 = vmul.f32 %v2756, %v2793
        %v2802 = vmul.f32 %v2758, %v2794
        %v2803 = vmul.f32 %v2760, %v2795
        %v2804 = vmul.f32 %v2762, %v2796
        %v2805 = vmul.f32 %v2764, %v2797
        %v2806 = vmul.f32 %v2766, %v2798
        %v2815 = vcombine.low %v2799, %v2800
        %v2816 = vcombine.low %v2801, %v2802
        %v2817 = vcombine.low %v2803, %v2804
        %v2818 = vcombine.low %v2805, %v2806
        %v2820 = vunpack.c.l.s4 1966171168
        %v2821 = vunpack.c.0.s8 %v2820
        %v2822 = vlaneseq
        %v2823 = vshrl.u32 %v2822, 7
        %v2824 = vsub.s32 %v2821, %v2823
        %v2825 = vrot.slane %v2815, %v2824
        %v2827 = vunpack.c.l.s4 1966171168
        %v2828 = vunpack.c.0.s8 %v2827
        %v2829 = vlaneseq
        %v2830 = vshrl.u32 %v2829, 7
        %v2831 = vsub.s32 %v2828, %v2830
        %v2832 = vrot.slane %v2816, %v2831
        %v2834 = vunpack.c.l.s4 1966171168
        %v2835 = vunpack.c.0.s8 %v2834
        %v2836 = vlaneseq
        %v2837 = vshrl.u32 %v2836, 7
        %v2838 = vsub.s32 %v2835, %v2837
        %v2839 = vrot.slane %v2817, %v2838
        %v2841 = vunpack.c.l.s4 1966171168
        %v2842 = vunpack.c.0.s8 %v2841
        %v2843 = vlaneseq
        %v2844 = vshrl.u32 %v2843, 7
        %v2845 = vsub.s32 %v2842, %v2844
        %v2846 = vrot.slane %v2818, %v2845
        %v2847 = vcombine.low %v2825, %v2832
        %v2848 = vcombine.low %v2839, %v2846
        %v2850 = vunpack.c.l.s4 1966171168
        %v2851 = vunpack.c.0.s8 %v2850
        %v2852 = vlaneseq
        %v2853 = vshrl.u32 %v2852, 7
        %v2854 = vsub.s32 %v2851, %v2853
        %v2855 = vrot.slane %v2847, %v2854
        %v2857 = vunpack.c.l.s4 1966171168
        %v2858 = vunpack.c.0.s8 %v2857
        %v2859 = vlaneseq
        %v2860 = vshrl.u32 %v2859, 7
        %v2861 = vsub.s32 %v2858, %v2860
        %v2862 = vrot.slane %v2848, %v2861
        %v2863 = vcombine.low %v2855, %v2862
        %2864 = vrot.lane.b32.xlu0 %v2577, 96
        %v2865 = vpop.permute.xlu0 %2864
        %v2867 = vsel %vm888, %v2863, 0
        %2869 = vmatprep.subr.mxu0 0.0
        %2870 = vmatpush1.msra.mxu0 %v2865
        %2871 = vmatprep.subr.mxu0 0.0
        %2872 = vmatpush1.msra.mxu0 0.0
        %2873 = vmatprep.subr.mxu0 0.0
        %2874 = vmatpush1.msra.mxu0 0.0
        %2875 = vmatprep.subr.mxu0 0.0
        %2876 = vmatpush1.msra.mxu0 0.0
        %2877 = vmatprep.subr.mxu0 0.0
        %2878 = vmatpush1.msra.mxu0 0.0
        %2879 = vmatprep.subr.mxu0 0.0
        %2880 = vmatpush1.msra.mxu0 0.0
        %2881 = vmatprep.subr.mxu0 0.0
        %2882 = vmatpush1.msra.mxu0 0.0
        %2883 = vmatprep.subr.mxu0 0.0
        %2884 = vmatpush1.msra.mxu0 0.0
        %2885 = vmatprep.subr.mxu0 0.0
        %2886 = vmatpush1.msra.mxu0 0.0
        %2887 = vmatprep.subr.mxu0 0.0
        %2888 = vmatpush1.msra.mxu0 0.0
        %2889 = vmatprep.subr.mxu0 0.0
        %2890 = vmatpush1.msra.mxu0 0.0
        %2891 = vmatprep.subr.mxu0 0.0
        %2892 = vmatpush1.msra.mxu0 0.0
        %2893 = vmatprep.subr.mxu0 0.0
        %2894 = vmatpush1.msra.mxu0 0.0
        %2895 = vmatprep.subr.mxu0 0.0
        %2896 = vmatpush1.msra.mxu0 0.0
        %2897 = vmatprep.subr.mxu0 0.0
        %2898 = vmatpush1.msra.mxu0 0.0
        %2899 = vmatprep.subr.mxu0 0.0
        %2900 = vmatpush1.msra.mxu0 0.0
        %2901 = vmatprep.subr.mxu0 0.0
        %2902 = vmatpush1.msra.mxu0 0.0
        %2903 = vmatprep.subr.mxu0 0.0
        %2904 = vmatpush1.msra.mxu0 0.0
        %2905 = vmatprep.subr.mxu0 0.0
        %2906 = vmatpush1.msra.mxu0 0.0
        %2907 = vmatprep.subr.mxu0 0.0
        %2908 = vmatpush1.msra.mxu0 0.0
        %2909 = vmatprep.subr.mxu0 0.0
        %2910 = vmatpush1.msra.mxu0 0.0
        %2911 = vmatprep.subr.mxu0 0.0
        %2912 = vmatpush1.msra.mxu0 0.0
        %2913 = vmatprep.subr.mxu0 0.0
        %2914 = vmatpush1.msra.mxu0 0.0
        %2915 = vmatprep.subr.mxu0 0.0
        %2916 = vmatpush1.msra.mxu0 0.0
        %2917 = vmatprep.subr.mxu0 0.0
        %2918 = vmatpush1.msra.mxu0 0.0
        %2919 = vmatprep.subr.mxu0 0.0
        %2920 = vmatpush1.msra.mxu0 0.0
        %2921 = vmatprep.subr.mxu0 0.0
        %2922 = vmatpush1.msra.mxu0 0.0
        %2923 = vmatprep.subr.mxu0 0.0
        %2924 = vmatpush1.msra.mxu0 0.0
        %2925 = vmatprep.subr.mxu0 0.0
        %2926 = vmatpush1.msra.mxu0 0.0
        %2927 = vmatprep.subr.mxu0 0.0
        %2928 = vmatpush1.msra.mxu0 0.0
        %2929 = vmatprep.subr.mxu0 0.0
        %2930 = vmatpush1.msra.mxu0 0.0
        %2931 = vmatprep.subr.mxu0 0.0
        %2932 = vmatpush1.msra.mxu0 0.0
        %2933 = vmatprep.mubr.f32.mxu0 0.0
        %2934 = vmatmul.mubr.f32.gmra.mrb[0].mxu0 %v2867
        %v2935 = vpop.f32.mrb[0].mxu0
        %v2936 = vadd.f32 0.0, %v2935
        %v2937 = vpop.f32.mrb[0].mxu0
        %2938 = vdwg.mxu0
        %2939 = vrot.lane.b32.xlu0 %v2577, 120
        %v2940 = vpop.permute.xlu0 %2939
        %v2942 = vsel %vm888, %v2581, 0
        %v2944 = vsel %vm888, %v2940, 0
        %2946 = vmatprep.subr.mxu0 0.0
        %2947 = vmatpush1.xpose.msra.mxu0 %v2944
        %2948 = vmatprep.subr.mxu0 0.0
        %2949 = vmatpush1.xpose.msra.mxu0 0.0
        %2950 = vmatprep.subr.mxu0 0.0
        %2951 = vmatpush1.xpose.msra.mxu0 0.0
        %2952 = vmatprep.subr.mxu0 0.0
        %2953 = vmatpush1.xpose.msra.mxu0 0.0
        %2954 = vmatprep.subr.mxu0 0.0
        %2955 = vmatpush1.xpose.msra.mxu0 0.0
        %2956 = vmatprep.subr.mxu0 0.0
        %2957 = vmatpush1.xpose.msra.mxu0 0.0
        %2958 = vmatprep.subr.mxu0 0.0
        %2959 = vmatpush1.xpose.msra.mxu0 0.0
        %2960 = vmatprep.subr.mxu0 0.0
        %2961 = vmatpush1.xpose.msra.mxu0 0.0
        %2962 = vmatprep.subr.mxu0 0.0
        %2963 = vmatpush1.xpose.msra.mxu0 0.0
        %2964 = vmatprep.subr.mxu0 0.0
        %2965 = vmatpush1.xpose.msra.mxu0 0.0
        %2966 = vmatprep.subr.mxu0 0.0
        %2967 = vmatpush1.xpose.msra.mxu0 0.0
        %2968 = vmatprep.subr.mxu0 0.0
        %2969 = vmatpush1.xpose.msra.mxu0 0.0
        %2970 = vmatprep.subr.mxu0 0.0
        %2971 = vmatpush1.xpose.msra.mxu0 0.0
        %2972 = vmatprep.subr.mxu0 0.0
        %2973 = vmatpush1.xpose.msra.mxu0 0.0
        %2974 = vmatprep.subr.mxu0 0.0
        %2975 = vmatpush1.xpose.msra.mxu0 0.0
        %2976 = vmatprep.subr.mxu0 0.0
        %2977 = vmatpush1.xpose.msra.mxu0 0.0
        %2978 = vmatprep.subr.mxu0 0.0
        %2979 = vmatpush1.xpose.msra.mxu0 0.0
        %2980 = vmatprep.subr.mxu0 0.0
        %2981 = vmatpush1.xpose.msra.mxu0 0.0
        %2982 = vmatprep.subr.mxu0 0.0
        %2983 = vmatpush1.xpose.msra.mxu0 0.0
        %2984 = vmatprep.subr.mxu0 0.0
        %2985 = vmatpush1.xpose.msra.mxu0 0.0
        %2986 = vmatprep.subr.mxu0 0.0
        %2987 = vmatpush1.xpose.msra.mxu0 0.0
        %2988 = vmatprep.subr.mxu0 0.0
        %2989 = vmatpush1.xpose.msra.mxu0 0.0
        %2990 = vmatprep.subr.mxu0 0.0
        %2991 = vmatpush1.xpose.msra.mxu0 0.0
        %2992 = vmatprep.subr.mxu0 0.0
        %2993 = vmatpush1.xpose.msra.mxu0 0.0
        %2994 = vmatprep.subr.mxu0 0.0
        %2995 = vmatpush1.xpose.msra.mxu0 0.0
        %2996 = vmatprep.subr.mxu0 0.0
        %2997 = vmatpush1.xpose.msra.mxu0 0.0
        %2998 = vmatprep.subr.mxu0 0.0
        %2999 = vmatpush1.xpose.msra.mxu0 0.0
        %3000 = vmatprep.subr.mxu0 0.0
        %3001 = vmatpush1.xpose.msra.mxu0 0.0
        %3002 = vmatprep.subr.mxu0 0.0
        %3003 = vmatpush1.xpose.msra.mxu0 0.0
        %3004 = vmatprep.subr.mxu0 0.0
        %3005 = vmatpush1.xpose.msra.mxu0 0.0
        %3006 = vmatprep.subr.mxu0 0.0
        %3007 = vmatpush1.xpose.msra.mxu0 0.0
        %3008 = vmatprep.subr.mxu0 0.0
        %3009 = vmatpush1.xpose.msra.mxu0 0.0
        %3010 = vmatprep.mubr.f32.mxu0 0.0
        %3011 = vmatmul.mubr.f32.gmra.mrb[0].mxu0 %v2942
        %v3012 = vpop.f32.mrb[0].mxu0
        %v3013 = vadd.f32 0.0, %v3012
        %v3014 = vpop.f32.mrb[0].mxu0
        %3015 = vdwg.mxu0
        %v3017 = vcombine.high %v3013, %v3013
        %v3019 = vunpack.c.l.s4 1966171168
        %v3020 = vunpack.c.0.s8 %v3019
        %v3021 = vlaneseq
        %v3022 = vshrl.u32 %v3021, 7
        %v3023 = vsub.s32 %v3020, %v3022
        %v3024 = vrot.slane %v3013, %v3023
        %v3026 = vunpack.c.l.s4 1966171168
        %v3027 = vunpack.c.0.s8 %v3026
        %v3028 = vlaneseq
        %v3029 = vshrl.u32 %v3028, 7
        %v3030 = vsub.s32 %v3027, %v3029
        %v3031 = vrot.slane %v3017, %v3030
        %v3032 = vcombine.high %v3024, %v3024
        %v3033 = vcombine.high %v3031, %v3031
        %v3035 = vunpack.c.l.s4 1966171168
        %v3036 = vunpack.c.0.s8 %v3035
        %v3037 = vlaneseq
        %v3038 = vshrl.u32 %v3037, 7
        %v3039 = vsub.s32 %v3036, %v3038
        %v3040 = vrot.slane %v3024, %v3039
        %v3042 = vunpack.c.l.s4 1966171168
        %v3043 = vunpack.c.0.s8 %v3042
        %v3044 = vlaneseq
        %v3045 = vshrl.u32 %v3044, 7
        %v3046 = vsub.s32 %v3043, %v3045
        %v3047 = vrot.slane %v3031, %v3046
        %v3049 = vunpack.c.l.s4 1966171168
        %v3050 = vunpack.c.0.s8 %v3049
        %v3051 = vlaneseq
        %v3052 = vshrl.u32 %v3051, 7
        %v3053 = vsub.s32 %v3050, %v3052
        %v3054 = vrot.slane %v3032, %v3053
        %v3056 = vunpack.c.l.s4 1966171168
        %v3057 = vunpack.c.0.s8 %v3056
        %v3058 = vlaneseq
        %v3059 = vshrl.u32 %v3058, 7
        %v3060 = vsub.s32 %v3057, %v3059
        %v3061 = vrot.slane %v3033, %v3060
        %v3062 = vcombine.high %v3040, %v3040
        %v3063 = vcombine.high %v3047, %v3047
        %v3064 = vcombine.high %v3054, %v3054
        %v3065 = vcombine.high %v3061, %v3061
        %v3074 = vsel %vm2718, %v3040, -inf
        %3075 = vmax.xlane.f32.xlu0 %v3074
        %v3076 = vpop.xlane.xlu0 %3075
        %v3077 = vsel %vm2718, %v3054, -inf
        %3078 = vmax.xlane.f32.xlu0 %v3077
        %v3079 = vpop.xlane.xlu0 %3078
        %v3080 = vsel %vm2718, %v3062, -inf
        %3081 = vmax.xlane.f32.xlu0 %v3080
        %v3082 = vpop.xlane.xlu0 %3081
        %v3083 = vsel %vm2718, %v3064, -inf
        %3084 = vmax.xlane.f32.xlu0 %v3083
        %v3085 = vpop.xlane.xlu0 %3084
        %v3086 = vsel %vm2718, %v3047, -inf
        %3087 = vmax.xlane.f32.xlu0 %v3086
        %v3088 = vpop.xlane.xlu0 %3087
        %v3089 = vsel %vm2718, %v3061, -inf
        %3090 = vmax.xlane.f32.xlu0 %v3089
        %v3091 = vpop.xlane.xlu0 %3090
        %v3092 = vsel %vm2718, %v3063, -inf
        %3093 = vmax.xlane.f32.xlu0 %v3092
        %v3094 = vpop.xlane.xlu0 %3093
        %v3095 = vsel %vm2718, %v3065, -inf
        %3096 = vmax.xlane.f32.xlu0 %v3095
        %v3097 = vpop.xlane.xlu0 %3096
        %v3098 = vsub.f32 %v3040, %v3076
        %v3099 = vsub.f32 %v3054, %v3079
        %v3100 = vsub.f32 %v3062, %v3082
        %v3101 = vsub.f32 %v3064, %v3085
        %v3102 = vsub.f32 %v3047, %v3088
        %v3103 = vsub.f32 %v3061, %v3091
        %v3104 = vsub.f32 %v3063, %v3094
        %v3105 = vsub.f32 %v3065, %v3097
        %v3106 = vmul.f32 %v3098, 1.442695
        %v3107 = vpow.pop %v3106
        %v3108 = vmul.f32 %v3099, 1.442695
        %v3109 = vpow.pop %v3108
        %v3110 = vmul.f32 %v3100, 1.442695
        %v3111 = vpow.pop %v3110
        %v3112 = vmul.f32 %v3101, 1.442695
        %v3113 = vpow.pop %v3112
        %v3114 = vmul.f32 %v3102, 1.442695
        %v3115 = vpow.pop %v3114
        %v3116 = vmul.f32 %v3103, 1.442695
        %v3117 = vpow.pop %v3116
        %v3118 = vmul.f32 %v3104, 1.442695
        %v3119 = vpow.pop %v3118
        %v3120 = vmul.f32 %v3105, 1.442695
        %v3121 = vpow.pop %v3120
        %v3122 = vsel %vm2718, %v3107, 0.0
        %3123 = vadd.xlane.f32.xlu0 %v3122
        %v3124 = vpop.xlane.xlu0 %3123
        %v3125 = vsel %vm2718, %v3109, 0.0
        %3126 = vadd.xlane.f32.xlu0 %v3125
        %v3127 = vpop.xlane.xlu0 %3126
        %v3128 = vsel %vm2718, %v3111, 0.0
        %3129 = vadd.xlane.f32.xlu0 %v3128
        %v3130 = vpop.xlane.xlu0 %3129
        %v3131 = vsel %vm2718, %v3113, 0.0
        %3132 = vadd.xlane.f32.xlu0 %v3131
        %v3133 = vpop.xlane.xlu0 %3132
        %v3134 = vsel %vm2718, %v3115, 0.0
        %3135 = vadd.xlane.f32.xlu0 %v3134
        %v3136 = vpop.xlane.xlu0 %3135
        %v3137 = vsel %vm2718, %v3117, 0.0
        %3138 = vadd.xlane.f32.xlu0 %v3137
        %v3139 = vpop.xlane.xlu0 %3138
        %v3140 = vsel %vm2718, %v3119, 0.0
        %3141 = vadd.xlane.f32.xlu0 %v3140
        %v3142 = vpop.xlane.xlu0 %3141
        %v3143 = vsel %vm2718, %v3121, 0.0
        %3144 = vadd.xlane.f32.xlu0 %v3143
        %v3145 = vpop.xlane.xlu0 %3144
        %v3146 = vrcp.pop %v3124
        %v3147 = vrcp.pop %v3127
        %v3148 = vrcp.pop %v3130
        %v3149 = vrcp.pop %v3133
        %v3150 = vrcp.pop %v3136
        %v3151 = vrcp.pop %v3139
        %v3152 = vrcp.pop %v3142
        %v3153 = vrcp.pop %v3145
        %v3154 = vmul.f32 %v3107, %v3146
        %v3155 = vmul.f32 %v3109, %v3147
        %v3156 = vmul.f32 %v3111, %v3148
        %v3157 = vmul.f32 %v3113, %v3149
        %v3158 = vmul.f32 %v3115, %v3150
        %v3159 = vmul.f32 %v3117, %v3151
        %v3160 = vmul.f32 %v3119, %v3152
        %v3161 = vmul.f32 %v3121, %v3153
        %v3170 = vcombine.low %v3154, %v3155
        %v3171 = vcombine.low %v3156, %v3157
        %v3172 = vcombine.low %v3158, %v3159
        %v3173 = vcombine.low %v3160, %v3161
        %v3175 = vunpack.c.l.s4 1966171168
        %v3176 = vunpack.c.0.s8 %v3175
        %v3177 = vlaneseq
        %v3178 = vshrl.u32 %v3177, 7
        %v3179 = vsub.s32 %v3176, %v3178
        %v3180 = vrot.slane %v3170, %v3179
        %v3182 = vunpack.c.l.s4 1966171168
        %v3183 = vunpack.c.0.s8 %v3182
        %v3184 = vlaneseq
        %v3185 = vshrl.u32 %v3184, 7
        %v3186 = vsub.s32 %v3183, %v3185
        %v3187 = vrot.slane %v3171, %v3186
        %v3189 = vunpack.c.l.s4 1966171168
        %v3190 = vunpack.c.0.s8 %v3189
        %v3191 = vlaneseq
        %v3192 = vshrl.u32 %v3191, 7
        %v3193 = vsub.s32 %v3190, %v3192
        %v3194 = vrot.slane %v3172, %v3193
        %v3196 = vunpack.c.l.s4 1966171168
        %v3197 = vunpack.c.0.s8 %v3196
        %v3198 = vlaneseq
        %v3199 = vshrl.u32 %v3198, 7
        %v3200 = vsub.s32 %v3197, %v3199
        %v3201 = vrot.slane %v3173, %v3200
        %v3202 = vcombine.low %v3180, %v3187
        %v3203 = vcombine.low %v3194, %v3201
        %v3205 = vunpack.c.l.s4 1966171168
        %v3206 = vunpack.c.0.s8 %v3205
        %v3207 = vlaneseq
        %v3208 = vshrl.u32 %v3207, 7
        %v3209 = vsub.s32 %v3206, %v3208
        %v3210 = vrot.slane %v3202, %v3209
        %v3212 = vunpack.c.l.s4 1966171168
        %v3213 = vunpack.c.0.s8 %v3212
        %v3214 = vlaneseq
        %v3215 = vshrl.u32 %v3214, 7
        %v3216 = vsub.s32 %v3213, %v3215
        %v3217 = vrot.slane %v3203, %v3216
        %v3218 = vcombine.low %v3210, %v3217
        %3219 = vrot.lane.b32.xlu0 %v2577, 88
        %v3220 = vpop.permute.xlu0 %3219
        %v3222 = vsel %vm888, %v3218, 0
        %3224 = vmatprep.subr.mxu0 0.0
        %3225 = vmatpush1.msra.mxu0 %v3220
        %3226 = vmatprep.subr.mxu0 0.0
        %3227 = vmatpush1.msra.mxu0 0.0
        %3228 = vmatprep.subr.mxu0 0.0
        %3229 = vmatpush1.msra.mxu0 0.0
        %3230 = vmatprep.subr.mxu0 0.0
        %3231 = vmatpush1.msra.mxu0 0.0
        %3232 = vmatprep.subr.mxu0 0.0
        %3233 = vmatpush1.msra.mxu0 0.0
        %3234 = vmatprep.subr.mxu0 0.0
        %3235 = vmatpush1.msra.mxu0 0.0
        %3236 = vmatprep.subr.mxu0 0.0
        %3237 = vmatpush1.msra.mxu0 0.0
        %3238 = vmatprep.subr.mxu0 0.0
        %3239 = vmatpush1.msra.mxu0 0.0
        %3240 = vmatprep.subr.mxu0 0.0
        %3241 = vmatpush1.msra.mxu0 0.0
        %3242 = vmatprep.subr.mxu0 0.0
        %3243 = vmatpush1.msra.mxu0 0.0
        %3244 = vmatprep.subr.mxu0 0.0
        %3245 = vmatpush1.msra.mxu0 0.0
        %3246 = vmatprep.subr.mxu0 0.0
        %3247 = vmatpush1.msra.mxu0 0.0
        %3248 = vmatprep.subr.mxu0 0.0
        %3249 = vmatpush1.msra.mxu0 0.0
        %3250 = vmatprep.subr.mxu0 0.0
        %3251 = vmatpush1.msra.mxu0 0.0
        %3252 = vmatprep.subr.mxu0 0.0
        %3253 = vmatpush1.msra.mxu0 0.0
        %3254 = vmatprep.subr.mxu0 0.0
        %3255 = vmatpush1.msra.mxu0 0.0
        %3256 = vmatprep.subr.mxu0 0.0
        %3257 = vmatpush1.msra.mxu0 0.0
        %3258 = vmatprep.subr.mxu0 0.0
        %3259 = vmatpush1.msra.mxu0 0.0
        %3260 = vmatprep.subr.mxu0 0.0
        %3261 = vmatpush1.msra.mxu0 0.0
        %3262 = vmatprep.subr.mxu0 0.0
        %3263 = vmatpush1.msra.mxu0 0.0
        %3264 = vmatprep.subr.mxu0 0.0
        %3265 = vmatpush1.msra.mxu0 0.0
        %3266 = vmatprep.subr.mxu0 0.0
        %3267 = vmatpush1.msra.mxu0 0.0
        %3268 = vmatprep.subr.mxu0 0.0
        %3269 = vmatpush1.msra.mxu0 0.0
        %3270 = vmatprep.subr.mxu0 0.0
        %3271 = vmatpush1.msra.mxu0 0.0
        %3272 = vmatprep.subr.mxu0 0.0
        %3273 = vmatpush1.msra.mxu0 0.0
        %3274 = vmatprep.subr.mxu0 0.0
        %3275 = vmatpush1.msra.mxu0 0.0
        %3276 = vmatprep.subr.mxu0 0.0
        %3277 = vmatpush1.msra.mxu0 0.0
        %3278 = vmatprep.subr.mxu0 0.0
        %3279 = vmatpush1.msra.mxu0 0.0
        %3280 = vmatprep.subr.mxu0 0.0
        %3281 = vmatpush1.msra.mxu0 0.0
        %3282 = vmatprep.subr.mxu0 0.0
        %3283 = vmatpush1.msra.mxu0 0.0
        %3284 = vmatprep.subr.mxu0 0.0
        %3285 = vmatpush1.msra.mxu0 0.0
        %3286 = vmatprep.subr.mxu0 0.0
        %3287 = vmatpush1.msra.mxu0 0.0
        %3288 = vmatprep.mubr.f32.mxu0 0.0
        %3289 = vmatmul.mubr.f32.gmra.mrb[0].mxu0 %v3222
        %v3290 = vpop.f32.mrb[0].mxu0
        %v3291 = vadd.f32 0.0, %v3290
        %v3292 = vpop.f32.mrb[0].mxu0
        %3293 = vdwg.mxu0
        %3294 = vrot.lane.b32.xlu0 %v2577, 112
        %v3295 = vpop.permute.xlu0 %3294
        %v3297 = vsel %vm888, %v2582, 0
        %v3299 = vsel %vm888, %v3295, 0
        %3301 = vmatprep.subr.mxu0 0.0
        %3302 = vmatpush1.xpose.msra.mxu0 %v3299
        %3303 = vmatprep.subr.mxu0 0.0
        %3304 = vmatpush1.xpose.msra.mxu0 0.0
        %3305 = vmatprep.subr.mxu0 0.0
        %3306 = vmatpush1.xpose.msra.mxu0 0.0
        %3307 = vmatprep.subr.mxu0 0.0
        %3308 = vmatpush1.xpose.msra.mxu0 0.0
        %3309 = vmatprep.subr.mxu0 0.0
        %3310 = vmatpush1.xpose.msra.mxu0 0.0
        %3311 = vmatprep.subr.mxu0 0.0
        %3312 = vmatpush1.xpose.msra.mxu0 0.0
        %3313 = vmatprep.subr.mxu0 0.0
        %3314 = vmatpush1.xpose.msra.mxu0 0.0
        %3315 = vmatprep.subr.mxu0 0.0
        %3316 = vmatpush1.xpose.msra.mxu0 0.0
        %3317 = vmatprep.subr.mxu0 0.0
        %3318 = vmatpush1.xpose.msra.mxu0 0.0
        %3319 = vmatprep.subr.mxu0 0.0
        %3320 = vmatpush1.xpose.msra.mxu0 0.0
        %3321 = vmatprep.subr.mxu0 0.0
        %3322 = vmatpush1.xpose.msra.mxu0 0.0
        %3323 = vmatprep.subr.mxu0 0.0
        %3324 = vmatpush1.xpose.msra.mxu0 0.0
        %3325 = vmatprep.subr.mxu0 0.0
        %3326 = vmatpush1.xpose.msra.mxu0 0.0
        %3327 = vmatprep.subr.mxu0 0.0
        %3328 = vmatpush1.xpose.msra.mxu0 0.0
        %3329 = vmatprep.subr.mxu0 0.0
        %3330 = vmatpush1.xpose.msra.mxu0 0.0
        %3331 = vmatprep.subr.mxu0 0.0
        %3332 = vmatpush1.xpose.msra.mxu0 0.0
        %3333 = vmatprep.subr.mxu0 0.0
        %3334 = vmatpush1.xpose.msra.mxu0 0.0
        %3335 = vmatprep.subr.mxu0 0.0
        %3336 = vmatpush1.xpose.msra.mxu0 0.0
        %3337 = vmatprep.subr.mxu0 0.0
        %3338 = vmatpush1.xpose.msra.mxu0 0.0
        %3339 = vmatprep.subr.mxu0 0.0
        %3340 = vmatpush1.xpose.msra.mxu0 0.0
        %3341 = vmatprep.subr.mxu0 0.0
        %3342 = vmatpush1.xpose.msra.mxu0 0.0
        %3343 = vmatprep.subr.mxu0 0.0
        %3344 = vmatpush1.xpose.msra.mxu0 0.0
        %3345 = vmatprep.subr.mxu0 0.0
        %3346 = vmatpush1.xpose.msra.mxu0 0.0
        %3347 = vmatprep.subr.mxu0 0.0
        %3348 = vmatpush1.xpose.msra.mxu0 0.0
        %3349 = vmatprep.subr.mxu0 0.0
        %3350 = vmatpush1.xpose.msra.mxu0 0.0
        %3351 = vmatprep.subr.mxu0 0.0
        %3352 = vmatpush1.xpose.msra.mxu0 0.0
        %3353 = vmatprep.subr.mxu0 0.0
        %3354 = vmatpush1.xpose.msra.mxu0 0.0
        %3355 = vmatprep.subr.mxu0 0.0
        %3356 = vmatpush1.xpose.msra.mxu0 0.0
        %3357 = vmatprep.subr.mxu0 0.0
        %3358 = vmatpush1.xpose.msra.mxu0 0.0
        %3359 = vmatprep.subr.mxu0 0.0
        %3360 = vmatpush1.xpose.msra.mxu0 0.0
        %3361 = vmatprep.subr.mxu0 0.0
        %3362 = vmatpush1.xpose.msra.mxu0 0.0
        %3363 = vmatprep.subr.mxu0 0.0
        %3364 = vmatpush1.xpose.msra.mxu0 0.0
        %3365 = vmatprep.mubr.f32.mxu0 0.0
        %3366 = vmatmul.mubr.f32.gmra.mrb[0].mxu0 %v3297
        %v3367 = vpop.f32.mrb[0].mxu0
        %v3368 = vadd.f32 0.0, %v3367
        %v3369 = vpop.f32.mrb[0].mxu0
        %3370 = vdwg.mxu0
        %v3372 = vcombine.high %v3368, %v3368
        %v3374 = vunpack.c.l.s4 1966171168
        %v3375 = vunpack.c.0.s8 %v3374
        %v3376 = vlaneseq
        %v3377 = vshrl.u32 %v3376, 7
        %v3378 = vsub.s32 %v3375, %v3377
        %v3379 = vrot.slane %v3368, %v3378
        %v3381 = vunpack.c.l.s4 1966171168
        %v3382 = vunpack.c.0.s8 %v3381
        %v3383 = vlaneseq
        %v3384 = vshrl.u32 %v3383, 7
        %v3385 = vsub.s32 %v3382, %v3384
        %v3386 = vrot.slane %v3372, %v3385
        %v3387 = vcombine.high %v3379, %v3379
        %v3388 = vcombine.high %v3386, %v3386
        %v3390 = vunpack.c.l.s4 1966171168
        %v3391 = vunpack.c.0.s8 %v3390
        %v3392 = vlaneseq
        %v3393 = vshrl.u32 %v3392, 7
        %v3394 = vsub.s32 %v3391, %v3393
        %v3395 = vrot.slane %v3379, %v3394
        %v3397 = vunpack.c.l.s4 1966171168
        %v3398 = vunpack.c.0.s8 %v3397
        %v3399 = vlaneseq
        %v3400 = vshrl.u32 %v3399, 7
        %v3401 = vsub.s32 %v3398, %v3400
        %v3402 = vrot.slane %v3386, %v3401
        %v3404 = vunpack.c.l.s4 1966171168
        %v3405 = vunpack.c.0.s8 %v3404
        %v3406 = vlaneseq
        %v3407 = vshrl.u32 %v3406, 7
        %v3408 = vsub.s32 %v3405, %v3407
        %v3409 = vrot.slane %v3387, %v3408
        %v3411 = vunpack.c.l.s4 1966171168
        %v3412 = vunpack.c.0.s8 %v3411
        %v3413 = vlaneseq
        %v3414 = vshrl.u32 %v3413, 7
        %v3415 = vsub.s32 %v3412, %v3414
        %v3416 = vrot.slane %v3388, %v3415
        %v3417 = vcombine.high %v3395, %v3395
        %v3418 = vcombine.high %v3402, %v3402
        %v3419 = vcombine.high %v3409, %v3409
        %v3420 = vcombine.high %v3416, %v3416
        %v3429 = vsel %vm2718, %v3395, -inf
        %3430 = vmax.xlane.f32.xlu0 %v3429
        %v3431 = vpop.xlane.xlu0 %3430
        %v3432 = vsel %vm2718, %v3409, -inf
        %3433 = vmax.xlane.f32.xlu0 %v3432
        %v3434 = vpop.xlane.xlu0 %3433
        %v3435 = vsel %vm2718, %v3417, -inf
        %3436 = vmax.xlane.f32.xlu0 %v3435
        %v3437 = vpop.xlane.xlu0 %3436
        %v3438 = vsel %vm2718, %v3419, -inf
        %3439 = vmax.xlane.f32.xlu0 %v3438
        %v3440 = vpop.xlane.xlu0 %3439
        %v3441 = vsel %vm2718, %v3402, -inf
        %3442 = vmax.xlane.f32.xlu0 %v3441
        %v3443 = vpop.xlane.xlu0 %3442
        %v3444 = vsel %vm2718, %v3416, -inf
        %3445 = vmax.xlane.f32.xlu0 %v3444
        %v3446 = vpop.xlane.xlu0 %3445
        %v3447 = vsel %vm2718, %v3418, -inf
        %3448 = vmax.xlane.f32.xlu0 %v3447
        %v3449 = vpop.xlane.xlu0 %3448
        %v3450 = vsel %vm2718, %v3420, -inf
        %3451 = vmax.xlane.f32.xlu0 %v3450
        %v3452 = vpop.xlane.xlu0 %3451
        %v3453 = vsub.f32 %v3395, %v3431
        %v3454 = vsub.f32 %v3409, %v3434
        %v3455 = vsub.f32 %v3417, %v3437
        %v3456 = vsub.f32 %v3419, %v3440
        %v3457 = vsub.f32 %v3402, %v3443
        %v3458 = vsub.f32 %v3416, %v3446
        %v3459 = vsub.f32 %v3418, %v3449
        %v3460 = vsub.f32 %v3420, %v3452
        %v3461 = vmul.f32 %v3453, 1.442695
        %v3462 = vpow.pop %v3461
        %v3463 = vmul.f32 %v3454, 1.442695
        %v3464 = vpow.pop %v3463
        %v3465 = vmul.f32 %v3455, 1.442695
        %v3466 = vpow.pop %v3465
        %v3467 = vmul.f32 %v3456, 1.442695
        %v3468 = vpow.pop %v3467
        %v3469 = vmul.f32 %v3457, 1.442695
        %v3470 = vpow.pop %v3469
        %v3471 = vmul.f32 %v3458, 1.442695
        %v3472 = vpow.pop %v3471
        %v3473 = vmul.f32 %v3459, 1.442695
        %v3474 = vpow.pop %v3473
        %v3475 = vmul.f32 %v3460, 1.442695
        %v3476 = vpow.pop %v3475
        %v3477 = vsel %vm2718, %v3462, 0.0
        %3478 = vadd.xlane.f32.xlu0 %v3477
        %v3479 = vpop.xlane.xlu0 %3478
        %v3480 = vsel %vm2718, %v3464, 0.0
        %3481 = vadd.xlane.f32.xlu0 %v3480
        %v3482 = vpop.xlane.xlu0 %3481
        %v3483 = vsel %vm2718, %v3466, 0.0
        %3484 = vadd.xlane.f32.xlu0 %v3483
        %v3485 = vpop.xlane.xlu0 %3484
        %v3486 = vsel %vm2718, %v3468, 0.0
        %3487 = vadd.xlane.f32.xlu0 %v3486
        %v3488 = vpop.xlane.xlu0 %3487
        %v3489 = vsel %vm2718, %v3470, 0.0
        %3490 = vadd.xlane.f32.xlu0 %v3489
        %v3491 = vpop.xlane.xlu0 %3490
        %v3492 = vsel %vm2718, %v3472, 0.0
        %3493 = vadd.xlane.f32.xlu0 %v3492
        %v3494 = vpop.xlane.xlu0 %3493
        %v3495 = vsel %vm2718, %v3474, 0.0
        %3496 = vadd.xlane.f32.xlu0 %v3495
        %v3497 = vpop.xlane.xlu0 %3496
        %v3498 = vsel %vm2718, %v3476, 0.0
        %3499 = vadd.xlane.f32.xlu0 %v3498
        %v3500 = vpop.xlane.xlu0 %3499
        %v3501 = vrcp.pop %v3479
        %v3502 = vrcp.pop %v3482
        %v3503 = vrcp.pop %v3485
        %v3504 = vrcp.pop %v3488
        %v3505 = vrcp.pop %v3491
        %v3506 = vrcp.pop %v3494
        %v3507 = vrcp.pop %v3497
        %v3508 = vrcp.pop %v3500
        %v3509 = vmul.f32 %v3462, %v3501
        %v3510 = vmul.f32 %v3464, %v3502
        %v3511 = vmul.f32 %v3466, %v3503
        %v3512 = vmul.f32 %v3468, %v3504
        %v3513 = vmul.f32 %v3470, %v3505
        %v3514 = vmul.f32 %v3472, %v3506
        %v3515 = vmul.f32 %v3474, %v3507
        %v3516 = vmul.f32 %v3476, %v3508
        %v3525 = vcombine.low %v3509, %v3510
        %v3526 = vcombine.low %v3511, %v3512
        %v3527 = vcombine.low %v3513, %v3514
        %v3528 = vcombine.low %v3515, %v3516
        %v3530 = vunpack.c.l.s4 1966171168
        %v3531 = vunpack.c.0.s8 %v3530
        %v3532 = vlaneseq
        %v3533 = vshrl.u32 %v3532, 7
        %v3534 = vsub.s32 %v3531, %v3533
        %v3535 = vrot.slane %v3525, %v3534
        %v3537 = vunpack.c.l.s4 1966171168
        %v3538 = vunpack.c.0.s8 %v3537
        %v3539 = vlaneseq
        %v3540 = vshrl.u32 %v3539, 7
        %v3541 = vsub.s32 %v3538, %v3540
        %v3542 = vrot.slane %v3526, %v3541
        %v3544 = vunpack.c.l.s4 1966171168
        %v3545 = vunpack.c.0.s8 %v3544
        %v3546 = vlaneseq
        %v3547 = vshrl.u32 %v3546, 7
        %v3548 = vsub.s32 %v3545, %v3547
        %v3549 = vrot.slane %v3527, %v3548
        %v3551 = vunpack.c.l.s4 1966171168
        %v3552 = vunpack.c.0.s8 %v3551
        %v3553 = vlaneseq
        %v3554 = vshrl.u32 %v3553, 7
        %v3555 = vsub.s32 %v3552, %v3554
        %v3556 = vrot.slane %v3528, %v3555
        %v3557 = vcombine.low %v3535, %v3542
        %v3558 = vcombine.low %v3549, %v3556
        %v3560 = vunpack.c.l.s4 1966171168
        %v3561 = vunpack.c.0.s8 %v3560
        %v3562 = vlaneseq
        %v3563 = vshrl.u32 %v3562, 7
        %v3564 = vsub.s32 %v3561, %v3563
        %v3565 = vrot.slane %v3557, %v3564
        %v3567 = vunpack.c.l.s4 1966171168
        %v3568 = vunpack.c.0.s8 %v3567
        %v3569 = vlaneseq
        %v3570 = vshrl.u32 %v3569, 7
        %v3571 = vsub.s32 %v3568, %v3570
        %v3572 = vrot.slane %v3558, %v3571
        %v3573 = vcombine.low %v3565, %v3572
        %3574 = vrot.lane.b32.xlu0 %v2577, 80
        %v3575 = vpop.permute.xlu0 %3574
        %v3577 = vsel %vm888, %v3573, 0
        %3579 = vmatprep.subr.mxu0 0.0
        %3580 = vmatpush1.msra.mxu0 %v3575
        %3581 = vmatprep.subr.mxu0 0.0
        %3582 = vmatpush1.msra.mxu0 0.0
        %3583 = vmatprep.subr.mxu0 0.0
        %3584 = vmatpush1.msra.mxu0 0.0
        %3585 = vmatprep.subr.mxu0 0.0
        %3586 = vmatpush1.msra.mxu0 0.0
        %3587 = vmatprep.subr.mxu0 0.0
        %3588 = vmatpush1.msra.mxu0 0.0
        %3589 = vmatprep.subr.mxu0 0.0
        %3590 = vmatpush1.msra.mxu0 0.0
        %3591 = vmatprep.subr.mxu0 0.0
        %3592 = vmatpush1.msra.mxu0 0.0
        %3593 = vmatprep.subr.mxu0 0.0
        %3594 = vmatpush1.msra.mxu0 0.0
        %3595 = vmatprep.subr.mxu0 0.0
        %3596 = vmatpush1.msra.mxu0 0.0
        %3597 = vmatprep.subr.mxu0 0.0
        %3598 = vmatpush1.msra.mxu0 0.0
        %3599 = vmatprep.subr.mxu0 0.0
        %3600 = vmatpush1.msra.mxu0 0.0
        %3601 = vmatprep.subr.mxu0 0.0
        %3602 = vmatpush1.msra.mxu0 0.0
        %3603 = vmatprep.subr.mxu0 0.0
        %3604 = vmatpush1.msra.mxu0 0.0
        %3605 = vmatprep.subr.mxu0 0.0
        %3606 = vmatpush1.msra.mxu0 0.0
        %3607 = vmatprep.subr.mxu0 0.0
        %3608 = vmatpush1.msra.mxu0 0.0
        %3609 = vmatprep.subr.mxu0 0.0
        %3610 = vmatpush1.msra.mxu0 0.0
        %3611 = vmatprep.subr.mxu0 0.0
        %3612 = vmatpush1.msra.mxu0 0.0
        %3613 = vmatprep.subr.mxu0 0.0
        %3614 = vmatpush1.msra.mxu0 0.0
        %3615 = vmatprep.subr.mxu0 0.0
        %3616 = vmatpush1.msra.mxu0 0.0
        %3617 = vmatprep.subr.mxu0 0.0
        %3618 = vmatpush1.msra.mxu0 0.0
        %3619 = vmatprep.subr.mxu0 0.0
        %3620 = vmatpush1.msra.mxu0 0.0
        %3621 = vmatprep.subr.mxu0 0.0
        %3622 = vmatpush1.msra.mxu0 0.0
        %3623 = vmatprep.subr.mxu0 0.0
        %3624 = vmatpush1.msra.mxu0 0.0
        %3625 = vmatprep.subr.mxu0 0.0
        %3626 = vmatpush1.msra.mxu0 0.0
        %3627 = vmatprep.subr.mxu0 0.0
        %3628 = vmatpush1.msra.mxu0 0.0
        %3629 = vmatprep.subr.mxu0 0.0
        %3630 = vmatpush1.msra.mxu0 0.0
        %3631 = vmatprep.subr.mxu0 0.0
        %3632 = vmatpush1.msra.mxu0 0.0
        %3633 = vmatprep.subr.mxu0 0.0
        %3634 = vmatpush1.msra.mxu0 0.0
        %3635 = vmatprep.subr.mxu0 0.0
        %3636 = vmatpush1.msra.mxu0 0.0
        %3637 = vmatprep.subr.mxu0 0.0
        %3638 = vmatpush1.msra.mxu0 0.0
        %3639 = vmatprep.subr.mxu0 0.0
        %3640 = vmatpush1.msra.mxu0 0.0
        %3641 = vmatprep.subr.mxu0 0.0
        %3642 = vmatpush1.msra.mxu0 0.0
        %3643 = vmatprep.mubr.f32.mxu0 0.0
        %3644 = vmatmul.mubr.f32.gmra.mrb[0].mxu0 %v3577
        %v3645 = vpop.f32.mrb[0].mxu0
        %v3646 = vadd.f32 0.0, %v3645
        %v3647 = vpop.f32.mrb[0].mxu0
        %3648 = vdwg.mxu0
        %3649 = vrot.lane.b32.xlu0 %v2577, 104
        %v3650 = vpop.permute.xlu0 %3649
        %v3652 = vsel %vm888, %v2583, 0
        %v3654 = vsel %vm888, %v3650, 0
        %3656 = vmatprep.subr.mxu0 0.0
        %3657 = vmatpush1.xpose.msra.mxu0 %v3654
        %3658 = vmatprep.subr.mxu0 0.0
        %3659 = vmatpush1.xpose.msra.mxu0 0.0
        %3660 = vmatprep.subr.mxu0 0.0
        %3661 = vmatpush1.xpose.msra.mxu0 0.0
        %3662 = vmatprep.subr.mxu0 0.0
        %3663 = vmatpush1.xpose.msra.mxu0 0.0
        %3664 = vmatprep.subr.mxu0 0.0
        %3665 = vmatpush1.xpose.msra.mxu0 0.0
        %3666 = vmatprep.subr.mxu0 0.0
        %3667 = vmatpush1.xpose.msra.mxu0 0.0
        %3668 = vmatprep.subr.mxu0 0.0
        %3669 = vmatpush1.xpose.msra.mxu0 0.0
        %3670 = vmatprep.subr.mxu0 0.0
        %3671 = vmatpush1.xpose.msra.mxu0 0.0
        %3672 = vmatprep.subr.mxu0 0.0
        %3673 = vmatpush1.xpose.msra.mxu0 0.0
        %3674 = vmatprep.subr.mxu0 0.0
        %3675 = vmatpush1.xpose.msra.mxu0 0.0
        %3676 = vmatprep.subr.mxu0 0.0
        %3677 = vmatpush1.xpose.msra.mxu0 0.0
        %3678 = vmatprep.subr.mxu0 0.0
        %3679 = vmatpush1.xpose.msra.mxu0 0.0
        %3680 = vmatprep.subr.mxu0 0.0
        %3681 = vmatpush1.xpose.msra.mxu0 0.0
        %3682 = vmatprep.subr.mxu0 0.0
        %3683 = vmatpush1.xpose.msra.mxu0 0.0
        %3684 = vmatprep.subr.mxu0 0.0
        %3685 = vmatpush1.xpose.msra.mxu0 0.0
        %3686 = vmatprep.subr.mxu0 0.0
        %3687 = vmatpush1.xpose.msra.mxu0 0.0
        %3688 = vmatprep.subr.mxu0 0.0
        %3689 = vmatpush1.xpose.msra.mxu0 0.0
        %3690 = vmatprep.subr.mxu0 0.0
        %3691 = vmatpush1.xpose.msra.mxu0 0.0
        %3692 = vmatprep.subr.mxu0 0.0
        %3693 = vmatpush1.xpose.msra.mxu0 0.0
        %3694 = vmatprep.subr.mxu0 0.0
        %3695 = vmatpush1.xpose.msra.mxu0 0.0
        %3696 = vmatprep.subr.mxu0 0.0
        %3697 = vmatpush1.xpose.msra.mxu0 0.0
        %3698 = vmatprep.subr.mxu0 0.0
        %3699 = vmatpush1.xpose.msra.mxu0 0.0
        %3700 = vmatprep.subr.mxu0 0.0
        %3701 = vmatpush1.xpose.msra.mxu0 0.0
        %3702 = vmatprep.subr.mxu0 0.0
        %3703 = vmatpush1.xpose.msra.mxu0 0.0
        %3704 = vmatprep.subr.mxu0 0.0
        %3705 = vmatpush1.xpose.msra.mxu0 0.0
        %3706 = vmatprep.subr.mxu0 0.0
        %3707 = vmatpush1.xpose.msra.mxu0 0.0
        %3708 = vmatprep.subr.mxu0 0.0
        %3709 = vmatpush1.xpose.msra.mxu0 0.0
        %3710 = vmatprep.subr.mxu0 0.0
        %3711 = vmatpush1.xpose.msra.mxu0 0.0
        %3712 = vmatprep.subr.mxu0 0.0
        %3713 = vmatpush1.xpose.msra.mxu0 0.0
        %3714 = vmatprep.subr.mxu0 0.0
        %3715 = vmatpush1.xpose.msra.mxu0 0.0
        %3716 = vmatprep.subr.mxu0 0.0
        %3717 = vmatpush1.xpose.msra.mxu0 0.0
        %3718 = vmatprep.subr.mxu0 0.0
        %3719 = vmatpush1.xpose.msra.mxu0 0.0
        %3720 = vmatprep.mubr.f32.mxu0 0.0
        %3721 = vmatmul.mubr.f32.gmra.mrb[0].mxu0 %v3652
        %v3722 = vpop.f32.mrb[0].mxu0
        %v3723 = vadd.f32 0.0, %v3722
        %v3724 = vpop.f32.mrb[0].mxu0
        %3725 = vdwg.mxu0
        %v3727 = vcombine.high %v3723, %v3723
        %v3729 = vunpack.c.l.s4 1966171168
        %v3730 = vunpack.c.0.s8 %v3729
        %v3731 = vlaneseq
        %v3732 = vshrl.u32 %v3731, 7
        %v3733 = vsub.s32 %v3730, %v3732
        %v3734 = vrot.slane %v3723, %v3733
        %v3736 = vunpack.c.l.s4 1966171168
        %v3737 = vunpack.c.0.s8 %v3736
        %v3738 = vlaneseq
        %v3739 = vshrl.u32 %v3738, 7
        %v3740 = vsub.s32 %v3737, %v3739
        %v3741 = vrot.slane %v3727, %v3740
        %v3742 = vcombine.high %v3734, %v3734
        %v3743 = vcombine.high %v3741, %v3741
        %v3745 = vunpack.c.l.s4 1966171168
        %v3746 = vunpack.c.0.s8 %v3745
        %v3747 = vlaneseq
        %v3748 = vshrl.u32 %v3747, 7
        %v3749 = vsub.s32 %v3746, %v3748
        %v3750 = vrot.slane %v3734, %v3749
        %v3752 = vunpack.c.l.s4 1966171168
        %v3753 = vunpack.c.0.s8 %v3752
        %v3754 = vlaneseq
        %v3755 = vshrl.u32 %v3754, 7
        %v3756 = vsub.s32 %v3753, %v3755
        %v3757 = vrot.slane %v3741, %v3756
        %v3759 = vunpack.c.l.s4 1966171168
        %v3760 = vunpack.c.0.s8 %v3759
        %v3761 = vlaneseq
        %v3762 = vshrl.u32 %v3761, 7
        %v3763 = vsub.s32 %v3760, %v3762
        %v3764 = vrot.slane %v3742, %v3763
        %v3766 = vunpack.c.l.s4 1966171168
        %v3767 = vunpack.c.0.s8 %v3766
        %v3768 = vlaneseq
        %v3769 = vshrl.u32 %v3768, 7
        %v3770 = vsub.s32 %v3767, %v3769
        %v3771 = vrot.slane %v3743, %v3770
        %v3772 = vcombine.high %v3750, %v3750
        %v3773 = vcombine.high %v3757, %v3757
        %v3774 = vcombine.high %v3764, %v3764
        %v3775 = vcombine.high %v3771, %v3771
        %v3784 = vsel %vm2718, %v3750, -inf
        %3785 = vmax.xlane.f32.xlu0 %v3784
        %v3786 = vpop.xlane.xlu0 %3785
        %v3787 = vsel %vm2718, %v3764, -inf
        %3788 = vmax.xlane.f32.xlu0 %v3787
        %v3789 = vpop.xlane.xlu0 %3788
        %v3790 = vsel %vm2718, %v3772, -inf
        %3791 = vmax.xlane.f32.xlu0 %v3790
        %v3792 = vpop.xlane.xlu0 %3791
        %v3793 = vsel %vm2718, %v3774, -inf
        %3794 = vmax.xlane.f32.xlu0 %v3793
        %v3795 = vpop.xlane.xlu0 %3794
        %v3796 = vsel %vm2718, %v3757, -inf
        %3797 = vmax.xlane.f32.xlu0 %v3796
        %v3798 = vpop.xlane.xlu0 %3797
        %v3799 = vsel %vm2718, %v3771, -inf
        %3800 = vmax.xlane.f32.xlu0 %v3799
        %v3801 = vpop.xlane.xlu0 %3800
        %v3802 = vsel %vm2718, %v3773, -inf
        %3803 = vmax.xlane.f32.xlu0 %v3802
        %v3804 = vpop.xlane.xlu0 %3803
        %v3805 = vsel %vm2718, %v3775, -inf
        %3806 = vmax.xlane.f32.xlu0 %v3805
        %v3807 = vpop.xlane.xlu0 %3806
        %v3808 = vsub.f32 %v3750, %v3786
        %v3809 = vsub.f32 %v3764, %v3789
        %v3810 = vsub.f32 %v3772, %v3792
        %v3811 = vsub.f32 %v3774, %v3795
        %v3812 = vsub.f32 %v3757, %v3798
        %v3813 = vsub.f32 %v3771, %v3801
        %v3814 = vsub.f32 %v3773, %v3804
        %v3815 = vsub.f32 %v3775, %v3807
        %v3816 = vmul.f32 %v3808, 1.442695
        %v3817 = vpow.pop %v3816
        %v3818 = vmul.f32 %v3809, 1.442695
        %v3819 = vpow.pop %v3818
        %v3820 = vmul.f32 %v3810, 1.442695
        %v3821 = vpow.pop %v3820
        %v3822 = vmul.f32 %v3811, 1.442695
        %v3823 = vpow.pop %v3822
        %v3824 = vmul.f32 %v3812, 1.442695
        %v3825 = vpow.pop %v3824
        %v3826 = vmul.f32 %v3813, 1.442695
        %v3827 = vpow.pop %v3826
        %v3828 = vmul.f32 %v3814, 1.442695
        %v3829 = vpow.pop %v3828
        %v3830 = vmul.f32 %v3815, 1.442695
        %v3831 = vpow.pop %v3830
        %v3832 = vsel %vm2718, %v3817, 0.0
        %3833 = vadd.xlane.f32.xlu0 %v3832
        %v3834 = vpop.xlane.xlu0 %3833
        %v3835 = vsel %vm2718, %v3819, 0.0
        %3836 = vadd.xlane.f32.xlu0 %v3835
        %v3837 = vpop.xlane.xlu0 %3836
        %v3838 = vsel %vm2718, %v3821, 0.0
        %3839 = vadd.xlane.f32.xlu0 %v3838
        %v3840 = vpop.xlane.xlu0 %3839
        %v3841 = vsel %vm2718, %v3823, 0.0
        %3842 = vadd.xlane.f32.xlu0 %v3841
        %v3843 = vpop.xlane.xlu0 %3842
        %v3844 = vsel %vm2718, %v3825, 0.0
        %3845 = vadd.xlane.f32.xlu0 %v3844
        %v3846 = vpop.xlane.xlu0 %3845
        %v3847 = vsel %vm2718, %v3827, 0.0
        %3848 = vadd.xlane.f32.xlu0 %v3847
        %v3849 = vpop.xlane.xlu0 %3848
        %v3850 = vsel %vm2718, %v3829, 0.0
        %3851 = vadd.xlane.f32.xlu0 %v3850
        %v3852 = vpop.xlane.xlu0 %3851
        %v3853 = vsel %vm2718, %v3831, 0.0
        %3854 = vadd.xlane.f32.xlu0 %v3853
        %v3855 = vpop.xlane.xlu0 %3854
        %v3856 = vrcp.pop %v3834
        %v3857 = vrcp.pop %v3837
        %v3858 = vrcp.pop %v3840
        %v3859 = vrcp.pop %v3843
        %v3860 = vrcp.pop %v3846
        %v3861 = vrcp.pop %v3849
        %v3862 = vrcp.pop %v3852
        %v3863 = vrcp.pop %v3855
        %v3864 = vmul.f32 %v3817, %v3856
        %v3865 = vmul.f32 %v3819, %v3857
        %v3866 = vmul.f32 %v3821, %v3858
        %v3867 = vmul.f32 %v3823, %v3859
        %v3868 = vmul.f32 %v3825, %v3860
        %v3869 = vmul.f32 %v3827, %v3861
        %v3870 = vmul.f32 %v3829, %v3862
        %v3871 = vmul.f32 %v3831, %v3863
        %v3880 = vcombine.low %v3864, %v3865
        %v3881 = vcombine.low %v3866, %v3867
        %v3882 = vcombine.low %v3868, %v3869
        %v3883 = vcombine.low %v3870, %v3871
        %v3885 = vunpack.c.l.s4 1966171168
        %v3886 = vunpack.c.0.s8 %v3885
        %v3887 = vlaneseq
        %v3888 = vshrl.u32 %v3887, 7
        %v3889 = vsub.s32 %v3886, %v3888
        %v3890 = vrot.slane %v3880, %v3889
        %v3892 = vunpack.c.l.s4 1966171168
        %v3893 = vunpack.c.0.s8 %v3892
        %v3894 = vlaneseq
        %v3895 = vshrl.u32 %v3894, 7
        %v3896 = vsub.s32 %v3893, %v3895
        %v3897 = vrot.slane %v3881, %v3896
        %v3899 = vunpack.c.l.s4 1966171168
        %v3900 = vunpack.c.0.s8 %v3899
        %v3901 = vlaneseq
        %v3902 = vshrl.u32 %v3901, 7
        %v3903 = vsub.s32 %v3900, %v3902
        %v3904 = vrot.slane %v3882, %v3903
        %v3906 = vunpack.c.l.s4 1966171168
        %v3907 = vunpack.c.0.s8 %v3906
        %v3908 = vlaneseq
        %v3909 = vshrl.u32 %v3908, 7
        %v3910 = vsub.s32 %v3907, %v3909
        %v3911 = vrot.slane %v3883, %v3910
        %v3912 = vcombine.low %v3890, %v3897
        %v3913 = vcombine.low %v3904, %v3911
        %v3915 = vunpack.c.l.s4 1966171168
        %v3916 = vunpack.c.0.s8 %v3915
        %v3917 = vlaneseq
        %v3918 = vshrl.u32 %v3917, 7
        %v3919 = vsub.s32 %v3916, %v3918
        %v3920 = vrot.slane %v3912, %v3919
        %v3922 = vunpack.c.l.s4 1966171168
        %v3923 = vunpack.c.0.s8 %v3922
        %v3924 = vlaneseq
        %v3925 = vshrl.u32 %v3924, 7
        %v3926 = vsub.s32 %v3923, %v3925
        %v3927 = vrot.slane %v3913, %v3926
        %v3928 = vcombine.low %v3920, %v3927
        %3929 = vrot.lane.b32.xlu0 %v2577, 72
        %v3930 = vpop.permute.xlu0 %3929
        %v3932 = vsel %vm888, %v3928, 0
        %3934 = vmatprep.subr.mxu0 0.0
        %3935 = vmatpush1.msra.mxu0 %v3930
        %3936 = vmatprep.subr.mxu0 0.0
        %3937 = vmatpush1.msra.mxu0 0.0
        %3938 = vmatprep.subr.mxu0 0.0
        %3939 = vmatpush1.msra.mxu0 0.0
        %3940 = vmatprep.subr.mxu0 0.0
        %3941 = vmatpush1.msra.mxu0 0.0
        %3942 = vmatprep.subr.mxu0 0.0
        %3943 = vmatpush1.msra.mxu0 0.0
        %3944 = vmatprep.subr.mxu0 0.0
        %3945 = vmatpush1.msra.mxu0 0.0
        %3946 = vmatprep.subr.mxu0 0.0
        %3947 = vmatpush1.msra.mxu0 0.0
        %3948 = vmatprep.subr.mxu0 0.0
        %3949 = vmatpush1.msra.mxu0 0.0
        %3950 = vmatprep.subr.mxu0 0.0
        %3951 = vmatpush1.msra.mxu0 0.0
        %3952 = vmatprep.subr.mxu0 0.0
        %3953 = vmatpush1.msra.mxu0 0.0
        %3954 = vmatprep.subr.mxu0 0.0
        %3955 = vmatpush1.msra.mxu0 0.0
        %3956 = vmatprep.subr.mxu0 0.0
        %3957 = vmatpush1.msra.mxu0 0.0
        %3958 = vmatprep.subr.mxu0 0.0
        %3959 = vmatpush1.msra.mxu0 0.0
        %3960 = vmatprep.subr.mxu0 0.0
        %3961 = vmatpush1.msra.mxu0 0.0
        %3962 = vmatprep.subr.mxu0 0.0
        %3963 = vmatpush1.msra.mxu0 0.0
        %3964 = vmatprep.subr.mxu0 0.0
        %3965 = vmatpush1.msra.mxu0 0.0
        %3966 = vmatprep.subr.mxu0 0.0
        %3967 = vmatpush1.msra.mxu0 0.0
        %3968 = vmatprep.subr.mxu0 0.0
        %3969 = vmatpush1.msra.mxu0 0.0
        %3970 = vmatprep.subr.mxu0 0.0
        %3971 = vmatpush1.msra.mxu0 0.0
        %3972 = vmatprep.subr.mxu0 0.0
        %3973 = vmatpush1.msra.mxu0 0.0
        %3974 = vmatprep.subr.mxu0 0.0
        %3975 = vmatpush1.msra.mxu0 0.0
        %3976 = vmatprep.subr.mxu0 0.0
        %3977 = vmatpush1.msra.mxu0 0.0
        %3978 = vmatprep.subr.mxu0 0.0
        %3979 = vmatpush1.msra.mxu0 0.0
        %3980 = vmatprep.subr.mxu0 0.0
        %3981 = vmatpush1.msra.mxu0 0.0
        %3982 = vmatprep.subr.mxu0 0.0
        %3983 = vmatpush1.msra.mxu0 0.0
        %3984 = vmatprep.subr.mxu0 0.0
        %3985 = vmatpush1.msra.mxu0 0.0
        %3986 = vmatprep.subr.mxu0 0.0
        %3987 = vmatpush1.msra.mxu0 0.0
        %3988 = vmatprep.subr.mxu0 0.0
        %3989 = vmatpush1.msra.mxu0 0.0
        %3990 = vmatprep.subr.mxu0 0.0
        %3991 = vmatpush1.msra.mxu0 0.0
        %3992 = vmatprep.subr.mxu0 0.0
        %3993 = vmatpush1.msra.mxu0 0.0
        %3994 = vmatprep.subr.mxu0 0.0
        %3995 = vmatpush1.msra.mxu0 0.0
        %3996 = vmatprep.subr.mxu0 0.0
        %3997 = vmatpush1.msra.mxu0 0.0
        %3998 = vmatprep.mubr.f32.mxu0 0.0
        %3999 = vmatmul.mubr.f32.gmra.mrb[0].mxu0 %v3932
        %v4000 = vpop.f32.mrb[0].mxu0
        %v4001 = vadd.f32 0.0, %v4000
        %v4002 = vpop.f32.mrb[0].mxu0
        %4003 = vdwg.mxu0
        %4005 = vrot.lane.b32.xlu0 %v3291, 8
        %v4006 = vpop.permute.xlu0 %4005
        %4009 = vrot.lane.b32.xlu0 %v3646, 16
        %v4010 = vpop.permute.xlu0 %4009
        %4013 = vrot.lane.b32.xlu0 %v4001, 24
        %v4014 = vpop.permute.xlu0 %4013
        %v4016 = vsel %vm888, %v2936, %v4006
        %v4017 = vsel %vm1178, %v4016, %v4010
        %v4018 = vsel %vm2351, %v4017, %v4014
        %v4019 = vld [vmem:[#allocation13] sm:$0xff]
        %v4020 = vld [vmem:[#allocation13 + $0x8] sm:$0xff]
        %v4021 = vld [vmem:[#allocation13 + $0x10] sm:$0xff]
        %v4022 = vld [vmem:[#allocation13 + $0x18] sm:$0xff]
        %v4023 = vld [vmem:[%s16] sm:$0x1]
        %v4025 = vlaneseq
        %v4026 = vshrl.u32 %v4025, 7
        %v4027 = vsub.s32 0, %v4026
        %v4028 = vrot.slane %v4023, %v4027
        %v4031 = vsel %vm748, %v4018, 0
        %4033 = vmatprep.subr.mxu0 0.0
        %4034 = vmatpush1.msra.mxu0 %v4019
        %4035 = vmatprep.subr.mxu0 0.0
        %4036 = vmatpush1.msra.mxu0 %v4020
        %4037 = vmatprep.subr.mxu0 0.0
        %4038 = vmatpush1.msra.mxu0 %v4021
        %4039 = vmatprep.subr.mxu0 0.0
        %4040 = vmatpush1.msra.mxu0 %v4022
        %4041 = vmatprep.subr.mxu0 0.0
        %4042 = vmatpush1.msra.mxu0 0.0
        %4043 = vmatprep.subr.mxu0 0.0
        %4044 = vmatpush1.msra.mxu0 0.0
        %4045 = vmatprep.subr.mxu0 0.0
        %4046 = vmatpush1.msra.mxu0 0.0
        %4047 = vmatprep.subr.mxu0 0.0
        %4048 = vmatpush1.msra.mxu0 0.0
        %4049 = vmatprep.subr.mxu0 0.0
        %4050 = vmatpush1.msra.mxu0 0.0
        %4051 = vmatprep.subr.mxu0 0.0
        %4052 = vmatpush1.msra.mxu0 0.0
        %4053 = vmatprep.subr.mxu0 0.0
        %4054 = vmatpush1.msra.mxu0 0.0
        %4055 = vmatprep.subr.mxu0 0.0
        %4056 = vmatpush1.msra.mxu0 0.0
        %4057 = vmatprep.subr.mxu0 0.0
        %4058 = vmatpush1.msra.mxu0 0.0
        %4059 = vmatprep.subr.mxu0 0.0
        %4060 = vmatpush1.msra.mxu0 0.0
        %4061 = vmatprep.subr.mxu0 0.0
        %4062 = vmatpush1.msra.mxu0 0.0
        %4063 = vmatprep.subr.mxu0 0.0
        %4064 = vmatpush1.msra.mxu0 0.0
        %4065 = vmatprep.subr.mxu0 0.0
        %4066 = vmatpush1.msra.mxu0 0.0
        %4067 = vmatprep.subr.mxu0 0.0
        %4068 = vmatpush1.msra.mxu0 0.0
        %4069 = vmatprep.subr.mxu0 0.0
        %4070 = vmatpush1.msra.mxu0 0.0
        %4071 = vmatprep.subr.mxu0 0.0
        %4072 = vmatpush1.msra.mxu0 0.0
        %4073 = vmatprep.subr.mxu0 0.0
        %4074 = vmatpush1.msra.mxu0 0.0
        %4075 = vmatprep.subr.mxu0 0.0
        %4076 = vmatpush1.msra.mxu0 0.0
        %4077 = vmatprep.subr.mxu0 0.0
        %4078 = vmatpush1.msra.mxu0 0.0
        %4079 = vmatprep.subr.mxu0 0.0
        %4080 = vmatpush1.msra.mxu0 0.0
        %4081 = vmatprep.subr.mxu0 0.0
        %4082 = vmatpush1.msra.mxu0 0.0
        %4083 = vmatprep.subr.mxu0 0.0
        %4084 = vmatpush1.msra.mxu0 0.0
        %4085 = vmatprep.subr.mxu0 0.0
        %4086 = vmatpush1.msra.mxu0 0.0
        %4087 = vmatprep.subr.mxu0 0.0
        %4088 = vmatpush1.msra.mxu0 0.0
        %4089 = vmatprep.subr.mxu0 0.0
        %4090 = vmatpush1.msra.mxu0 0.0
        %4091 = vmatprep.subr.mxu0 0.0
        %4092 = vmatpush1.msra.mxu0 0.0
        %4093 = vmatprep.subr.mxu0 0.0
        %4094 = vmatpush1.msra.mxu0 0.0
        %4095 = vmatprep.subr.mxu0 0.0
        %4096 = vmatpush1.msra.mxu0 0.0
        %4097 = vmatprep.mubr.f32.mxu0 0.0
        %4098 = vmatmul.mubr.f32.gmra.mrb[0].mxu0 %v4031
        %v4099 = vpop.f32.mrb[0].mxu0
        %v4100 = vadd.f32 %v4028, %v4099
        %v4101 = vpop.f32.mrb[0].mxu0
        %4102 = vdwg.mxu0
        %v4103 = vld [vmem:[%s17] sm:$0x1]
        %v4104 = vld [vmem:[%s18] sm:$0x1]
        %v4105 = vsel %vm748, %v4100, 0.0
        %4106 = vadd.xlane.f32.xlu0 %v4105
        %v4107 = vpop.xlane.xlu0 %4106
        %v4108 = vmul.f32 %v4107, %v755
        %v4109 = vsub.f32 %v4100, %v4108
        %v4110 = vmul.f32 %v4109, %v4109
        %v4111 = vsel %vm748, %v4110, 0.0
        %4112 = vadd.xlane.f32.xlu0 %v4111
        %v4113 = vpop.xlane.xlu0 %4112
        %v4114 = vmul.f32 %v4113, %v755
        %v4115 = vadd.f32 %v4114, 1e-05
        %v4116 = vrsqrt.pop %v4115
        %v4117 = vmul.f32 %v4109, %v4116
        %v4119 = vlaneseq
        %v4120 = vshrl.u32 %v4119, 7
        %v4121 = vsub.s32 0, %v4120
        %v4122 = vrot.slane %v4103, %v4121
        %v4124 = vmul.f32 %v4117, %v4122
        %v4126 = vlaneseq
        %v4127 = vshrl.u32 %v4126, 7
        %v4128 = vsub.s32 0, %v4127
        %v4129 = vrot.slane %v4104, %v4128
        %v4131 = vadd.f32 %v4124, %v4129
        %4132 = vst.msk [vmem:[%s743] sm:$0xff] %vm748, %v4131
        %s4133 = sand.u32 %s456, 1
        %s4134 = scalar_lea.sflag [#allocation4], %s4133
        %s4135 = sand.u32 %s456, 1
        %s4136 = smul.addr %s4135, 8
        %s4137 = scalar_lea.vmem [#allocation14], %s4136
        %s4138 = sand.u32 %s482, 1
        %s4139 = scalar_lea.sflag [#allocation16], %s4138
        %s4140 = sand.u32 %s482, 1
        %s4141 = smul.addr %s4140, 8
        %s4142 = scalar_lea.vmem [#allocation15], %s4141
        // Predicated region
        $region125: #{tpu_custom_call.1} parent=95 // pred_check
          %p4143 = pneg %p466
        $region126: #{tpu_custom_call.1} parent=95 // pred_check_branch
          %4145 = sbr.rel (%p4143) target = $region128
        $region127: #{tpu_custom_call.1} parent=95 // pred_region
          %s4147 = ssub.s32 128, 128
          %4148 = vsyncadd %s4134, %s4147
          %s4149 = smul.addr %s44, 128
          %s4150 = scalar_lea.hbm %s19, %s4149
          %s4152 = sshll.u32 %s4137, 4
          %s4153 = int_to_ptr.vmem [resolvable:$true] %s4152
          %4155 = dma.vmem_to_hbm [thread:$0]  %s4153, 128, %s4150, %s4134
        $region128: #{tpu_custom_call.1} parent=95 // pred_fallthru
          _
        // Predicated region
        $region129: #{tpu_custom_call.1} parent=95 // pred_check
          %p4156 = pneg %p492
        $region130: #{tpu_custom_call.1} parent=95 // pred_check_branch
          %4158 = sbr.rel (%p4156) target = $region132
        $region131: #{tpu_custom_call.1} parent=95 // pred_region
          %s4160 = ssub.s32 128, 128
          %4161 = vsyncadd %s4139, %s4160
          %s4162 = smul.addr %s44, 128
          %s4163 = scalar_lea.hbm %s20, %s4162
          %s4165 = sshll.u32 %s4142, 4
          %s4166 = int_to_ptr.vmem [resolvable:$true] %s4165
          %4168 = dma.vmem_to_hbm [thread:$0]  %s4166, 128, %s4163, %s4139
        $region132: #{tpu_custom_call.1} parent=95 // pred_fallthru
          _
      $region96: #{tpu_custom_call.1} parent=5 // pred_fallthru
        _
      %p4169 = scmp.le.s32.totalorder 2, %s39
      // Predicated region
      $region133: #{tpu_custom_call.1} parent=5 // pred_check
        %p4170 = pneg %p4169
      $region134: #{tpu_custom_call.1} parent=5 // pred_check_branch
        %4172 = sbr.rel (%p4170) target = $region136
      $region135: #{tpu_custom_call.1} parent=5 // pred_region
        %s4173 = ssub.s32 %s39, 2
        // Predicated region
        $region137: #{tpu_custom_call.1} parent=135 // pred_check
          %p4174 = pneg %p472
        $region138: #{tpu_custom_call.1} parent=135 // pred_check_branch
          %4176 = sbr.rel (%p4174) target = $region140
        $region139: #{tpu_custom_call.1} parent=135 // pred_region
          %s4177 = sand.u32 %s457, 1
          %s4178 = scalar_lea.sflag [#allocation4], %s4177
          %s4179 = sand.u32 %s457, 1
          %s4180 = smul.addr %s4179, 8
          %s4181 = scalar_lea.vmem [#allocation14], %s4180
          %4182 = dma.done %s4178, 128
        $region140: #{tpu_custom_call.1} parent=135 // pred_fallthru
          _
        // Predicated region
        $region141: #{tpu_custom_call.1} parent=135 // pred_check
          %p4183 = pneg %p498
        $region142: #{tpu_custom_call.1} parent=135 // pred_check_branch
          %4185 = sbr.rel (%p4183) target = $region144
        $region143: #{tpu_custom_call.1} parent=135 // pred_region
          %s4186 = sand.u32 %s483, 1
          %s4187 = scalar_lea.sflag [#allocation16], %s4186
          %s4188 = sand.u32 %s483, 1
          %s4189 = smul.addr %s4188, 8
          %s4190 = scalar_lea.vmem [#allocation15], %s4189
          %4191 = dma.done %s4187, 128
        $region144: #{tpu_custom_call.1} parent=135 // pred_fallthru
          _
      $region136: #{tpu_custom_call.1} parent=5 // pred_fallthru
        _
    $region6: #{tpu_custom_call.1} parent=1 // loop_footer
      %s43 = sadd.s32 1, %s39
    $region7: #{tpu_custom_call.1} parent=1 // loop_footer_branch
      %38 = sbr.rel target = $region3
    $region8: #{tpu_custom_call.1} parent=1 // loop_exit
      _
    %4192 = vsyncpa [#allocation3], 1
    %s4193 = scalar_lea.sflag [#allocation3], 1
    %4194 = vsyncpa %s4193, 1
    %4195 = vsyncpa [#allocation6], 1
    %4196 = vsyncpa [#allocation9], 1
    %4197 = vsyncpa [#allocation12], 1
    %4198 = vsyncpa [#allocation4], 1
    %s4199 = scalar_lea.sflag [#allocation4], 1
    %4200 = vsyncpa %s4199, 1
    %4201 = vsyncpa [#allocation16], 1
    %s4202 = scalar_lea.sflag [#allocation16], 1
    %4203 = vsyncpa %s4202, 1

</llo_original>
